<compile_context>
chip_gen: v6e
topology: v6e:2x2x1
jax: 0.10.0
libtpu: 0.0.40
codegen_flags: <defaults>
</compile_context>

<pallas_src>
import functools

import jax
import jax.numpy as jnp
from jax.experimental import pallas as pl
from jax.experimental.pallas import tpu as pltpu

_BN_EPS = 1e-5
_VMEM_SPEC = pl.BlockSpec(memory_space=pltpu.MemorySpace.VMEM)


# ----------------------------------------------------------------------------
# Fused conv-block kernel: Conv3x3(same)+bias -> BatchNorm(batch stats) -> ReLU -> MaxPool2x2
# Grid = (pass, image):  pass 0 accumulates BN statistics, pass 1 normalizes + pools.
# ----------------------------------------------------------------------------
def _conv_bn_relu_pool_kernel(x_ref, w_ref, b_ref, g_ref, be_ref,   # inputs
                              o_ref,                                # output (pooled, bf16)
                              sum_ref, ssq_ref, ybuf,               # VMEM scratch
                              *, H, W, inv_count):
    HW = H * W
    Ho, Wo = H // 2, W // 2
    p = pl.program_id(0)   # 0: stats pass, 1: normalize/pool pass
    n = pl.program_id(1)   # image index

    # 3x3 'same' conv as 3 MXU matmuls over row-shifted views of the width-unrolled input.
    # x_ref rows are (h', w) with h' in [0, H+2); lanes are (dj, ci).  Tap di is the
    # contiguous row window [di*W, di*W + H*W).
    acc = jnp.dot(x_ref[0, pl.ds(0, HW), :], w_ref[0],
                  preferred_element_type=jnp.float32)
    for di in (1, 2):
        acc = acc + jnp.dot(x_ref[0, pl.ds(di * W, HW), :], w_ref[di],
                            preferred_element_type=jnp.float32)
    acc = acc + b_ref[...]                       # conv bias (cancelled by BN, kept for fidelity)

    @pl.when(jnp.logical_and(p == 0, n == 0))
    def _init_stats():
        sum_ref[...] = jnp.zeros_like(sum_ref)
        ssq_ref[...] = jnp.zeros_like(ssq_ref)

    @pl.when(p == 0)
    def _accumulate_stats():
        sum_ref[...] += jnp.sum(acc, axis=0, keepdims=True)
        ssq_ref[...] += jnp.sum(acc * acc, axis=0, keepdims=True)

    @pl.when(p == 1)
    def _normalize_relu_pool():
        mean = sum_ref[...] * inv_count
        var = jnp.maximum(ssq_ref[...] * inv_count - mean * mean, 0.0)   # E[x^2]-mean^2, clamped
        rstd = jax.lax.rsqrt(var + _BN_EPS)
        scale = g_ref[...] * rstd
        shift = be_ref[...] - mean * scale
        ybuf[...] = jnp.maximum(acc * scale + shift, 0.0)   # post-BN, post-ReLU, full res in VMEM

        # 2x2 max-pool straight out of VMEM: rows of ybuf are (h, w) row-major.
        for i in range(Ho):                                 # static unroll over pooled rows
            t00 = ybuf[pl.ds(2 * i * W, Wo, stride=2), :]
            t01 = ybuf[pl.ds(2 * i * W + 1, Wo, stride=2), :]
            t10 = ybuf[pl.ds((2 * i + 1) * W, Wo, stride=2), :]
            t11 = ybuf[pl.ds((2 * i + 1) * W + 1, Wo, stride=2), :]
            pooled = jnp.maximum(jnp.maximum(t00, t01), jnp.maximum(t10, t11))
            o_ref[0, pl.ds(i * Wo, Wo), :] = pooled.astype(o_ref.dtype)


def conv_block(x, w, b, gamma, beta):
    """x: (N, H, W, Cin) NHWC; w: (3, 3, Cin, Cout).  Returns (N, H//2, W//2, Cout) bf16."""
    N, H, W, Cin = x.shape
    Cout = w.shape[-1]
    Ho, Wo = H // 2, W // 2
    HW = H * W

    # Width-unrolled input: pad spatially, concat the 3 width taps into the lane dim
    # (3x materialization instead of the 9x full im2col).  Shape (N, (H+2)*W, 3*Cin).
    xp = jnp.pad(x.astype(jnp.bfloat16), ((0, 0), (1, 1), (1, 1), (0, 0)))
    xw = jnp.concatenate([xp[:, :, dj:dj + W, :] for dj in range(3)], axis=-1)
    xw = xw.reshape(N, (H + 2) * W, 3 * Cin)
    wm = w.reshape(3, 3 * Cin, Cout).astype(jnp.bfloat16)   # (di, (dj, ci), co)

    kernel = functools.partial(_conv_bn_relu_pool_kernel,
                               H=H, W=W, inv_count=1.0 / float(N * H * W))
    out = pl.pallas_call(
        kernel,
        out_shape=jax.ShapeDtypeStruct((N, Ho * Wo, Cout), jnp.bfloat16),
        grid=(2, N),
        in_specs=[
            pl.BlockSpec((1, (H + 2) * W, 3 * Cin), lambda p, n: (n, 0, 0)),
            pl.BlockSpec((3, 3 * Cin, Cout), lambda p, n: (0, 0, 0)),
            pl.BlockSpec((1, Cout), lambda p, n: (0, 0)),
            pl.BlockSpec((1, Cout), lambda p, n: (0, 0)),
            pl.BlockSpec((1, Cout), lambda p, n: (0, 0)),
        ],
        out_specs=pl.BlockSpec((1, Ho * Wo, Cout), lambda p, n: (n, 0, 0)),
        scratch_shapes=[
            pltpu.VMEM((1, Cout), jnp.float32),    # per-channel sum
            pltpu.VMEM((1, Cout), jnp.float32),    # per-channel sum of squares
            pltpu.VMEM((HW, Cout), jnp.float32),   # post-BN/ReLU tile for pooling
        ],
        compiler_params=pltpu.CompilerParams(
            dimension_semantics=("arbitrary", "arbitrary")),
    )(xw, wm,
      b.reshape(1, Cout).astype(jnp.float32),
      gamma.reshape(1, Cout).astype(jnp.float32),
      beta.reshape(1, Cout).astype(jnp.float32))
    return out.reshape(N, Ho, Wo, Cout)


# ----------------------------------------------------------------------------
# FC head: Linear -> ReLU -> Linear (single fused kernel, everything VMEM-resident)
# ----------------------------------------------------------------------------
def _fc_kernel(x_ref, w1_ref, b1_ref, w2_ref, b2_ref, o_ref):
    h = jnp.dot(x_ref[...], w1_ref[...], preferred_element_type=jnp.float32) + b1_ref[...]
    h = jnp.maximum(h, 0.0).astype(w2_ref.dtype)
    o_ref[...] = jnp.dot(h, w2_ref[...], preferred_element_type=jnp.float32) + b2_ref[...]


def fc_head(x_flat, w1p, b1, w2, b2):
    N = x_flat.shape[0]
    n_classes = w2.shape[1]
    return pl.pallas_call(
        _fc_kernel,
        out_shape=jax.ShapeDtypeStruct((N, n_classes), jnp.float32),
        in_specs=[_VMEM_SPEC] * 5,
        out_specs=_VMEM_SPEC,
    )(x_flat.astype(jnp.bfloat16), w1p.astype(jnp.bfloat16),
      b1.reshape(1, -1).astype(jnp.float32),
      w2.astype(jnp.bfloat16), b2.reshape(1, -1).astype(jnp.float32))


# ----------------------------------------------------------------------------
# Full forward pass
# ----------------------------------------------------------------------------
def forward(x_nchw, params):
    """ClassificationModule2 forward.  x_nchw: (N, C, H, W) float32 -> (N, n_classes)."""
    x = jnp.transpose(x_nchw, (0, 2, 3, 1))                 # NCHW -> NHWC
    for (w, b, g, be) in params["conv_blocks"]:
        x = conv_block(x, w, b, g, be)

    N, Ho, Wo, C = x.shape
    x_flat = x.reshape(N, Ho * Wo * C)                      # NHWC flatten (free view)

    w1, b1, w2, b2 = params["fc"]
    # Fold torch.nn.Flatten's NCHW ordering into w1's rows (one-time weight permutation).
    w1p = (w1.reshape(C, Ho, Wo, w1.shape[1])
             .transpose(1, 2, 0, 3)
             .reshape(C * Ho * Wo, w1.shape[1]))
    return fc_head(x_flat, w1p, b1, w2, b2)


# ----------------------------------------------------------------------------
# Deterministic parameter initialization (synthetic; shapes follow the module's __init__)
# ----------------------------------------------------------------------------
def init_params(key, in_dim=3, n_filters=8, hidden_dim=64, n_classes=5):
    keys = jax.random.split(key, 12)
    ki = 0
    conv_blocks = []
    cin = in_dim
    for mult in (1, 2, 4, 8):
        cout = n_filters * mult
        fan_in = 3 * 3 * cin
        w = jax.random.normal(keys[ki], (3, 3, cin, cout), jnp.float32) / jnp.sqrt(float(fan_in)); ki += 1
        b = 0.01 * jax.random.normal(keys[ki], (cout,), jnp.float32); ki += 1
        gamma = jnp.ones((cout,), jnp.float32)               # PyTorch BatchNorm2d default affine init
        beta = jnp.zeros((cout,), jnp.float32)
        conv_blocks.append((w, b, gamma, beta))
        cin = cout
    w1 = jax.random.normal(keys[ki], (hidden_dim, 128), jnp.float32) / jnp.sqrt(float(hidden_dim)); ki += 1
    b1 = 0.01 * jax.random.normal(keys[ki], (128,), jnp.float32); ki += 1
    w2 = jax.random.normal(keys[ki], (128, n_classes), jnp.float32) / jnp.sqrt(128.0); ki += 1
    b2 = 0.01 * jax.random.normal(keys[ki], (n_classes,), jnp.float32); ki += 1
    return {"conv_blocks": conv_blocks, "fc": (w1, b1, w2, b2)}


if __name__ == "__main__":
    key = jax.random.PRNGKey(0)
    kx, kp = jax.random.split(key)

    # Small shapes consistent with the module: 4 blocks of MaxPool2x2 need spatial % 16 == 0.
    # (The PyTorch defaults imply 3x80x80 inputs with 32 filters; here we scale down to
    #  3x16x16 with n_filters=8 -> hidden_dim = 64*1*1 = 64.)
    N, C, H, W = 2, 3, 16, 16
    n_filters, n_classes = 8, 5
    hidden_dim = (n_filters * 8) * (H // 16) * (W // 16)      # 64

    x = jax.random.normal(kx, (N, C, H, W), jnp.float32)
    params = init_params(kp, in_dim=C, n_filters=n_filters,
                         hidden_dim=hidden_dim, n_classes=n_classes)

    out = jax.jit(forward)(x, params)
    out = jax.block_until_ready(out)
    assert out.shape == (N, n_classes)
    assert bool(jnp.all(jnp.isfinite(out)))
    print("KERNEL_OK")
</pallas_src>

<mosaic_0001>
module attributes {stable_mosaic.version = 11 : i64} {
  func.func @_conv_bn_relu_pool_kernel(%arg0: i32, %arg1: i32, %arg2: memref<1x288x9xbf16, #tpu.memory_space<vmem>>, %arg3: memref<3x9x8xbf16, #tpu.memory_space<vmem>>, %arg4: memref<1x8xf32, #tpu.memory_space<vmem>>, %arg5: memref<1x8xf32, #tpu.memory_space<vmem>>, %arg6: memref<1x8xf32, #tpu.memory_space<vmem>>, %arg7: memref<1x64x8xbf16, #tpu.memory_space<vmem>>, %arg8: memref<1x8xf32, #tpu.memory_space<vmem>>, %arg9: memref<1x8xf32, #tpu.memory_space<vmem>>, %arg10: memref<256x8xf32, #tpu.memory_space<vmem>>) attributes {dimension_semantics = [#tpu.dimension_semantics<arbitrary>, #tpu.dimension_semantics<arbitrary>], iteration_bounds = array<i64: 2, 2>, scalar_prefetch = 0 : i64, scratch_operands = 3 : i64, tpu.core_type = #tpu.core_type<tc>, window_params = [{transform_indices = @transform_0, window_bounds = array<i64: 1, 288, 9>}, {pipeline_mode = #tpu.pipeline_mode<synchronous>, transform_indices = @transform_1, window_bounds = array<i64: 3, 9, 8>}, {pipeline_mode = #tpu.pipeline_mode<synchronous>, transform_indices = @transform_2, window_bounds = array<i64: 1, 8>}, {pipeline_mode = #tpu.pipeline_mode<synchronous>, transform_indices = @transform_3, window_bounds = array<i64: 1, 8>}, {pipeline_mode = #tpu.pipeline_mode<synchronous>, transform_indices = @transform_4, window_bounds = array<i64: 1, 8>}, {transform_indices = @transform_5, window_bounds = array<i64: 1, 64, 8>}]} {
    %c0 = arith.constant 0 : index
    %c0_0 = arith.constant 0 : index
    %c0_1 = arith.constant 0 : index
    %0 = vector.load %arg2[%c0, %c0_0, %c0_1] : memref<1x288x9xbf16, #tpu.memory_space<vmem>>, vector<1x256x9xbf16>
    %1 = vector.shape_cast %0 : vector<1x256x9xbf16> to vector<256x9xbf16>
    %c0_2 = arith.constant 0 : index
    %c0_3 = arith.constant 0 : index
    %c0_4 = arith.constant 0 : index
    %2 = vector.load %arg3[%c0_2, %c0_3, %c0_4] : memref<3x9x8xbf16, #tpu.memory_space<vmem>>, vector<1x9x8xbf16>
    %3 = vector.shape_cast %2 : vector<1x9x8xbf16> to vector<9x8xbf16>
    %cst = arith.constant dense<0.000000e+00> : vector<256x8xf32>
    %4 = tpu.matmul %1, %3, %cst {dimension_numbers = #tpu.dot_dimension_numbers<[1], [0], [0], [1], [0, 0, 1, 1], [], []>} : vector<256x9xbf16>, vector<9x8xbf16>, vector<256x8xf32> -> vector<256x8xf32>
    %c0_5 = arith.constant 0 : index
    %c16 = arith.constant 16 : index
    %c0_6 = arith.constant 0 : index
    %5 = vector.load %arg2[%c0_5, %c16, %c0_6] : memref<1x288x9xbf16, #tpu.memory_space<vmem>>, vector<1x256x9xbf16>
    %6 = vector.shape_cast %5 : vector<1x256x9xbf16> to vector<256x9xbf16>
    %c1 = arith.constant 1 : index
    %c0_7 = arith.constant 0 : index
    %c0_8 = arith.constant 0 : index
    %7 = vector.load %arg3[%c1, %c0_7, %c0_8] : memref<3x9x8xbf16, #tpu.memory_space<vmem>>, vector<1x9x8xbf16>
    %8 = vector.shape_cast %7 : vector<1x9x8xbf16> to vector<9x8xbf16>
    %cst_9 = arith.constant dense<0.000000e+00> : vector<256x8xf32>
    %9 = tpu.matmul %6, %8, %cst_9 {dimension_numbers = #tpu.dot_dimension_numbers<[1], [0], [0], [1], [0, 0, 1, 1], [], []>} : vector<256x9xbf16>, vector<9x8xbf16>, vector<256x8xf32> -> vector<256x8xf32>
    %10 = arith.addf %4, %9 : vector<256x8xf32>
    %c0_10 = arith.constant 0 : index
    %c32 = arith.constant 32 : index
    %c0_11 = arith.constant 0 : index
    %11 = vector.load %arg2[%c0_10, %c32, %c0_11] : memref<1x288x9xbf16, #tpu.memory_space<vmem>>, vector<1x256x9xbf16>
    %12 = vector.shape_cast %11 : vector<1x256x9xbf16> to vector<256x9xbf16>
    %c2 = arith.constant 2 : index
    %c0_12 = arith.constant 0 : index
    %c0_13 = arith.constant 0 : index
    %13 = vector.load %arg3[%c2, %c0_12, %c0_13] : memref<3x9x8xbf16, #tpu.memory_space<vmem>>, vector<1x9x8xbf16>
    %14 = vector.shape_cast %13 : vector<1x9x8xbf16> to vector<9x8xbf16>
    %cst_14 = arith.constant dense<0.000000e+00> : vector<256x8xf32>
    %15 = tpu.matmul %12, %14, %cst_14 {dimension_numbers = #tpu.dot_dimension_numbers<[1], [0], [0], [1], [0, 0, 1, 1], [], []>} : vector<256x9xbf16>, vector<9x8xbf16>, vector<256x8xf32> -> vector<256x8xf32>
    %16 = arith.addf %10, %15 : vector<256x8xf32>
    %c0_15 = arith.constant 0 : index
    %c0_16 = arith.constant 0 : index
    %17 = vector.load %arg4[%c0_15, %c0_16] : memref<1x8xf32, #tpu.memory_space<vmem>>, vector<1x8xf32>
    %18 = vector.broadcast %17 : vector<1x8xf32> to vector<256x8xf32>
    %19 = arith.addf %16, %18 : vector<256x8xf32>
    %c0_i32 = arith.constant 0 : i32
    %20 = arith.cmpi eq, %arg0, %c0_i32 : i32
    %c0_i32_17 = arith.constant 0 : i32
    %21 = arith.cmpi eq, %arg1, %c0_i32_17 : i32
    %22 = arith.andi %20, %21 : i1
    %23 = arith.extui %22 : i1 to i32
    %c0_i32_18 = arith.constant 0 : i32
    %24 = arith.cmpi ne, %23, %c0_i32_18 : i32
    scf.if %24 {
      %cst_22 = arith.constant 0.000000e+00 : f32
      %31 = vector.broadcast %cst_22 : f32 to vector<1x8xf32>
      %c0_23 = arith.constant 0 : index
      %c0_24 = arith.constant 0 : index
      %32 = vector.load %arg8[%c0_23, %c0_24] : memref<1x8xf32, #tpu.memory_space<vmem>>, vector<1x8xf32>
      tpu.vector_store %arg8[%c0_23, %c0_24], %31 {strides = array<i32>} : memref<1x8xf32, #tpu.memory_space<vmem>>, vector<1x8xf32>,
      %cst_25 = arith.constant 0.000000e+00 : f32
      %33 = vector.broadcast %cst_25 : f32 to vector<1x8xf32>
      %c0_26 = arith.constant 0 : index
      %c0_27 = arith.constant 0 : index
      %34 = vector.load %arg9[%c0_26, %c0_27] : memref<1x8xf32, #tpu.memory_space<vmem>>, vector<1x8xf32>
      tpu.vector_store %arg9[%c0_26, %c0_27], %33 {strides = array<i32>} : memref<1x8xf32, #tpu.memory_space<vmem>>, vector<1x8xf32>,
    } else {
    }
    %c0_i32_19 = arith.constant 0 : i32
    %25 = arith.cmpi eq, %arg0, %c0_i32_19 : i32
    %26 = arith.extui %25 : i1 to i32
    %c0_i32_20 = arith.constant 0 : i32
    %27 = arith.cmpi ne, %26, %c0_i32_20 : i32
    scf.if %27 {
      %c0_22 = arith.constant 0 : index
      %c0_23 = arith.constant 0 : index
      %31 = vector.load %arg8[%c0_22, %c0_23] : memref<1x8xf32, #tpu.memory_space<vmem>>, vector<1x8xf32>
      %cst_24 = arith.constant dense<0.000000e+00> : vector<8xf32>
      %32 = vector.multi_reduction <add>, %19, %cst_24 [0] : vector<256x8xf32> to vector<8xf32>
      %33 = vector.shape_cast %32 : vector<8xf32> to vector<1x8xf32>
      %34 = arith.addf %31, %33 : vector<1x8xf32>
      %c0_25 = arith.constant 0 : index
      %c0_26 = arith.constant 0 : index
      %35 = vector.load %arg8[%c0_25, %c0_26] : memref<1x8xf32, #tpu.memory_space<vmem>>, vector<1x8xf32>
      tpu.vector_store %arg8[%c0_25, %c0_26], %34 {strides = array<i32>} : memref<1x8xf32, #tpu.memory_space<vmem>>, vector<1x8xf32>,
      %c0_27 = arith.constant 0 : index
      %c0_28 = arith.constant 0 : index
      %36 = vector.load %arg9[%c0_27, %c0_28] : memref<1x8xf32, #tpu.memory_space<vmem>>, vector<1x8xf32>
      %37 = arith.mulf %19, %19 : vector<256x8xf32>
      %cst_29 = arith.constant dense<0.000000e+00> : vector<8xf32>
      %38 = vector.multi_reduction <add>, %37, %cst_29 [0] : vector<256x8xf32> to vector<8xf32>
      %39 = vector.shape_cast %38 : vector<8xf32> to vector<1x8xf32>
      %40 = arith.addf %36, %39 : vector<1x8xf32>
      %c0_30 = arith.constant 0 : index
      %c0_31 = arith.constant 0 : index
      %41 = vector.load %arg9[%c0_30, %c0_31] : memref<1x8xf32, #tpu.memory_space<vmem>>, vector<1x8xf32>
      tpu.vector_store %arg9[%c0_30, %c0_31], %40 {strides = array<i32>} : memref<1x8xf32, #tpu.memory_space<vmem>>, vector<1x8xf32>,
    } else {
    }
    %c1_i32 = arith.constant 1 : i32
    %28 = arith.cmpi eq, %arg0, %c1_i32 : i32
    %29 = arith.extui %28 : i1 to i32
    %c0_i32_21 = arith.constant 0 : i32
    %30 = arith.cmpi ne, %29, %c0_i32_21 : i32
    scf.if %30 {
      %c0_22 = arith.constant 0 : index
      %c0_23 = arith.constant 0 : index
      %31 = vector.load %arg8[%c0_22, %c0_23] : memref<1x8xf32, #tpu.memory_space<vmem>>, vector<1x8xf32>
      %cst_24 = arith.constant 0.001953125 : f32
      %32 = vector.broadcast %cst_24 : f32 to vector<1x8xf32>
      %33 = arith.mulf %31, %32 : vector<1x8xf32>
      %c0_25 = arith.constant 0 : index
      %c0_26 = arith.constant 0 : index
      %34 = vector.load %arg9[%c0_25, %c0_26] : memref<1x8xf32, #tpu.memory_space<vmem>>, vector<1x8xf32>
      %cst_27 = arith.constant 0.001953125 : f32
      %35 = vector.broadcast %cst_27 : f32 to vector<1x8xf32>
      %36 = arith.mulf %34, %35 : vector<1x8xf32>
      %37 = arith.mulf %33, %33 : vector<1x8xf32>
      %38 = arith.subf %36, %37 : vector<1x8xf32>
      %cst_28 = arith.constant 0.000000e+00 : f32
      %39 = vector.broadcast %cst_28 : f32 to vector<1x8xf32>
      %40 = arith.maximumf %38, %39 : vector<1x8xf32>
      %cst_29 = arith.constant 9.99999974E-6 : f32
      %41 = vector.broadcast %cst_29 : f32 to vector<1x8xf32>
      %42 = arith.addf %40, %41 : vector<1x8xf32>
      %43 = math.rsqrt %42 : vector<1x8xf32>
      %c0_30 = arith.constant 0 : index
      %c0_31 = arith.constant 0 : index
      %44 = vector.load %arg5[%c0_30, %c0_31] : memref<1x8xf32, #tpu.memory_space<vmem>>, vector<1x8xf32>
      %45 = arith.mulf %44, %43 : vector<1x8xf32>
      %c0_32 = arith.constant 0 : index
      %c0_33 = arith.constant 0 : index
      %46 = vector.load %arg6[%c0_32, %c0_33] : memref<1x8xf32, #tpu.memory_space<vmem>>, vector<1x8xf32>
      %47 = arith.mulf %33, %45 : vector<1x8xf32>
      %48 = arith.subf %46, %47 : vector<1x8xf32>
      %49 = vector.broadcast %45 : vector<1x8xf32> to vector<256x8xf32>
      %50 = arith.mulf %19, %49 : vector<256x8xf32>
      %51 = vector.broadcast %48 : vector<1x8xf32> to vector<256x8xf32>
      %52 = arith.addf %50, %51 : vector<256x8xf32>
      %cst_34 = arith.constant 0.000000e+00 : f32
      %53 = vector.broadcast %cst_34 : f32 to vector<256x8xf32>
      %54 = arith.maximumf %52, %53 : vector<256x8xf32>
      %c0_35 = arith.constant 0 : index
      %c0_36 = arith.constant 0 : index
      %55 = vector.load %arg10[%c0_35, %c0_36] : memref<256x8xf32, #tpu.memory_space<vmem>>, vector<256x8xf32>
      tpu.vector_store %arg10[%c0_35, %c0_36], %54 {strides = array<i32>} : memref<256x8xf32, #tpu.memory_space<vmem>>, vector<256x8xf32>,
      %c0_37 = arith.constant 0 : index
      %c0_38 = arith.constant 0 : index
      %56 = tpu.strided_load %arg10[%c0_37, %c0_38] {strides = array<i32: 2, 1>} : memref<256x8xf32, #tpu.memory_space<vmem>>, vector<8x8xf32>
      %c1_39 = arith.constant 1 : index
      %c0_40 = arith.constant 0 : index
      %57 = tpu.strided_load %arg10[%c1_39, %c0_40] {strides = array<i32: 2, 1>} : memref<256x8xf32, #tpu.memory_space<vmem>>, vector<8x8xf32>
      %c16_41 = arith.constant 16 : index
      %c0_42 = arith.constant 0 : index
      %58 = tpu.strided_load %arg10[%c16_41, %c0_42] {strides = array<i32: 2, 1>} : memref<256x8xf32, #tpu.memory_space<vmem>>, vector<8x8xf32>
      %c17 = arith.constant 17 : index
      %c0_43 = arith.constant 0 : index
      %59 = tpu.strided_load %arg10[%c17, %c0_43] {strides = array<i32: 2, 1>} : memref<256x8xf32, #tpu.memory_space<vmem>>, vector<8x8xf32>
      %60 = arith.maximumf %56, %57 : vector<8x8xf32>
      %61 = arith.maximumf %58, %59 : vector<8x8xf32>
      %62 = arith.maximumf %60, %61 : vector<8x8xf32>
      %63 = arith.truncf %62 : vector<8x8xf32> to vector<8x8xbf16>
      %c0_44 = arith.constant 0 : index
      %c0_45 = arith.constant 0 : index
      %c0_46 = arith.constant 0 : index
      %64 = vector.load %arg7[%c0_44, %c0_45, %c0_46] : memref<1x64x8xbf16, #tpu.memory_space<vmem>>, vector<1x8x8xbf16>
      %65 = vector.shape_cast %64 : vector<1x8x8xbf16> to vector<8x8xbf16>
      %66 = vector.shape_cast %63 : vector<8x8xbf16> to vector<1x8x8xbf16>
      tpu.vector_store %arg7[%c0_44, %c0_45, %c0_46], %66 {strides = array<i32>} : memref<1x64x8xbf16, #tpu.memory_space<vmem>>, vector<1x8x8xbf16>,
      %c32_47 = arith.constant 32 : index
      %c0_48 = arith.constant 0 : index
      %67 = tpu.strided_load %arg10[%c32_47, %c0_48] {strides = array<i32: 2, 1>} : memref<256x8xf32, #tpu.memory_space<vmem>>, vector<8x8xf32>
      %c33 = arith.constant 33 : index
      %c0_49 = arith.constant 0 : index
      %68 = tpu.strided_load %arg10[%c33, %c0_49] {strides = array<i32: 2, 1>} : memref<256x8xf32, #tpu.memory_space<vmem>>, vector<8x8xf32>
      %c48 = arith.constant 48 : index
      %c0_50 = arith.constant 0 : index
      %69 = tpu.strided_load %arg10[%c48, %c0_50] {strides = array<i32: 2, 1>} : memref<256x8xf32, #tpu.memory_space<vmem>>, vector<8x8xf32>
      %c49 = arith.constant 49 : index
      %c0_51 = arith.constant 0 : index
      %70 = tpu.strided_load %arg10[%c49, %c0_51] {strides = array<i32: 2, 1>} : memref<256x8xf32, #tpu.memory_space<vmem>>, vector<8x8xf32>
      %71 = arith.maximumf %67, %68 : vector<8x8xf32>
      %72 = arith.maximumf %69, %70 : vector<8x8xf32>
      %73 = arith.maximumf %71, %72 : vector<8x8xf32>
      %74 = arith.truncf %73 : vector<8x8xf32> to vector<8x8xbf16>
      %c0_52 = arith.constant 0 : index
      %c8 = arith.constant 8 : index
      %c0_53 = arith.constant 0 : index
      %75 = vector.load %arg7[%c0_52, %c8, %c0_53] : memref<1x64x8xbf16, #tpu.memory_space<vmem>>, vector<1x8x8xbf16>
      %76 = vector.shape_cast %75 : vector<1x8x8xbf16> to vector<8x8xbf16>
      %77 = vector.shape_cast %74 : vector<8x8xbf16> to vector<1x8x8xbf16>
      tpu.vector_store %arg7[%c0_52, %c8, %c0_53], %77 {strides = array<i32>} : memref<1x64x8xbf16, #tpu.memory_space<vmem>>, vector<1x8x8xbf16>,
      %c64 = arith.constant 64 : index
      %c0_54 = arith.constant 0 : index
      %78 = tpu.strided_load %arg10[%c64, %c0_54] {strides = array<i32: 2, 1>} : memref<256x8xf32, #tpu.memory_space<vmem>>, vector<8x8xf32>
      %c65 = arith.constant 65 : index
      %c0_55 = arith.constant 0 : index
      %79 = tpu.strided_load %arg10[%c65, %c0_55] {strides = array<i32: 2, 1>} : memref<256x8xf32, #tpu.memory_space<vmem>>, vector<8x8xf32>
      %c80 = arith.constant 80 : index
      %c0_56 = arith.constant 0 : index
      %80 = tpu.strided_load %arg10[%c80, %c0_56] {strides = array<i32: 2, 1>} : memref<256x8xf32, #tpu.memory_space<vmem>>, vector<8x8xf32>
      %c81 = arith.constant 81 : index
      %c0_57 = arith.constant 0 : index
      %81 = tpu.strided_load %arg10[%c81, %c0_57] {strides = array<i32: 2, 1>} : memref<256x8xf32, #tpu.memory_space<vmem>>, vector<8x8xf32>
      %82 = arith.maximumf %78, %79 : vector<8x8xf32>
      %83 = arith.maximumf %80, %81 : vector<8x8xf32>
      %84 = arith.maximumf %82, %83 : vector<8x8xf32>
      %85 = arith.truncf %84 : vector<8x8xf32> to vector<8x8xbf16>
      %c0_58 = arith.constant 0 : index
      %c16_59 = arith.constant 16 : index
      %c0_60 = arith.constant 0 : index
      %86 = vector.load %arg7[%c0_58, %c16_59, %c0_60] : memref<1x64x8xbf16, #tpu.memory_space<vmem>>, vector<1x8x8xbf16>
      %87 = vector.shape_cast %86 : vector<1x8x8xbf16> to vector<8x8xbf16>
      %88 = vector.shape_cast %85 : vector<8x8xbf16> to vector<1x8x8xbf16>
      tpu.vector_store %arg7[%c0_58, %c16_59, %c0_60], %88 {strides = array<i32>} : memref<1x64x8xbf16, #tpu.memory_space<vmem>>, vector<1x8x8xbf16>,
      %c96 = arith.constant 96 : index
      %c0_61 = arith.constant 0 : index
      %89 = tpu.strided_load %arg10[%c96, %c0_61] {strides = array<i32: 2, 1>} : memref<256x8xf32, #tpu.memory_space<vmem>>, vector<8x8xf32>
      %c97 = arith.constant 97 : index
      %c0_62 = arith.constant 0 : index
      %90 = tpu.strided_load %arg10[%c97, %c0_62] {strides = array<i32: 2, 1>} : memref<256x8xf32, #tpu.memory_space<vmem>>, vector<8x8xf32>
      %c112 = arith.constant 112 : index
      %c0_63 = arith.constant 0 : index
      %91 = tpu.strided_load %arg10[%c112, %c0_63] {strides = array<i32: 2, 1>} : memref<256x8xf32, #tpu.memory_space<vmem>>, vector<8x8xf32>
      %c113 = arith.constant 113 : index
      %c0_64 = arith.constant 0 : index
      %92 = tpu.strided_load %arg10[%c113, %c0_64] {strides = array<i32: 2, 1>} : memref<256x8xf32, #tpu.memory_space<vmem>>, vector<8x8xf32>
      %93 = arith.maximumf %89, %90 : vector<8x8xf32>
      %94 = arith.maximumf %91, %92 : vector<8x8xf32>
      %95 = arith.maximumf %93, %94 : vector<8x8xf32>
      %96 = arith.truncf %95 : vector<8x8xf32> to vector<8x8xbf16>
      %c0_65 = arith.constant 0 : index
      %c24 = arith.constant 24 : index
      %c0_66 = arith.constant 0 : index
      %97 = vector.load %arg7[%c0_65, %c24, %c0_66] : memref<1x64x8xbf16, #tpu.memory_space<vmem>>, vector<1x8x8xbf16>
      %98 = vector.shape_cast %97 : vector<1x8x8xbf16> to vector<8x8xbf16>
      %99 = vector.shape_cast %96 : vector<8x8xbf16> to vector<1x8x8xbf16>
      tpu.vector_store %arg7[%c0_65, %c24, %c0_66], %99 {strides = array<i32>} : memref<1x64x8xbf16, #tpu.memory_space<vmem>>, vector<1x8x8xbf16>,
      %c128 = arith.constant 128 : index
      %c0_67 = arith.constant 0 : index
      %100 = tpu.strided_load %arg10[%c128, %c0_67] {strides = array<i32: 2, 1>} : memref<256x8xf32, #tpu.memory_space<vmem>>, vector<8x8xf32>
      %c129 = arith.constant 129 : index
      %c0_68 = arith.constant 0 : index
      %101 = tpu.strided_load %arg10[%c129, %c0_68] {strides = array<i32: 2, 1>} : memref<256x8xf32, #tpu.memory_space<vmem>>, vector<8x8xf32>
      %c144 = arith.constant 144 : index
      %c0_69 = arith.constant 0 : index
      %102 = tpu.strided_load %arg10[%c144, %c0_69] {strides = array<i32: 2, 1>} : memref<256x8xf32, #tpu.memory_space<vmem>>, vector<8x8xf32>
      %c145 = arith.constant 145 : index
      %c0_70 = arith.constant 0 : index
      %103 = tpu.strided_load %arg10[%c145, %c0_70] {strides = array<i32: 2, 1>} : memref<256x8xf32, #tpu.memory_space<vmem>>, vector<8x8xf32>
      %104 = arith.maximumf %100, %101 : vector<8x8xf32>
      %105 = arith.maximumf %102, %103 : vector<8x8xf32>
      %106 = arith.maximumf %104, %105 : vector<8x8xf32>
      %107 = arith.truncf %106 : vector<8x8xf32> to vector<8x8xbf16>
      %c0_71 = arith.constant 0 : index
      %c32_72 = arith.constant 32 : index
      %c0_73 = arith.constant 0 : index
      %108 = vector.load %arg7[%c0_71, %c32_72, %c0_73] : memref<1x64x8xbf16, #tpu.memory_space<vmem>>, vector<1x8x8xbf16>
      %109 = vector.shape_cast %108 : vector<1x8x8xbf16> to vector<8x8xbf16>
      %110 = vector.shape_cast %107 : vector<8x8xbf16> to vector<1x8x8xbf16>
      tpu.vector_store %arg7[%c0_71, %c32_72, %c0_73], %110 {strides = array<i32>} : memref<1x64x8xbf16, #tpu.memory_space<vmem>>, vector<1x8x8xbf16>,
      %c160 = arith.constant 160 : index
      %c0_74 = arith.constant 0 : index
      %111 = tpu.strided_load %arg10[%c160, %c0_74] {strides = array<i32: 2, 1>} : memref<256x8xf32, #tpu.memory_space<vmem>>, vector<8x8xf32>
      %c161 = arith.constant 161 : index
      %c0_75 = arith.constant 0 : index
      %112 = tpu.strided_load %arg10[%c161, %c0_75] {strides = array<i32: 2, 1>} : memref<256x8xf32, #tpu.memory_space<vmem>>, vector<8x8xf32>
      %c176 = arith.constant 176 : index
      %c0_76 = arith.constant 0 : index
      %113 = tpu.strided_load %arg10[%c176, %c0_76] {strides = array<i32: 2, 1>} : memref<256x8xf32, #tpu.memory_space<vmem>>, vector<8x8xf32>
      %c177 = arith.constant 177 : index
      %c0_77 = arith.constant 0 : index
      %114 = tpu.strided_load %arg10[%c177, %c0_77] {strides = array<i32: 2, 1>} : memref<256x8xf32, #tpu.memory_space<vmem>>, vector<8x8xf32>
      %115 = arith.maximumf %111, %112 : vector<8x8xf32>
      %116 = arith.maximumf %113, %114 : vector<8x8xf32>
      %117 = arith.maximumf %115, %116 : vector<8x8xf32>
      %118 = arith.truncf %117 : vector<8x8xf32> to vector<8x8xbf16>
      %c0_78 = arith.constant 0 : index
      %c40 = arith.constant 40 : index
      %c0_79 = arith.constant 0 : index
      %119 = vector.load %arg7[%c0_78, %c40, %c0_79] : memref<1x64x8xbf16, #tpu.memory_space<vmem>>, vector<1x8x8xbf16>
      %120 = vector.shape_cast %119 : vector<1x8x8xbf16> to vector<8x8xbf16>
      %121 = vector.shape_cast %118 : vector<8x8xbf16> to vector<1x8x8xbf16>
      tpu.vector_store %arg7[%c0_78, %c40, %c0_79], %121 {strides = array<i32>} : memref<1x64x8xbf16, #tpu.memory_space<vmem>>, vector<1x8x8xbf16>,
      %c192 = arith.constant 192 : index
      %c0_80 = arith.constant 0 : index
      %122 = tpu.strided_load %arg10[%c192, %c0_80] {strides = array<i32: 2, 1>} : memref<256x8xf32, #tpu.memory_space<vmem>>, vector<8x8xf32>
      %c193 = arith.constant 193 : index
      %c0_81 = arith.constant 0 : index
      %123 = tpu.strided_load %arg10[%c193, %c0_81] {strides = array<i32: 2, 1>} : memref<256x8xf32, #tpu.memory_space<vmem>>, vector<8x8xf32>
      %c208 = arith.constant 208 : index
      %c0_82 = arith.constant 0 : index
      %124 = tpu.strided_load %arg10[%c208, %c0_82] {strides = array<i32: 2, 1>} : memref<256x8xf32, #tpu.memory_space<vmem>>, vector<8x8xf32>
      %c209 = arith.constant 209 : index
      %c0_83 = arith.constant 0 : index
      %125 = tpu.strided_load %arg10[%c209, %c0_83] {strides = array<i32: 2, 1>} : memref<256x8xf32, #tpu.memory_space<vmem>>, vector<8x8xf32>
      %126 = arith.maximumf %122, %123 : vector<8x8xf32>
      %127 = arith.maximumf %124, %125 : vector<8x8xf32>
      %128 = arith.maximumf %126, %127 : vector<8x8xf32>
      %129 = arith.truncf %128 : vector<8x8xf32> to vector<8x8xbf16>
      %c0_84 = arith.constant 0 : index
      %c48_85 = arith.constant 48 : index
      %c0_86 = arith.constant 0 : index
      %130 = vector.load %arg7[%c0_84, %c48_85, %c0_86] : memref<1x64x8xbf16, #tpu.memory_space<vmem>>, vector<1x8x8xbf16>
      %131 = vector.shape_cast %130 : vector<1x8x8xbf16> to vector<8x8xbf16>
      %132 = vector.shape_cast %129 : vector<8x8xbf16> to vector<1x8x8xbf16>
      tpu.vector_store %arg7[%c0_84, %c48_85, %c0_86], %132 {strides = array<i32>} : memref<1x64x8xbf16, #tpu.memory_space<vmem>>, vector<1x8x8xbf16>,
      %c224 = arith.constant 224 : index
      %c0_87 = arith.constant 0 : index
      %133 = tpu.strided_load %arg10[%c224, %c0_87] {strides = array<i32: 2, 1>} : memref<256x8xf32, #tpu.memory_space<vmem>>, vector<8x8xf32>
      %c225 = arith.constant 225 : index
      %c0_88 = arith.constant 0 : index
      %134 = tpu.strided_load %arg10[%c225, %c0_88] {strides = array<i32: 2, 1>} : memref<256x8xf32, #tpu.memory_space<vmem>>, vector<8x8xf32>
      %c240 = arith.constant 240 : index
      %c0_89 = arith.constant 0 : index
      %135 = tpu.strided_load %arg10[%c240, %c0_89] {strides = array<i32: 2, 1>} : memref<256x8xf32, #tpu.memory_space<vmem>>, vector<8x8xf32>
      %c241 = arith.constant 241 : index
      %c0_90 = arith.constant 0 : index
      %136 = tpu.strided_load %arg10[%c241, %c0_90] {strides = array<i32: 2, 1>} : memref<256x8xf32, #tpu.memory_space<vmem>>, vector<8x8xf32>
      %137 = arith.maximumf %133, %134 : vector<8x8xf32>
      %138 = arith.maximumf %135, %136 : vector<8x8xf32>
      %139 = arith.maximumf %137, %138 : vector<8x8xf32>
      %140 = arith.truncf %139 : vector<8x8xf32> to vector<8x8xbf16>
      %c0_91 = arith.constant 0 : index
      %c56 = arith.constant 56 : index
      %c0_92 = arith.constant 0 : index
      %141 = vector.load %arg7[%c0_91, %c56, %c0_92] : memref<1x64x8xbf16, #tpu.memory_space<vmem>>, vector<1x8x8xbf16>
      %142 = vector.shape_cast %141 : vector<1x8x8xbf16> to vector<8x8xbf16>
      %143 = vector.shape_cast %140 : vector<8x8xbf16> to vector<1x8x8xbf16>
      tpu.vector_store %arg7[%c0_91, %c56, %c0_92], %143 {strides = array<i32>} : memref<1x64x8xbf16, #tpu.memory_space<vmem>>, vector<1x8x8xbf16>,
    } else {
    }
    return
  }
  func.func @transform_0(%arg0: i32, %arg1: i32) -> (i32, i32, i32) {
    %c0_i32 = arith.constant 0 : i32
    %c0_i32_0 = arith.constant 0 : i32
    %c0_i32_1 = arith.constant 0 : i32
    return %arg1, %c0_i32, %c0_i32_0 : i32, i32, i32
  }
  func.func @transform_1(%arg0: i32, %arg1: i32) -> (i32, i32, i32) {
    %c0_i32 = arith.constant 0 : i32
    %c0_i32_0 = arith.constant 0 : i32
    %c0_i32_1 = arith.constant 0 : i32
    %c0_i32_2 = arith.constant 0 : i32
    return %c0_i32, %c0_i32_0, %c0_i32_1 : i32, i32, i32
  }
  func.func @transform_2(%arg0: i32, %arg1: i32) -> (i32, i32) {
    %c0_i32 = arith.constant 0 : i32
    %c0_i32_0 = arith.constant 0 : i32
    %c0_i32_1 = arith.constant 0 : i32
    return %c0_i32, %c0_i32_0 : i32, i32
  }
  func.func @transform_3(%arg0: i32, %arg1: i32) -> (i32, i32) {
    %c0_i32 = arith.constant 0 : i32
    %c0_i32_0 = arith.constant 0 : i32
    %c0_i32_1 = arith.constant 0 : i32
    return %c0_i32, %c0_i32_0 : i32, i32
  }
  func.func @transform_4(%arg0: i32, %arg1: i32) -> (i32, i32) {
    %c0_i32 = arith.constant 0 : i32
    %c0_i32_0 = arith.constant 0 : i32
    %c0_i32_1 = arith.constant 0 : i32
    return %c0_i32, %c0_i32_0 : i32, i32
  }
  func.func @transform_5(%arg0: i32, %arg1: i32) -> (i32, i32, i32) {
    %c0_i32 = arith.constant 0 : i32
    %c0_i32_0 = arith.constant 0 : i32
    %c0_i32_1 = arith.constant 0 : i32
    return %arg1, %c0_i32, %c0_i32_0 : i32, i32, i32
  }
}

module attributes {stable_mosaic.version = 11 : i64} {
  func.func @_conv_bn_relu_pool_kernel(%arg0: i32, %arg1: i32, %arg2: memref<1x80x24xbf16, #tpu.memory_space<vmem>>, %arg3: memref<3x24x16xbf16, #tpu.memory_space<vmem>>, %arg4: memref<1x16xf32, #tpu.memory_space<vmem>>, %arg5: memref<1x16xf32, #tpu.memory_space<vmem>>, %arg6: memref<1x16xf32, #tpu.memory_space<vmem>>, %arg7: memref<1x16x16xbf16, #tpu.memory_space<vmem>>, %arg8: memref<1x16xf32, #tpu.memory_space<vmem>>, %arg9: memref<1x16xf32, #tpu.memory_space<vmem>>, %arg10: memref<64x16xf32, #tpu.memory_space<vmem>>) attributes {dimension_semantics = [#tpu.dimension_semantics<arbitrary>, #tpu.dimension_semantics<arbitrary>], iteration_bounds = array<i64: 2, 2>, scalar_prefetch = 0 : i64, scratch_operands = 3 : i64, tpu.core_type = #tpu.core_type<tc>, window_params = [{transform_indices = @transform_0, window_bounds = array<i64: 1, 80, 24>}, {pipeline_mode = #tpu.pipeline_mode<synchronous>, transform_indices = @transform_1, window_bounds = array<i64: 3, 24, 16>}, {pipeline_mode = #tpu.pipeline_mode<synchronous>, transform_indices = @transform_2, window_bounds = array<i64: 1, 16>}, {pipeline_mode = #tpu.pipeline_mode<synchronous>, transform_indices = @transform_3, window_bounds = array<i64: 1, 16>}, {pipeline_mode = #tpu.pipeline_mode<synchronous>, transform_indices = @transform_4, window_bounds = array<i64: 1, 16>}, {transform_indices = @transform_5, window_bounds = array<i64: 1, 16, 16>}]} {
    %c0 = arith.constant 0 : index
    %c0_0 = arith.constant 0 : index
    %c0_1 = arith.constant 0 : index
    %0 = vector.load %arg2[%c0, %c0_0, %c0_1] : memref<1x80x24xbf16, #tpu.memory_space<vmem>>, vector<1x64x24xbf16>
    %1 = vector.shape_cast %0 : vector<1x64x24xbf16> to vector<64x24xbf16>
    %c0_2 = arith.constant 0 : index
    %c0_3 = arith.constant 0 : index
    %c0_4 = arith.constant 0 : index
    %2 = vector.load %arg3[%c0_2, %c0_3, %c0_4] : memref<3x24x16xbf16, #tpu.memory_space<vmem>>, vector<1x24x16xbf16>
    %3 = vector.shape_cast %2 : vector<1x24x16xbf16> to vector<24x16xbf16>
    %cst = arith.constant dense<0.000000e+00> : vector<64x16xf32>
    %4 = tpu.matmul %1, %3, %cst {dimension_numbers = #tpu.dot_dimension_numbers<[1], [0], [0], [1], [0, 0, 1, 1], [], []>} : vector<64x24xbf16>, vector<24x16xbf16>, vector<64x16xf32> -> vector<64x16xf32>
    %c0_5 = arith.constant 0 : index
    %c8 = arith.constant 8 : index
    %c0_6 = arith.constant 0 : index
    %5 = vector.load %arg2[%c0_5, %c8, %c0_6] : memref<1x80x24xbf16, #tpu.memory_space<vmem>>, vector<1x64x24xbf16>
    %6 = vector.shape_cast %5 : vector<1x64x24xbf16> to vector<64x24xbf16>
    %c1 = arith.constant 1 : index
    %c0_7 = arith.constant 0 : index
    %c0_8 = arith.constant 0 : index
    %7 = vector.load %arg3[%c1, %c0_7, %c0_8] : memref<3x24x16xbf16, #tpu.memory_space<vmem>>, vector<1x24x16xbf16>
    %8 = vector.shape_cast %7 : vector<1x24x16xbf16> to vector<24x16xbf16>
    %cst_9 = arith.constant dense<0.000000e+00> : vector<64x16xf32>
    %9 = tpu.matmul %6, %8, %cst_9 {dimension_numbers = #tpu.dot_dimension_numbers<[1], [0], [0], [1], [0, 0, 1, 1], [], []>} : vector<64x24xbf16>, vector<24x16xbf16>, vector<64x16xf32> -> vector<64x16xf32>
    %10 = arith.addf %4, %9 : vector<64x16xf32>
    %c0_10 = arith.constant 0 : index
    %c16 = arith.constant 16 : index
    %c0_11 = arith.constant 0 : index
    %11 = vector.load %arg2[%c0_10, %c16, %c0_11] : memref<1x80x24xbf16, #tpu.memory_space<vmem>>, vector<1x64x24xbf16>
    %12 = vector.shape_cast %11 : vector<1x64x24xbf16> to vector<64x24xbf16>
    %c2 = arith.constant 2 : index
    %c0_12 = arith.constant 0 : index
    %c0_13 = arith.constant 0 : index
    %13 = vector.load %arg3[%c2, %c0_12, %c0_13] : memref<3x24x16xbf16, #tpu.memory_space<vmem>>, vector<1x24x16xbf16>
    %14 = vector.shape_cast %13 : vector<1x24x16xbf16> to vector<24x16xbf16>
    %cst_14 = arith.constant dense<0.000000e+00> : vector<64x16xf32>
    %15 = tpu.matmul %12, %14, %cst_14 {dimension_numbers = #tpu.dot_dimension_numbers<[1], [0], [0], [1], [0, 0, 1, 1], [], []>} : vector<64x24xbf16>, vector<24x16xbf16>, vector<64x16xf32> -> vector<64x16xf32>
    %16 = arith.addf %10, %15 : vector<64x16xf32>
    %c0_15 = arith.constant 0 : index
    %c0_16 = arith.constant 0 : index
    %17 = vector.load %arg4[%c0_15, %c0_16] : memref<1x16xf32, #tpu.memory_space<vmem>>, vector<1x16xf32>
    %18 = vector.broadcast %17 : vector<1x16xf32> to vector<64x16xf32>
    %19 = arith.addf %16, %18 : vector<64x16xf32>
    %c0_i32 = arith.constant 0 : i32
    %20 = arith.cmpi eq, %arg0, %c0_i32 : i32
    %c0_i32_17 = arith.constant 0 : i32
    %21 = arith.cmpi eq, %arg1, %c0_i32_17 : i32
    %22 = arith.andi %20, %21 : i1
    %23 = arith.extui %22 : i1 to i32
    %c0_i32_18 = arith.constant 0 : i32
    %24 = arith.cmpi ne, %23, %c0_i32_18 : i32
    scf.if %24 {
      %cst_22 = arith.constant 0.000000e+00 : f32
      %31 = vector.broadcast %cst_22 : f32 to vector<1x16xf32>
      %c0_23 = arith.constant 0 : index
      %c0_24 = arith.constant 0 : index
      %32 = vector.load %arg8[%c0_23, %c0_24] : memref<1x16xf32, #tpu.memory_space<vmem>>, vector<1x16xf32>
      tpu.vector_store %arg8[%c0_23, %c0_24], %31 {strides = array<i32>} : memref<1x16xf32, #tpu.memory_space<vmem>>, vector<1x16xf32>,
      %cst_25 = arith.constant 0.000000e+00 : f32
      %33 = vector.broadcast %cst_25 : f32 to vector<1x16xf32>
      %c0_26 = arith.constant 0 : index
      %c0_27 = arith.constant 0 : index
      %34 = vector.load %arg9[%c0_26, %c0_27] : memref<1x16xf32, #tpu.memory_space<vmem>>, vector<1x16xf32>
      tpu.vector_store %arg9[%c0_26, %c0_27], %33 {strides = array<i32>} : memref<1x16xf32, #tpu.memory_space<vmem>>, vector<1x16xf32>,
    } else {
    }
    %c0_i32_19 = arith.constant 0 : i32
    %25 = arith.cmpi eq, %arg0, %c0_i32_19 : i32
    %26 = arith.extui %25 : i1 to i32
    %c0_i32_20 = arith.constant 0 : i32
    %27 = arith.cmpi ne, %26, %c0_i32_20 : i32
    scf.if %27 {
      %c0_22 = arith.constant 0 : index
      %c0_23 = arith.constant 0 : index
      %31 = vector.load %arg8[%c0_22, %c0_23] : memref<1x16xf32, #tpu.memory_space<vmem>>, vector<1x16xf32>
      %cst_24 = arith.constant dense<0.000000e+00> : vector<16xf32>
      %32 = vector.multi_reduction <add>, %19, %cst_24 [0] : vector<64x16xf32> to vector<16xf32>
      %33 = vector.shape_cast %32 : vector<16xf32> to vector<1x16xf32>
      %34 = arith.addf %31, %33 : vector<1x16xf32>
      %c0_25 = arith.constant 0 : index
      %c0_26 = arith.constant 0 : index
      %35 = vector.load %arg8[%c0_25, %c0_26] : memref<1x16xf32, #tpu.memory_space<vmem>>, vector<1x16xf32>
      tpu.vector_store %arg8[%c0_25, %c0_26], %34 {strides = array<i32>} : memref<1x16xf32, #tpu.memory_space<vmem>>, vector<1x16xf32>,
      %c0_27 = arith.constant 0 : index
      %c0_28 = arith.constant 0 : index
      %36 = vector.load %arg9[%c0_27, %c0_28] : memref<1x16xf32, #tpu.memory_space<vmem>>, vector<1x16xf32>
      %37 = arith.mulf %19, %19 : vector<64x16xf32>
      %cst_29 = arith.constant dense<0.000000e+00> : vector<16xf32>
      %38 = vector.multi_reduction <add>, %37, %cst_29 [0] : vector<64x16xf32> to vector<16xf32>
      %39 = vector.shape_cast %38 : vector<16xf32> to vector<1x16xf32>
      %40 = arith.addf %36, %39 : vector<1x16xf32>
      %c0_30 = arith.constant 0 : index
      %c0_31 = arith.constant 0 : index
      %41 = vector.load %arg9[%c0_30, %c0_31] : memref<1x16xf32, #tpu.memory_space<vmem>>, vector<1x16xf32>
      tpu.vector_store %arg9[%c0_30, %c0_31], %40 {strides = array<i32>} : memref<1x16xf32, #tpu.memory_space<vmem>>, vector<1x16xf32>,
    } else {
    }
    %c1_i32 = arith.constant 1 : i32
    %28 = arith.cmpi eq, %arg0, %c1_i32 : i32
    %29 = arith.extui %28 : i1 to i32
    %c0_i32_21 = arith.constant 0 : i32
    %30 = arith.cmpi ne, %29, %c0_i32_21 : i32
    scf.if %30 {
      %c0_22 = arith.constant 0 : index
      %c0_23 = arith.constant 0 : index
      %31 = vector.load %arg8[%c0_22, %c0_23] : memref<1x16xf32, #tpu.memory_space<vmem>>, vector<1x16xf32>
      %cst_24 = arith.constant 7.812500e-03 : f32
      %32 = vector.broadcast %cst_24 : f32 to vector<1x16xf32>
      %33 = arith.mulf %31, %32 : vector<1x16xf32>
      %c0_25 = arith.constant 0 : index
      %c0_26 = arith.constant 0 : index
      %34 = vector.load %arg9[%c0_25, %c0_26] : memref<1x16xf32, #tpu.memory_space<vmem>>, vector<1x16xf32>
      %cst_27 = arith.constant 7.812500e-03 : f32
      %35 = vector.broadcast %cst_27 : f32 to vector<1x16xf32>
      %36 = arith.mulf %34, %35 : vector<1x16xf32>
      %37 = arith.mulf %33, %33 : vector<1x16xf32>
      %38 = arith.subf %36, %37 : vector<1x16xf32>
      %cst_28 = arith.constant 0.000000e+00 : f32
      %39 = vector.broadcast %cst_28 : f32 to vector<1x16xf32>
      %40 = arith.maximumf %38, %39 : vector<1x16xf32>
      %cst_29 = arith.constant 9.99999974E-6 : f32
      %41 = vector.broadcast %cst_29 : f32 to vector<1x16xf32>
      %42 = arith.addf %40, %41 : vector<1x16xf32>
      %43 = math.rsqrt %42 : vector<1x16xf32>
      %c0_30 = arith.constant 0 : index
      %c0_31 = arith.constant 0 : index
      %44 = vector.load %arg5[%c0_30, %c0_31] : memref<1x16xf32, #tpu.memory_space<vmem>>, vector<1x16xf32>
      %45 = arith.mulf %44, %43 : vector<1x16xf32>
      %c0_32 = arith.constant 0 : index
      %c0_33 = arith.constant 0 : index
      %46 = vector.load %arg6[%c0_32, %c0_33] : memref<1x16xf32, #tpu.memory_space<vmem>>, vector<1x16xf32>
      %47 = arith.mulf %33, %45 : vector<1x16xf32>
      %48 = arith.subf %46, %47 : vector<1x16xf32>
      %49 = vector.broadcast %45 : vector<1x16xf32> to vector<64x16xf32>
      %50 = arith.mulf %19, %49 : vector<64x16xf32>
      %51 = vector.broadcast %48 : vector<1x16xf32> to vector<64x16xf32>
      %52 = arith.addf %50, %51 : vector<64x16xf32>
      %cst_34 = arith.constant 0.000000e+00 : f32
      %53 = vector.broadcast %cst_34 : f32 to vector<64x16xf32>
      %54 = arith.maximumf %52, %53 : vector<64x16xf32>
      %c0_35 = arith.constant 0 : index
      %c0_36 = arith.constant 0 : index
      %55 = vector.load %arg10[%c0_35, %c0_36] : memref<64x16xf32, #tpu.memory_space<vmem>>, vector<64x16xf32>
      tpu.vector_store %arg10[%c0_35, %c0_36], %54 {strides = array<i32>} : memref<64x16xf32, #tpu.memory_space<vmem>>, vector<64x16xf32>,
      %c0_37 = arith.constant 0 : index
      %c0_38 = arith.constant 0 : index
      %56 = tpu.strided_load %arg10[%c0_37, %c0_38] {strides = array<i32: 2, 1>} : memref<64x16xf32, #tpu.memory_space<vmem>>, vector<4x16xf32>
      %c1_39 = arith.constant 1 : index
      %c0_40 = arith.constant 0 : index
      %57 = tpu.strided_load %arg10[%c1_39, %c0_40] {strides = array<i32: 2, 1>} : memref<64x16xf32, #tpu.memory_space<vmem>>, vector<4x16xf32>
      %c8_41 = arith.constant 8 : index
      %c0_42 = arith.constant 0 : index
      %58 = tpu.strided_load %arg10[%c8_41, %c0_42] {strides = array<i32: 2, 1>} : memref<64x16xf32, #tpu.memory_space<vmem>>, vector<4x16xf32>
      %c9 = arith.constant 9 : index
      %c0_43 = arith.constant 0 : index
      %59 = tpu.strided_load %arg10[%c9, %c0_43] {strides = array<i32: 2, 1>} : memref<64x16xf32, #tpu.memory_space<vmem>>, vector<4x16xf32>
      %60 = arith.maximumf %56, %57 : vector<4x16xf32>
      %61 = arith.maximumf %58, %59 : vector<4x16xf32>
      %62 = arith.maximumf %60, %61 : vector<4x16xf32>
      %63 = arith.truncf %62 : vector<4x16xf32> to vector<4x16xbf16>
      %c0_44 = arith.constant 0 : index
      %c0_45 = arith.constant 0 : index
      %c0_46 = arith.constant 0 : index
      %64 = vector.load %arg7[%c0_44, %c0_45, %c0_46] : memref<1x16x16xbf16, #tpu.memory_space<vmem>>, vector<1x4x16xbf16>
      %65 = vector.shape_cast %64 : vector<1x4x16xbf16> to vector<4x16xbf16>
      %66 = vector.shape_cast %63 : vector<4x16xbf16> to vector<1x4x16xbf16>
      tpu.vector_store %arg7[%c0_44, %c0_45, %c0_46], %66 {strides = array<i32>} : memref<1x16x16xbf16, #tpu.memory_space<vmem>>, vector<1x4x16xbf16>,
      %c16_47 = arith.constant 16 : index
      %c0_48 = arith.constant 0 : index
      %67 = tpu.strided_load %arg10[%c16_47, %c0_48] {strides = array<i32: 2, 1>} : memref<64x16xf32, #tpu.memory_space<vmem>>, vector<4x16xf32>
      %c17 = arith.constant 17 : index
      %c0_49 = arith.constant 0 : index
      %68 = tpu.strided_load %arg10[%c17, %c0_49] {strides = array<i32: 2, 1>} : memref<64x16xf32, #tpu.memory_space<vmem>>, vector<4x16xf32>
      %c24 = arith.constant 24 : index
      %c0_50 = arith.constant 0 : index
      %69 = tpu.strided_load %arg10[%c24, %c0_50] {strides = array<i32: 2, 1>} : memref<64x16xf32, #tpu.memory_space<vmem>>, vector<4x16xf32>
      %c25 = arith.constant 25 : index
      %c0_51 = arith.constant 0 : index
      %70 = tpu.strided_load %arg10[%c25, %c0_51] {strides = array<i32: 2, 1>} : memref<64x16xf32, #tpu.memory_space<vmem>>, vector<4x16xf32>
      %71 = arith.maximumf %67, %68 : vector<4x16xf32>
      %72 = arith.maximumf %69, %70 : vector<4x16xf32>
      %73 = arith.maximumf %71, %72 : vector<4x16xf32>
      %74 = arith.truncf %73 : vector<4x16xf32> to vector<4x16xbf16>
      %c0_52 = arith.constant 0 : index
      %c4 = arith.constant 4 : index
      %c0_53 = arith.constant 0 : index
      %75 = vector.load %arg7[%c0_52, %c4, %c0_53] : memref<1x16x16xbf16, #tpu.memory_space<vmem>>, vector<1x4x16xbf16>
      %76 = vector.shape_cast %75 : vector<1x4x16xbf16> to vector<4x16xbf16>
      %77 = vector.shape_cast %74 : vector<4x16xbf16> to vector<1x4x16xbf16>
      tpu.vector_store %arg7[%c0_52, %c4, %c0_53], %77 {strides = array<i32>} : memref<1x16x16xbf16, #tpu.memory_space<vmem>>, vector<1x4x16xbf16>,
      %c32 = arith.constant 32 : index
      %c0_54 = arith.constant 0 : index
      %78 = tpu.strided_load %arg10[%c32, %c0_54] {strides = array<i32: 2, 1>} : memref<64x16xf32, #tpu.memory_space<vmem>>, vector<4x16xf32>
      %c33 = arith.constant 33 : index
      %c0_55 = arith.constant 0 : index
      %79 = tpu.strided_load %arg10[%c33, %c0_55] {strides = array<i32: 2, 1>} : memref<64x16xf32, #tpu.memory_space<vmem>>, vector<4x16xf32>
      %c40 = arith.constant 40 : index
      %c0_56 = arith.constant 0 : index
      %80 = tpu.strided_load %arg10[%c40, %c0_56] {strides = array<i32: 2, 1>} : memref<64x16xf32, #tpu.memory_space<vmem>>, vector<4x16xf32>
      %c41 = arith.constant 41 : index
      %c0_57 = arith.constant 0 : index
      %81 = tpu.strided_load %arg10[%c41, %c0_57] {strides = array<i32: 2, 1>} : memref<64x16xf32, #tpu.memory_space<vmem>>, vector<4x16xf32>
      %82 = arith.maximumf %78, %79 : vector<4x16xf32>
      %83 = arith.maximumf %80, %81 : vector<4x16xf32>
      %84 = arith.maximumf %82, %83 : vector<4x16xf32>
      %85 = arith.truncf %84 : vector<4x16xf32> to vector<4x16xbf16>
      %c0_58 = arith.constant 0 : index
      %c8_59 = arith.constant 8 : index
      %c0_60 = arith.constant 0 : index
      %86 = vector.load %arg7[%c0_58, %c8_59, %c0_60] : memref<1x16x16xbf16, #tpu.memory_space<vmem>>, vector<1x4x16xbf16>
      %87 = vector.shape_cast %86 : vector<1x4x16xbf16> to vector<4x16xbf16>
      %88 = vector.shape_cast %85 : vector<4x16xbf16> to vector<1x4x16xbf16>
      tpu.vector_store %arg7[%c0_58, %c8_59, %c0_60], %88 {strides = array<i32>} : memref<1x16x16xbf16, #tpu.memory_space<vmem>>, vector<1x4x16xbf16>,
      %c48 = arith.constant 48 : index
      %c0_61 = arith.constant 0 : index
      %89 = tpu.strided_load %arg10[%c48, %c0_61] {strides = array<i32: 2, 1>} : memref<64x16xf32, #tpu.memory_space<vmem>>, vector<4x16xf32>
      %c49 = arith.constant 49 : index
      %c0_62 = arith.constant 0 : index
      %90 = tpu.strided_load %arg10[%c49, %c0_62] {strides = array<i32: 2, 1>} : memref<64x16xf32, #tpu.memory_space<vmem>>, vector<4x16xf32>
      %c56 = arith.constant 56 : index
      %c0_63 = arith.constant 0 : index
      %91 = tpu.strided_load %arg10[%c56, %c0_63] {strides = array<i32: 2, 1>} : memref<64x16xf32, #tpu.memory_space<vmem>>, vector<4x16xf32>
      %c57 = arith.constant 57 : index
      %c0_64 = arith.constant 0 : index
      %92 = tpu.strided_load %arg10[%c57, %c0_64] {strides = array<i32: 2, 1>} : memref<64x16xf32, #tpu.memory_space<vmem>>, vector<4x16xf32>
      %93 = arith.maximumf %89, %90 : vector<4x16xf32>
      %94 = arith.maximumf %91, %92 : vector<4x16xf32>
      %95 = arith.maximumf %93, %94 : vector<4x16xf32>
      %96 = arith.truncf %95 : vector<4x16xf32> to vector<4x16xbf16>
      %c0_65 = arith.constant 0 : index
      %c12 = arith.constant 12 : index
      %c0_66 = arith.constant 0 : index
      %97 = vector.load %arg7[%c0_65, %c12, %c0_66] : memref<1x16x16xbf16, #tpu.memory_space<vmem>>, vector<1x4x16xbf16>
      %98 = vector.shape_cast %97 : vector<1x4x16xbf16> to vector<4x16xbf16>
      %99 = vector.shape_cast %96 : vector<4x16xbf16> to vector<1x4x16xbf16>
      tpu.vector_store %arg7[%c0_65, %c12, %c0_66], %99 {strides = array<i32>} : memref<1x16x16xbf16, #tpu.memory_space<vmem>>, vector<1x4x16xbf16>,
    } else {
    }
    return
  }
  func.func @transform_0(%arg0: i32, %arg1: i32) -> (i32, i32, i32) {
    %c0_i32 = arith.constant 0 : i32
    %c0_i32_0 = arith.constant 0 : i32
    %c0_i32_1 = arith.constant 0 : i32
    return %arg1, %c0_i32, %c0_i32_0 : i32, i32, i32
  }
  func.func @transform_1(%arg0: i32, %arg1: i32) -> (i32, i32, i32) {
    %c0_i32 = arith.constant 0 : i32
    %c0_i32_0 = arith.constant 0 : i32
    %c0_i32_1 = arith.constant 0 : i32
    %c0_i32_2 = arith.constant 0 : i32
    return %c0_i32, %c0_i32_0, %c0_i32_1 : i32, i32, i32
  }
  func.func @transform_2(%arg0: i32, %arg1: i32) -> (i32, i32) {
    %c0_i32 = arith.constant 0 : i32
    %c0_i32_0 = arith.constant 0 : i32
    %c0_i32_1 = arith.constant 0 : i32
    return %c0_i32, %c0_i32_0 : i32, i32
  }
  func.func @transform_3(%arg0: i32, %arg1: i32) -> (i32, i32) {
    %c0_i32 = arith.constant 0 : i32
    %c0_i32_0 = arith.constant 0 : i32
    %c0_i32_1 = arith.constant 0 : i32
    return %c0_i32, %c0_i32_0 : i32, i32
  }
  func.func @transform_4(%arg0: i32, %arg1: i32) -> (i32, i32) {
    %c0_i32 = arith.constant 0 : i32
    %c0_i32_0 = arith.constant 0 : i32
    %c0_i32_1 = arith.constant 0 : i32
    return %c0_i32, %c0_i32_0 : i32, i32
  }
  func.func @transform_5(%arg0: i32, %arg1: i32) -> (i32, i32, i32) {
    %c0_i32 = arith.constant 0 : i32
    %c0_i32_0 = arith.constant 0 : i32
    %c0_i32_1 = arith.constant 0 : i32
    return %arg1, %c0_i32, %c0_i32_0 : i32, i32, i32
  }
}

module attributes {stable_mosaic.version = 11 : i64} {
  func.func @_conv_bn_relu_pool_kernel(%arg0: i32, %arg1: i32, %arg2: memref<1x24x48xbf16, #tpu.memory_space<vmem>>, %arg3: memref<3x48x32xbf16, #tpu.memory_space<vmem>>, %arg4: memref<1x32xf32, #tpu.memory_space<vmem>>, %arg5: memref<1x32xf32, #tpu.memory_space<vmem>>, %arg6: memref<1x32xf32, #tpu.memory_space<vmem>>, %arg7: memref<1x4x32xbf16, #tpu.memory_space<vmem>>, %arg8: memref<1x32xf32, #tpu.memory_space<vmem>>, %arg9: memref<1x32xf32, #tpu.memory_space<vmem>>, %arg10: memref<16x32xf32, #tpu.memory_space<vmem>>) attributes {dimension_semantics = [#tpu.dimension_semantics<arbitrary>, #tpu.dimension_semantics<arbitrary>], iteration_bounds = array<i64: 2, 2>, scalar_prefetch = 0 : i64, scratch_operands = 3 : i64, tpu.core_type = #tpu.core_type<tc>, window_params = [{transform_indices = @transform_0, window_bounds = array<i64: 1, 24, 48>}, {pipeline_mode = #tpu.pipeline_mode<synchronous>, transform_indices = @transform_1, window_bounds = array<i64: 3, 48, 32>}, {pipeline_mode = #tpu.pipeline_mode<synchronous>, transform_indices = @transform_2, window_bounds = array<i64: 1, 32>}, {pipeline_mode = #tpu.pipeline_mode<synchronous>, transform_indices = @transform_3, window_bounds = array<i64: 1, 32>}, {pipeline_mode = #tpu.pipeline_mode<synchronous>, transform_indices = @transform_4, window_bounds = array<i64: 1, 32>}, {transform_indices = @transform_5, window_bounds = array<i64: 1, 4, 32>}]} {
    %c0 = arith.constant 0 : index
    %c0_0 = arith.constant 0 : index
    %c0_1 = arith.constant 0 : index
    %0 = vector.load %arg2[%c0, %c0_0, %c0_1] : memref<1x24x48xbf16, #tpu.memory_space<vmem>>, vector<1x16x48xbf16>
    %1 = vector.shape_cast %0 : vector<1x16x48xbf16> to vector<16x48xbf16>
    %c0_2 = arith.constant 0 : index
    %c0_3 = arith.constant 0 : index
    %c0_4 = arith.constant 0 : index
    %2 = vector.load %arg3[%c0_2, %c0_3, %c0_4] : memref<3x48x32xbf16, #tpu.memory_space<vmem>>, vector<1x48x32xbf16>
    %3 = vector.shape_cast %2 : vector<1x48x32xbf16> to vector<48x32xbf16>
    %cst = arith.constant dense<0.000000e+00> : vector<16x32xf32>
    %4 = tpu.matmul %1, %3, %cst {dimension_numbers = #tpu.dot_dimension_numbers<[1], [0], [0], [1], [0, 0, 1, 1], [], []>} : vector<16x48xbf16>, vector<48x32xbf16>, vector<16x32xf32> -> vector<16x32xf32>
    %c0_5 = arith.constant 0 : index
    %c4 = arith.constant 4 : index
    %c0_6 = arith.constant 0 : index
    %5 = vector.load %arg2[%c0_5, %c4, %c0_6] : memref<1x24x48xbf16, #tpu.memory_space<vmem>>, vector<1x16x48xbf16>
    %6 = vector.shape_cast %5 : vector<1x16x48xbf16> to vector<16x48xbf16>
    %c1 = arith.constant 1 : index
    %c0_7 = arith.constant 0 : index
    %c0_8 = arith.constant 0 : index
    %7 = vector.load %arg3[%c1, %c0_7, %c0_8] : memref<3x48x32xbf16, #tpu.memory_space<vmem>>, vector<1x48x32xbf16>
    %8 = vector.shape_cast %7 : vector<1x48x32xbf16> to vector<48x32xbf16>
    %cst_9 = arith.constant dense<0.000000e+00> : vector<16x32xf32>
    %9 = tpu.matmul %6, %8, %cst_9 {dimension_numbers = #tpu.dot_dimension_numbers<[1], [0], [0], [1], [0, 0, 1, 1], [], []>} : vector<16x48xbf16>, vector<48x32xbf16>, vector<16x32xf32> -> vector<16x32xf32>
    %10 = arith.addf %4, %9 : vector<16x32xf32>
    %c0_10 = arith.constant 0 : index
    %c8 = arith.constant 8 : index
    %c0_11 = arith.constant 0 : index
    %11 = vector.load %arg2[%c0_10, %c8, %c0_11] : memref<1x24x48xbf16, #tpu.memory_space<vmem>>, vector<1x16x48xbf16>
    %12 = vector.shape_cast %11 : vector<1x16x48xbf16> to vector<16x48xbf16>
    %c2 = arith.constant 2 : index
    %c0_12 = arith.constant 0 : index
    %c0_13 = arith.constant 0 : index
    %13 = vector.load %arg3[%c2, %c0_12, %c0_13] : memref<3x48x32xbf16, #tpu.memory_space<vmem>>, vector<1x48x32xbf16>
    %14 = vector.shape_cast %13 : vector<1x48x32xbf16> to vector<48x32xbf16>
    %cst_14 = arith.constant dense<0.000000e+00> : vector<16x32xf32>
    %15 = tpu.matmul %12, %14, %cst_14 {dimension_numbers = #tpu.dot_dimension_numbers<[1], [0], [0], [1], [0, 0, 1, 1], [], []>} : vector<16x48xbf16>, vector<48x32xbf16>, vector<16x32xf32> -> vector<16x32xf32>
    %16 = arith.addf %10, %15 : vector<16x32xf32>
    %c0_15 = arith.constant 0 : index
    %c0_16 = arith.constant 0 : index
    %17 = vector.load %arg4[%c0_15, %c0_16] : memref<1x32xf32, #tpu.memory_space<vmem>>, vector<1x32xf32>
    %18 = vector.broadcast %17 : vector<1x32xf32> to vector<16x32xf32>
    %19 = arith.addf %16, %18 : vector<16x32xf32>
    %c0_i32 = arith.constant 0 : i32
    %20 = arith.cmpi eq, %arg0, %c0_i32 : i32
    %c0_i32_17 = arith.constant 0 : i32
    %21 = arith.cmpi eq, %arg1, %c0_i32_17 : i32
    %22 = arith.andi %20, %21 : i1
    %23 = arith.extui %22 : i1 to i32
    %c0_i32_18 = arith.constant 0 : i32
    %24 = arith.cmpi ne, %23, %c0_i32_18 : i32
    scf.if %24 {
      %cst_22 = arith.constant 0.000000e+00 : f32
      %31 = vector.broadcast %cst_22 : f32 to vector<1x32xf32>
      %c0_23 = arith.constant 0 : index
      %c0_24 = arith.constant 0 : index
      %32 = vector.load %arg8[%c0_23, %c0_24] : memref<1x32xf32, #tpu.memory_space<vmem>>, vector<1x32xf32>
      tpu.vector_store %arg8[%c0_23, %c0_24], %31 {strides = array<i32>} : memref<1x32xf32, #tpu.memory_space<vmem>>, vector<1x32xf32>,
      %cst_25 = arith.constant 0.000000e+00 : f32
      %33 = vector.broadcast %cst_25 : f32 to vector<1x32xf32>
      %c0_26 = arith.constant 0 : index
      %c0_27 = arith.constant 0 : index
      %34 = vector.load %arg9[%c0_26, %c0_27] : memref<1x32xf32, #tpu.memory_space<vmem>>, vector<1x32xf32>
      tpu.vector_store %arg9[%c0_26, %c0_27], %33 {strides = array<i32>} : memref<1x32xf32, #tpu.memory_space<vmem>>, vector<1x32xf32>,
    } else {
    }
    %c0_i32_19 = arith.constant 0 : i32
    %25 = arith.cmpi eq, %arg0, %c0_i32_19 : i32
    %26 = arith.extui %25 : i1 to i32
    %c0_i32_20 = arith.constant 0 : i32
    %27 = arith.cmpi ne, %26, %c0_i32_20 : i32
    scf.if %27 {
      %c0_22 = arith.constant 0 : index
      %c0_23 = arith.constant 0 : index
      %31 = vector.load %arg8[%c0_22, %c0_23] : memref<1x32xf32, #tpu.memory_space<vmem>>, vector<1x32xf32>
      %cst_24 = arith.constant dense<0.000000e+00> : vector<32xf32>
      %32 = vector.multi_reduction <add>, %19, %cst_24 [0] : vector<16x32xf32> to vector<32xf32>
      %33 = vector.shape_cast %32 : vector<32xf32> to vector<1x32xf32>
      %34 = arith.addf %31, %33 : vector<1x32xf32>
      %c0_25 = arith.constant 0 : index
      %c0_26 = arith.constant 0 : index
      %35 = vector.load %arg8[%c0_25, %c0_26] : memref<1x32xf32, #tpu.memory_space<vmem>>, vector<1x32xf32>
      tpu.vector_store %arg8[%c0_25, %c0_26], %34 {strides = array<i32>} : memref<1x32xf32, #tpu.memory_space<vmem>>, vector<1x32xf32>,
      %c0_27 = arith.constant 0 : index
      %c0_28 = arith.constant 0 : index
      %36 = vector.load %arg9[%c0_27, %c0_28] : memref<1x32xf32, #tpu.memory_space<vmem>>, vector<1x32xf32>
      %37 = arith.mulf %19, %19 : vector<16x32xf32>
      %cst_29 = arith.constant dense<0.000000e+00> : vector<32xf32>
      %38 = vector.multi_reduction <add>, %37, %cst_29 [0] : vector<16x32xf32> to vector<32xf32>
      %39 = vector.shape_cast %38 : vector<32xf32> to vector<1x32xf32>
      %40 = arith.addf %36, %39 : vector<1x32xf32>
      %c0_30 = arith.constant 0 : index
      %c0_31 = arith.constant 0 : index
      %41 = vector.load %arg9[%c0_30, %c0_31] : memref<1x32xf32, #tpu.memory_space<vmem>>, vector<1x32xf32>
      tpu.vector_store %arg9[%c0_30, %c0_31], %40 {strides = array<i32>} : memref<1x32xf32, #tpu.memory_space<vmem>>, vector<1x32xf32>,
    } else {
    }
    %c1_i32 = arith.constant 1 : i32
    %28 = arith.cmpi eq, %arg0, %c1_i32 : i32
    %29 = arith.extui %28 : i1 to i32
    %c0_i32_21 = arith.constant 0 : i32
    %30 = arith.cmpi ne, %29, %c0_i32_21 : i32
    scf.if %30 {
      %c0_22 = arith.constant 0 : index
      %c0_23 = arith.constant 0 : index
      %31 = vector.load %arg8[%c0_22, %c0_23] : memref<1x32xf32, #tpu.memory_space<vmem>>, vector<1x32xf32>
      %cst_24 = arith.constant 3.125000e-02 : f32
      %32 = vector.broadcast %cst_24 : f32 to vector<1x32xf32>
      %33 = arith.mulf %31, %32 : vector<1x32xf32>
      %c0_25 = arith.constant 0 : index
      %c0_26 = arith.constant 0 : index
      %34 = vector.load %arg9[%c0_25, %c0_26] : memref<1x32xf32, #tpu.memory_space<vmem>>, vector<1x32xf32>
      %cst_27 = arith.constant 3.125000e-02 : f32
      %35 = vector.broadcast %cst_27 : f32 to vector<1x32xf32>
      %36 = arith.mulf %34, %35 : vector<1x32xf32>
      %37 = arith.mulf %33, %33 : vector<1x32xf32>
      %38 = arith.subf %36, %37 : vector<1x32xf32>
      %cst_28 = arith.constant 0.000000e+00 : f32
      %39 = vector.broadcast %cst_28 : f32 to vector<1x32xf32>
      %40 = arith.maximumf %38, %39 : vector<1x32xf32>
      %cst_29 = arith.constant 9.99999974E-6 : f32
      %41 = vector.broadcast %cst_29 : f32 to vector<1x32xf32>
      %42 = arith.addf %40, %41 : vector<1x32xf32>
      %43 = math.rsqrt %42 : vector<1x32xf32>
      %c0_30 = arith.constant 0 : index
      %c0_31 = arith.constant 0 : index
      %44 = vector.load %arg5[%c0_30, %c0_31] : memref<1x32xf32, #tpu.memory_space<vmem>>, vector<1x32xf32>
      %45 = arith.mulf %44, %43 : vector<1x32xf32>
      %c0_32 = arith.constant 0 : index
      %c0_33 = arith.constant 0 : index
      %46 = vector.load %arg6[%c0_32, %c0_33] : memref<1x32xf32, #tpu.memory_space<vmem>>, vector<1x32xf32>
      %47 = arith.mulf %33, %45 : vector<1x32xf32>
      %48 = arith.subf %46, %47 : vector<1x32xf32>
      %49 = vector.broadcast %45 : vector<1x32xf32> to vector<16x32xf32>
      %50 = arith.mulf %19, %49 : vector<16x32xf32>
      %51 = vector.broadcast %48 : vector<1x32xf32> to vector<16x32xf32>
      %52 = arith.addf %50, %51 : vector<16x32xf32>
      %cst_34 = arith.constant 0.000000e+00 : f32
      %53 = vector.broadcast %cst_34 : f32 to vector<16x32xf32>
      %54 = arith.maximumf %52, %53 : vector<16x32xf32>
      %c0_35 = arith.constant 0 : index
      %c0_36 = arith.constant 0 : index
      %55 = vector.load %arg10[%c0_35, %c0_36] : memref<16x32xf32, #tpu.memory_space<vmem>>, vector<16x32xf32>
      tpu.vector_store %arg10[%c0_35, %c0_36], %54 {strides = array<i32>} : memref<16x32xf32, #tpu.memory_space<vmem>>, vector<16x32xf32>,
      %c0_37 = arith.constant 0 : index
      %c0_38 = arith.constant 0 : index
      %56 = tpu.strided_load %arg10[%c0_37, %c0_38] {strides = array<i32: 2, 1>} : memref<16x32xf32, #tpu.memory_space<vmem>>, vector<2x32xf32>
      %c1_39 = arith.constant 1 : index
      %c0_40 = arith.constant 0 : index
      %57 = tpu.strided_load %arg10[%c1_39, %c0_40] {strides = array<i32: 2, 1>} : memref<16x32xf32, #tpu.memory_space<vmem>>, vector<2x32xf32>
      %c4_41 = arith.constant 4 : index
      %c0_42 = arith.constant 0 : index
      %58 = tpu.strided_load %arg10[%c4_41, %c0_42] {strides = array<i32: 2, 1>} : memref<16x32xf32, #tpu.memory_space<vmem>>, vector<2x32xf32>
      %c5 = arith.constant 5 : index
      %c0_43 = arith.constant 0 : index
      %59 = tpu.strided_load %arg10[%c5, %c0_43] {strides = array<i32: 2, 1>} : memref<16x32xf32, #tpu.memory_space<vmem>>, vector<2x32xf32>
      %60 = arith.maximumf %56, %57 : vector<2x32xf32>
      %61 = arith.maximumf %58, %59 : vector<2x32xf32>
      %62 = arith.maximumf %60, %61 : vector<2x32xf32>
      %63 = arith.truncf %62 : vector<2x32xf32> to vector<2x32xbf16>
      %c0_44 = arith.constant 0 : index
      %c0_45 = arith.constant 0 : index
      %c0_46 = arith.constant 0 : index
      %64 = vector.load %arg7[%c0_44, %c0_45, %c0_46] : memref<1x4x32xbf16, #tpu.memory_space<vmem>>, vector<1x2x32xbf16>
      %65 = vector.shape_cast %64 : vector<1x2x32xbf16> to vector<2x32xbf16>
      %66 = vector.shape_cast %63 : vector<2x32xbf16> to vector<1x2x32xbf16>
      tpu.vector_store %arg7[%c0_44, %c0_45, %c0_46], %66 {strides = array<i32>} : memref<1x4x32xbf16, #tpu.memory_space<vmem>>, vector<1x2x32xbf16>,
      %c8_47 = arith.constant 8 : index
      %c0_48 = arith.constant 0 : index
      %67 = tpu.strided_load %arg10[%c8_47, %c0_48] {strides = array<i32: 2, 1>} : memref<16x32xf32, #tpu.memory_space<vmem>>, vector<2x32xf32>
      %c9 = arith.constant 9 : index
      %c0_49 = arith.constant 0 : index
      %68 = tpu.strided_load %arg10[%c9, %c0_49] {strides = array<i32: 2, 1>} : memref<16x32xf32, #tpu.memory_space<vmem>>, vector<2x32xf32>
      %c12 = arith.constant 12 : index
      %c0_50 = arith.constant 0 : index
      %69 = tpu.strided_load %arg10[%c12, %c0_50] {strides = array<i32: 2, 1>} : memref<16x32xf32, #tpu.memory_space<vmem>>, vector<2x32xf32>
      %c13 = arith.constant 13 : index
      %c0_51 = arith.constant 0 : index
      %70 = tpu.strided_load %arg10[%c13, %c0_51] {strides = array<i32: 2, 1>} : memref<16x32xf32, #tpu.memory_space<vmem>>, vector<2x32xf32>
      %71 = arith.maximumf %67, %68 : vector<2x32xf32>
      %72 = arith.maximumf %69, %70 : vector<2x32xf32>
      %73 = arith.maximumf %71, %72 : vector<2x32xf32>
      %74 = arith.truncf %73 : vector<2x32xf32> to vector<2x32xbf16>
      %c0_52 = arith.constant 0 : index
      %c2_53 = arith.constant 2 : index
      %c0_54 = arith.constant 0 : index
      %75 = vector.load %arg7[%c0_52, %c2_53, %c0_54] : memref<1x4x32xbf16, #tpu.memory_space<vmem>>, vector<1x2x32xbf16>
      %76 = vector.shape_cast %75 : vector<1x2x32xbf16> to vector<2x32xbf16>
      %77 = vector.shape_cast %74 : vector<2x32xbf16> to vector<1x2x32xbf16>
      tpu.vector_store %arg7[%c0_52, %c2_53, %c0_54], %77 {strides = array<i32>} : memref<1x4x32xbf16, #tpu.memory_space<vmem>>, vector<1x2x32xbf16>,
    } else {
    }
    return
  }
  func.func @transform_0(%arg0: i32, %arg1: i32) -> (i32, i32, i32) {
    %c0_i32 = arith.constant 0 : i32
    %c0_i32_0 = arith.constant 0 : i32
    %c0_i32_1 = arith.constant 0 : i32
    return %arg1, %c0_i32, %c0_i32_0 : i32, i32, i32
  }
  func.func @transform_1(%arg0: i32, %arg1: i32) -> (i32, i32, i32) {
    %c0_i32 = arith.constant 0 : i32
    %c0_i32_0 = arith.constant 0 : i32
    %c0_i32_1 = arith.constant 0 : i32
    %c0_i32_2 = arith.constant 0 : i32
    return %c0_i32, %c0_i32_0, %c0_i32_1 : i32, i32, i32
  }
  func.func @transform_2(%arg0: i32, %arg1: i32) -> (i32, i32) {
    %c0_i32 = arith.constant 0 : i32
    %c0_i32_0 = arith.constant 0 : i32
    %c0_i32_1 = arith.constant 0 : i32
    return %c0_i32, %c0_i32_0 : i32, i32
  }
  func.func @transform_3(%arg0: i32, %arg1: i32) -> (i32, i32) {
    %c0_i32 = arith.constant 0 : i32
    %c0_i32_0 = arith.constant 0 : i32
    %c0_i32_1 = arith.constant 0 : i32
    return %c0_i32, %c0_i32_0 : i32, i32
  }
  func.func @transform_4(%arg0: i32, %arg1: i32) -> (i32, i32) {
    %c0_i32 = arith.constant 0 : i32
    %c0_i32_0 = arith.constant 0 : i32
    %c0_i32_1 = arith.constant 0 : i32
    return %c0_i32, %c0_i32_0 : i32, i32
  }
  func.func @transform_5(%arg0: i32, %arg1: i32) -> (i32, i32, i32) {
    %c0_i32 = arith.constant 0 : i32
    %c0_i32_0 = arith.constant 0 : i32
    %c0_i32_1 = arith.constant 0 : i32
    return %arg1, %c0_i32, %c0_i32_0 : i32, i32, i32
  }
}

module attributes {stable_mosaic.version = 11 : i64} {
  func.func @_conv_bn_relu_pool_kernel(%arg0: i32, %arg1: i32, %arg2: memref<1x8x96xbf16, #tpu.memory_space<vmem>>, %arg3: memref<3x96x64xbf16, #tpu.memory_space<vmem>>, %arg4: memref<1x64xf32, #tpu.memory_space<vmem>>, %arg5: memref<1x64xf32, #tpu.memory_space<vmem>>, %arg6: memref<1x64xf32, #tpu.memory_space<vmem>>, %arg7: memref<1x1x64xbf16, #tpu.memory_space<vmem>>, %arg8: memref<1x64xf32, #tpu.memory_space<vmem>>, %arg9: memref<1x64xf32, #tpu.memory_space<vmem>>, %arg10: memref<4x64xf32, #tpu.memory_space<vmem>>) attributes {dimension_semantics = [#tpu.dimension_semantics<arbitrary>, #tpu.dimension_semantics<arbitrary>], iteration_bounds = array<i64: 2, 2>, scalar_prefetch = 0 : i64, scratch_operands = 3 : i64, tpu.core_type = #tpu.core_type<tc>, window_params = [{transform_indices = @transform_0, window_bounds = array<i64: 1, 8, 96>}, {pipeline_mode = #tpu.pipeline_mode<synchronous>, transform_indices = @transform_1, window_bounds = array<i64: 3, 96, 64>}, {pipeline_mode = #tpu.pipeline_mode<synchronous>, transform_indices = @transform_2, window_bounds = array<i64: 1, 64>}, {pipeline_mode = #tpu.pipeline_mode<synchronous>, transform_indices = @transform_3, window_bounds = array<i64: 1, 64>}, {pipeline_mode = #tpu.pipeline_mode<synchronous>, transform_indices = @transform_4, window_bounds = array<i64: 1, 64>}, {transform_indices = @transform_5, window_bounds = array<i64: 1, 1, 64>}]} {
    %c0 = arith.constant 0 : index
    %c0_0 = arith.constant 0 : index
    %c0_1 = arith.constant 0 : index
    %0 = vector.load %arg2[%c0, %c0_0, %c0_1] : memref<1x8x96xbf16, #tpu.memory_space<vmem>>, vector<1x4x96xbf16>
    %1 = vector.shape_cast %0 : vector<1x4x96xbf16> to vector<4x96xbf16>
    %c0_2 = arith.constant 0 : index
    %c0_3 = arith.constant 0 : index
    %c0_4 = arith.constant 0 : index
    %2 = vector.load %arg3[%c0_2, %c0_3, %c0_4] : memref<3x96x64xbf16, #tpu.memory_space<vmem>>, vector<1x96x64xbf16>
    %3 = vector.shape_cast %2 : vector<1x96x64xbf16> to vector<96x64xbf16>
    %cst = arith.constant dense<0.000000e+00> : vector<4x64xf32>
    %4 = tpu.matmul %1, %3, %cst {dimension_numbers = #tpu.dot_dimension_numbers<[1], [0], [0], [1], [0, 0, 1, 1], [], []>} : vector<4x96xbf16>, vector<96x64xbf16>, vector<4x64xf32> -> vector<4x64xf32>
    %c0_5 = arith.constant 0 : index
    %c2 = arith.constant 2 : index
    %c0_6 = arith.constant 0 : index
    %5 = vector.load %arg2[%c0_5, %c2, %c0_6] : memref<1x8x96xbf16, #tpu.memory_space<vmem>>, vector<1x4x96xbf16>
    %6 = vector.shape_cast %5 : vector<1x4x96xbf16> to vector<4x96xbf16>
    %c1 = arith.constant 1 : index
    %c0_7 = arith.constant 0 : index
    %c0_8 = arith.constant 0 : index
    %7 = vector.load %arg3[%c1, %c0_7, %c0_8] : memref<3x96x64xbf16, #tpu.memory_space<vmem>>, vector<1x96x64xbf16>
    %8 = vector.shape_cast %7 : vector<1x96x64xbf16> to vector<96x64xbf16>
    %cst_9 = arith.constant dense<0.000000e+00> : vector<4x64xf32>
    %9 = tpu.matmul %6, %8, %cst_9 {dimension_numbers = #tpu.dot_dimension_numbers<[1], [0], [0], [1], [0, 0, 1, 1], [], []>} : vector<4x96xbf16>, vector<96x64xbf16>, vector<4x64xf32> -> vector<4x64xf32>
    %10 = arith.addf %4, %9 : vector<4x64xf32>
    %c0_10 = arith.constant 0 : index
    %c4 = arith.constant 4 : index
    %c0_11 = arith.constant 0 : index
    %11 = vector.load %arg2[%c0_10, %c4, %c0_11] : memref<1x8x96xbf16, #tpu.memory_space<vmem>>, vector<1x4x96xbf16>
    %12 = vector.shape_cast %11 : vector<1x4x96xbf16> to vector<4x96xbf16>
    %c2_12 = arith.constant 2 : index
    %c0_13 = arith.constant 0 : index
    %c0_14 = arith.constant 0 : index
    %13 = vector.load %arg3[%c2_12, %c0_13, %c0_14] : memref<3x96x64xbf16, #tpu.memory_space<vmem>>, vector<1x96x64xbf16>
    %14 = vector.shape_cast %13 : vector<1x96x64xbf16> to vector<96x64xbf16>
    %cst_15 = arith.constant dense<0.000000e+00> : vector<4x64xf32>
    %15 = tpu.matmul %12, %14, %cst_15 {dimension_numbers = #tpu.dot_dimension_numbers<[1], [0], [0], [1], [0, 0, 1, 1], [], []>} : vector<4x96xbf16>, vector<96x64xbf16>, vector<4x64xf32> -> vector<4x64xf32>
    %16 = arith.addf %10, %15 : vector<4x64xf32>
    %c0_16 = arith.constant 0 : index
    %c0_17 = arith.constant 0 : index
    %17 = vector.load %arg4[%c0_16, %c0_17] : memref<1x64xf32, #tpu.memory_space<vmem>>, vector<1x64xf32>
    %18 = vector.broadcast %17 : vector<1x64xf32> to vector<4x64xf32>
    %19 = arith.addf %16, %18 : vector<4x64xf32>
    %c0_i32 = arith.constant 0 : i32
    %20 = arith.cmpi eq, %arg0, %c0_i32 : i32
    %c0_i32_18 = arith.constant 0 : i32
    %21 = arith.cmpi eq, %arg1, %c0_i32_18 : i32
    %22 = arith.andi %20, %21 : i1
    %23 = arith.extui %22 : i1 to i32
    %c0_i32_19 = arith.constant 0 : i32
    %24 = arith.cmpi ne, %23, %c0_i32_19 : i32
    scf.if %24 {
      %cst_23 = arith.constant 0.000000e+00 : f32
      %31 = vector.broadcast %cst_23 : f32 to vector<1x64xf32>
      %c0_24 = arith.constant 0 : index
      %c0_25 = arith.constant 0 : index
      %32 = vector.load %arg8[%c0_24, %c0_25] : memref<1x64xf32, #tpu.memory_space<vmem>>, vector<1x64xf32>
      tpu.vector_store %arg8[%c0_24, %c0_25], %31 {strides = array<i32>} : memref<1x64xf32, #tpu.memory_space<vmem>>, vector<1x64xf32>,
      %cst_26 = arith.constant 0.000000e+00 : f32
      %33 = vector.broadcast %cst_26 : f32 to vector<1x64xf32>
      %c0_27 = arith.constant 0 : index
      %c0_28 = arith.constant 0 : index
      %34 = vector.load %arg9[%c0_27, %c0_28] : memref<1x64xf32, #tpu.memory_space<vmem>>, vector<1x64xf32>
      tpu.vector_store %arg9[%c0_27, %c0_28], %33 {strides = array<i32>} : memref<1x64xf32, #tpu.memory_space<vmem>>, vector<1x64xf32>,
    } else {
    }
    %c0_i32_20 = arith.constant 0 : i32
    %25 = arith.cmpi eq, %arg0, %c0_i32_20 : i32
    %26 = arith.extui %25 : i1 to i32
    %c0_i32_21 = arith.constant 0 : i32
    %27 = arith.cmpi ne, %26, %c0_i32_21 : i32
    scf.if %27 {
      %c0_23 = arith.constant 0 : index
      %c0_24 = arith.constant 0 : index
      %31 = vector.load %arg8[%c0_23, %c0_24] : memref<1x64xf32, #tpu.memory_space<vmem>>, vector<1x64xf32>
      %cst_25 = arith.constant dense<0.000000e+00> : vector<64xf32>
      %32 = vector.multi_reduction <add>, %19, %cst_25 [0] : vector<4x64xf32> to vector<64xf32>
      %33 = vector.shape_cast %32 : vector<64xf32> to vector<1x64xf32>
      %34 = arith.addf %31, %33 : vector<1x64xf32>
      %c0_26 = arith.constant 0 : index
      %c0_27 = arith.constant 0 : index
      %35 = vector.load %arg8[%c0_26, %c0_27] : memref<1x64xf32, #tpu.memory_space<vmem>>, vector<1x64xf32>
      tpu.vector_store %arg8[%c0_26, %c0_27], %34 {strides = array<i32>} : memref<1x64xf32, #tpu.memory_space<vmem>>, vector<1x64xf32>,
      %c0_28 = arith.constant 0 : index
      %c0_29 = arith.constant 0 : index
      %36 = vector.load %arg9[%c0_28, %c0_29] : memref<1x64xf32, #tpu.memory_space<vmem>>, vector<1x64xf32>
      %37 = arith.mulf %19, %19 : vector<4x64xf32>
      %cst_30 = arith.constant dense<0.000000e+00> : vector<64xf32>
      %38 = vector.multi_reduction <add>, %37, %cst_30 [0] : vector<4x64xf32> to vector<64xf32>
      %39 = vector.shape_cast %38 : vector<64xf32> to vector<1x64xf32>
      %40 = arith.addf %36, %39 : vector<1x64xf32>
      %c0_31 = arith.constant 0 : index
      %c0_32 = arith.constant 0 : index
      %41 = vector.load %arg9[%c0_31, %c0_32] : memref<1x64xf32, #tpu.memory_space<vmem>>, vector<1x64xf32>
      tpu.vector_store %arg9[%c0_31, %c0_32], %40 {strides = array<i32>} : memref<1x64xf32, #tpu.memory_space<vmem>>, vector<1x64xf32>,
    } else {
    }
    %c1_i32 = arith.constant 1 : i32
    %28 = arith.cmpi eq, %arg0, %c1_i32 : i32
    %29 = arith.extui %28 : i1 to i32
    %c0_i32_22 = arith.constant 0 : i32
    %30 = arith.cmpi ne, %29, %c0_i32_22 : i32
    scf.if %30 {
      %c0_23 = arith.constant 0 : index
      %c0_24 = arith.constant 0 : index
      %31 = vector.load %arg8[%c0_23, %c0_24] : memref<1x64xf32, #tpu.memory_space<vmem>>, vector<1x64xf32>
      %cst_25 = arith.constant 1.250000e-01 : f32
      %32 = vector.broadcast %cst_25 : f32 to vector<1x64xf32>
      %33 = arith.mulf %31, %32 : vector<1x64xf32>
      %c0_26 = arith.constant 0 : index
      %c0_27 = arith.constant 0 : index
      %34 = vector.load %arg9[%c0_26, %c0_27] : memref<1x64xf32, #tpu.memory_space<vmem>>, vector<1x64xf32>
      %cst_28 = arith.constant 1.250000e-01 : f32
      %35 = vector.broadcast %cst_28 : f32 to vector<1x64xf32>
      %36 = arith.mulf %34, %35 : vector<1x64xf32>
      %37 = arith.mulf %33, %33 : vector<1x64xf32>
      %38 = arith.subf %36, %37 : vector<1x64xf32>
      %cst_29 = arith.constant 0.000000e+00 : f32
      %39 = vector.broadcast %cst_29 : f32 to vector<1x64xf32>
      %40 = arith.maximumf %38, %39 : vector<1x64xf32>
      %cst_30 = arith.constant 9.99999974E-6 : f32
      %41 = vector.broadcast %cst_30 : f32 to vector<1x64xf32>
      %42 = arith.addf %40, %41 : vector<1x64xf32>
      %43 = math.rsqrt %42 : vector<1x64xf32>
      %c0_31 = arith.constant 0 : index
      %c0_32 = arith.constant 0 : index
      %44 = vector.load %arg5[%c0_31, %c0_32] : memref<1x64xf32, #tpu.memory_space<vmem>>, vector<1x64xf32>
      %45 = arith.mulf %44, %43 : vector<1x64xf32>
      %c0_33 = arith.constant 0 : index
      %c0_34 = arith.constant 0 : index
      %46 = vector.load %arg6[%c0_33, %c0_34] : memref<1x64xf32, #tpu.memory_space<vmem>>, vector<1x64xf32>
      %47 = arith.mulf %33, %45 : vector<1x64xf32>
      %48 = arith.subf %46, %47 : vector<1x64xf32>
      %49 = vector.broadcast %45 : vector<1x64xf32> to vector<4x64xf32>
      %50 = arith.mulf %19, %49 : vector<4x64xf32>
      %51 = vector.broadcast %48 : vector<1x64xf32> to vector<4x64xf32>
      %52 = arith.addf %50, %51 : vector<4x64xf32>
      %cst_35 = arith.constant 0.000000e+00 : f32
      %53 = vector.broadcast %cst_35 : f32 to vector<4x64xf32>
      %54 = arith.maximumf %52, %53 : vector<4x64xf32>
      %c0_36 = arith.constant 0 : index
      %c0_37 = arith.constant 0 : index
      %55 = vector.load %arg10[%c0_36, %c0_37] : memref<4x64xf32, #tpu.memory_space<vmem>>, vector<4x64xf32>
      tpu.vector_store %arg10[%c0_36, %c0_37], %54 {strides = array<i32>} : memref<4x64xf32, #tpu.memory_space<vmem>>, vector<4x64xf32>,
      %c0_38 = arith.constant 0 : index
      %c0_39 = arith.constant 0 : index
      %56 = tpu.strided_load %arg10[%c0_38, %c0_39] {strides = array<i32: 2, 1>} : memref<4x64xf32, #tpu.memory_space<vmem>>, vector<1x64xf32>
      %c1_40 = arith.constant 1 : index
      %c0_41 = arith.constant 0 : index
      %57 = tpu.strided_load %arg10[%c1_40, %c0_41] {strides = array<i32: 2, 1>} : memref<4x64xf32, #tpu.memory_space<vmem>>, vector<1x64xf32>
      %c2_42 = arith.constant 2 : index
      %c0_43 = arith.constant 0 : index
      %58 = tpu.strided_load %arg10[%c2_42, %c0_43] {strides = array<i32: 2, 1>} : memref<4x64xf32, #tpu.memory_space<vmem>>, vector<1x64xf32>
      %c3 = arith.constant 3 : index
      %c0_44 = arith.constant 0 : index
      %59 = tpu.strided_load %arg10[%c3, %c0_44] {strides = array<i32: 2, 1>} : memref<4x64xf32, #tpu.memory_space<vmem>>, vector<1x64xf32>
      %60 = arith.maximumf %56, %57 : vector<1x64xf32>
      %61 = arith.maximumf %58, %59 : vector<1x64xf32>
      %62 = arith.maximumf %60, %61 : vector<1x64xf32>
      %63 = arith.truncf %62 : vector<1x64xf32> to vector<1x64xbf16>
      %c0_45 = arith.constant 0 : index
      %c0_46 = arith.constant 0 : index
      %c0_47 = arith.constant 0 : index
      %64 = vector.load %arg7[%c0_45, %c0_46, %c0_47] : memref<1x1x64xbf16, #tpu.memory_space<vmem>>, vector<1x1x64xbf16>
      %65 = vector.shape_cast %64 : vector<1x1x64xbf16> to vector<1x64xbf16>
      %66 = vector.shape_cast %63 : vector<1x64xbf16> to vector<1x1x64xbf16>
      tpu.vector_store %arg7[%c0_45, %c0_46, %c0_47], %66 {strides = array<i32>} : memref<1x1x64xbf16, #tpu.memory_space<vmem>>, vector<1x1x64xbf16>,
    } else {
    }
    return
  }
  func.func @transform_0(%arg0: i32, %arg1: i32) -> (i32, i32, i32) {
    %c0_i32 = arith.constant 0 : i32
    %c0_i32_0 = arith.constant 0 : i32
    %c0_i32_1 = arith.constant 0 : i32
    return %arg1, %c0_i32, %c0_i32_0 : i32, i32, i32
  }
  func.func @transform_1(%arg0: i32, %arg1: i32) -> (i32, i32, i32) {
    %c0_i32 = arith.constant 0 : i32
    %c0_i32_0 = arith.constant 0 : i32
    %c0_i32_1 = arith.constant 0 : i32
    %c0_i32_2 = arith.constant 0 : i32
    return %c0_i32, %c0_i32_0, %c0_i32_1 : i32, i32, i32
  }
  func.func @transform_2(%arg0: i32, %arg1: i32) -> (i32, i32) {
    %c0_i32 = arith.constant 0 : i32
    %c0_i32_0 = arith.constant 0 : i32
    %c0_i32_1 = arith.constant 0 : i32
    return %c0_i32, %c0_i32_0 : i32, i32
  }
  func.func @transform_3(%arg0: i32, %arg1: i32) -> (i32, i32) {
    %c0_i32 = arith.constant 0 : i32
    %c0_i32_0 = arith.constant 0 : i32
    %c0_i32_1 = arith.constant 0 : i32
    return %c0_i32, %c0_i32_0 : i32, i32
  }
  func.func @transform_4(%arg0: i32, %arg1: i32) -> (i32, i32) {
    %c0_i32 = arith.constant 0 : i32
    %c0_i32_0 = arith.constant 0 : i32
    %c0_i32_1 = arith.constant 0 : i32
    return %c0_i32, %c0_i32_0 : i32, i32
  }
  func.func @transform_5(%arg0: i32, %arg1: i32) -> (i32, i32, i32) {
    %c0_i32 = arith.constant 0 : i32
    %c0_i32_0 = arith.constant 0 : i32
    %c0_i32_1 = arith.constant 0 : i32
    return %arg1, %c0_i32, %c0_i32_0 : i32, i32, i32
  }
}

module attributes {stable_mosaic.version = 11 : i64} {
  func.func @_fc_kernel(%arg0: memref<2x64xbf16, #tpu.memory_space<vmem>>, %arg1: memref<64x128xbf16, #tpu.memory_space<vmem>>, %arg2: memref<1x128xf32, #tpu.memory_space<vmem>>, %arg3: memref<128x5xbf16, #tpu.memory_space<vmem>>, %arg4: memref<1x5xf32, #tpu.memory_space<vmem>>, %arg5: memref<2x5xf32, #tpu.memory_space<vmem>>) attributes {dimension_semantics = [], scalar_prefetch = 0 : i64, scratch_operands = 0 : i64, tpu.core_type = #tpu.core_type<tc>} {
    %c0 = arith.constant 0 : index
    %c0_0 = arith.constant 0 : index
    %0 = vector.load %arg0[%c0, %c0_0] : memref<2x64xbf16, #tpu.memory_space<vmem>>, vector<2x64xbf16>
    %c0_1 = arith.constant 0 : index
    %c0_2 = arith.constant 0 : index
    %1 = vector.load %arg1[%c0_1, %c0_2] : memref<64x128xbf16, #tpu.memory_space<vmem>>, vector<64x128xbf16>
    %cst = arith.constant dense<0.000000e+00> : vector<2x128xf32>
    %2 = tpu.matmul %0, %1, %cst {dimension_numbers = #tpu.dot_dimension_numbers<[1], [0], [0], [1], [0, 0, 1, 1], [], []>} : vector<2x64xbf16>, vector<64x128xbf16>, vector<2x128xf32> -> vector<2x128xf32>
    %c0_3 = arith.constant 0 : index
    %c0_4 = arith.constant 0 : index
    %3 = vector.load %arg2[%c0_3, %c0_4] : memref<1x128xf32, #tpu.memory_space<vmem>>, vector<1x128xf32>
    %4 = vector.broadcast %3 : vector<1x128xf32> to vector<2x128xf32>
    %5 = arith.addf %2, %4 : vector<2x128xf32>
    %cst_5 = arith.constant 0.000000e+00 : f32
    %6 = vector.broadcast %cst_5 : f32 to vector<2x128xf32>
    %7 = arith.maximumf %5, %6 : vector<2x128xf32>
    %8 = arith.truncf %7 : vector<2x128xf32> to vector<2x128xbf16>
    %c0_6 = arith.constant 0 : index
    %c0_7 = arith.constant 0 : index
    %9 = vector.load %arg3[%c0_6, %c0_7] : memref<128x5xbf16, #tpu.memory_space<vmem>>, vector<128x5xbf16>
    %cst_8 = arith.constant dense<0.000000e+00> : vector<2x5xf32>
    %10 = tpu.matmul %8, %9, %cst_8 {dimension_numbers = #tpu.dot_dimension_numbers<[1], [0], [0], [1], [0, 0, 1, 1], [], []>} : vector<2x128xbf16>, vector<128x5xbf16>, vector<2x5xf32> -> vector<2x5xf32>
    %c0_9 = arith.constant 0 : index
    %c0_10 = arith.constant 0 : index
    %11 = vector.load %arg4[%c0_9, %c0_10] : memref<1x5xf32, #tpu.memory_space<vmem>>, vector<1x5xf32>
    %12 = vector.broadcast %11 : vector<1x5xf32> to vector<2x5xf32>
    %13 = arith.addf %10, %12 : vector<2x5xf32>
    %c0_11 = arith.constant 0 : index
    %c0_12 = arith.constant 0 : index
    %14 = vector.load %arg5[%c0_11, %c0_12] : memref<2x5xf32, #tpu.memory_space<vmem>>, vector<2x5xf32>
    tpu.vector_store %arg5[%c0_11, %c0_12], %13 {strides = array<i32>} : memref<2x5xf32, #tpu.memory_space<vmem>>, vector<2x5xf32>,
    return
  }
}

</mosaic_0001>

<llo_original>
// kernel: forward.6
$region0: #{forward.6}
  #allocation0 [shape = 'u32[]', space=smem, size = 0x4, offset = 0x4, fixed_abs, tag = 'smem constant byte address 0x4 - core index']
  #allocation1 [shape = 'u32[144,128]{1,0:T(1,128)}', space=vmem, size = 0x12000, scoped, tag = 'internal scratch']
  #allocation2 [shape = 'f32[1,16]{1,0:T(1,128)}', space=vmem, size = 0x200, scoped, tag = 'scratch operand']
  #allocation3 [shape = 'f32[1,16]{1,0:T(1,128)}', space=vmem, size = 0x200, scoped, tag = 'scratch operand']
  #allocation4 [shape = 'f32[64,16]{1,0:T(8,128)}', space=vmem, size = 0x8000, scoped, tag = 'scratch operand']
  %s0 = inlined_call_operand.vmem [shape: bf16[2,80,24], index: 0, kind: input, shape index: {}]
  %s1 = inlined_call_operand.vmem [shape: bf16[3,24,16], index: 1, kind: input, shape index: {}]
  %s2 = inlined_call_operand.vmem [shape: f32[1,16], index: 2, kind: input, shape index: {}]
  %s3 = inlined_call_operand.vmem [shape: f32[1,16], index: 3, kind: input, shape index: {}]
  %s4 = inlined_call_operand.vmem [shape: f32[1,16], index: 4, kind: input, shape index: {}]
  %s5 = inlined_call_operand.vmem [shape: bf16[2,16,16], index: 5, kind: output, shape index: {}]
  %s6 = sld [smem:[#allocation0]]
  $region65: #{forward.6} parent=0
    _
  %s8 = ssub.s32 1, %s6
  %s9 = scalar_select 0, %s8, %s6
  loop: start=0, step=1, limit=6
  $region2: #{forward.6} parent=0 // loop_pre_header
    _
  $region3: #{forward.6} parent=0 // loop_header
    %s11 = sphi 0, %s15
    %p12 = scmp.ge.s32.totalorder %s11, 6
    %s18 = sphi 0, %s30
    %s19 = sphi 0, %s26
    %s20 = sphi 0, %s18
    %s21 = sphi 0, %s19
    %s22 = sphi 0, %s20
    %s23 = sphi 0, %s21
    %s33 = sphi 0, %s35
    %s36 = sphi 0, %s33
    %s37 = sphi 0, %s36
    %s53 = sphi 0, %s37
    %s57 = sphi 0, %s57
    %s59 = sphi 0, %s57
    %s60 = sphi 0, %s59
    %s74 = sphi 0, %s60
    %s78 = sphi 0, %s78
    %s80 = sphi 0, %s78
    %s81 = sphi 0, %s80
    %s95 = sphi 0, %s81
    %s99 = sphi 0, %s99
    %s101 = sphi 0, %s99
    %s102 = sphi 0, %s101
    %s116 = sphi 0, %s102
    %s120 = sphi 0, %s120
    %s122 = sphi 0, %s120
    %s123 = sphi 0, %s122
    %s137 = sphi 0, %s123
    %s143 = sphi 0, %s145
    %s146 = sphi 0, %s143
    %s147 = sphi 0, %s146
    %s163 = sphi 0, %s147
  $region4: #{forward.6} parent=0 // loop_header_branch
    %14 = sbr.rel (%p12) target = $region8
  $region5: #{forward.6} parent=0 // loop_body
    %s16 = ssub.s32 %s11, 1
    %s17 = ssub.s32 %s11, 2
    %s24 = sadd.s32 1, %s19
    %p25 = scmp.ge.s32.totalorder %s24, 2
    %s26 = scalar_select %p25, 0, %s24
    %s27 = sadd.s32 1, %s18
    %s28 = scalar_select %p25, %s27, %s18
    %p29 = scmp.ge.s32.totalorder %s28, 2
    %s30 = scalar_select %p29, 0, %s28
    %s31 = ssub.s32 %s19, %s26
    %p32 = scmp.eq.s32.totalorder %s31, 0
    %s34 = sadd.s32 %s33, 1
    %s35 = scalar_select %p32, %s33, %s34
    %p38 = pneg %p32
    %p39 = scmp.eq.s32.totalorder %s11, 3
    %p40 = por %p38, %p39
    %p41 = scmp.ne.s32.totalorder %s33, %s36
    %p42 = scmp.eq.s32.totalorder %s11, 0
    %p43 = por %p41, %p42
    %p44 = scmp.ne.s32.totalorder %s33, %s36
    %p45 = scmp.eq.s32.totalorder %s16, 3
    %p46 = por %p44, %p45
    %p47 = scmp.ne.s32.totalorder %s36, %s37
    %p48 = scmp.eq.s32.totalorder %s16, 0
    %p49 = por %p47, %p48
    %p50 = scmp.ne.s32.totalorder %s36, %s37
    %p51 = scmp.eq.s32.totalorder %s17, 3
    %p52 = por %p50, %p51
    %p54 = scmp.ne.s32.totalorder %s37, %s53
    %p55 = scmp.eq.s32.totalorder %s17, 0
    %p56 = por %p54, %p55
    %s58 = sadd.s32 %s57, 1
    %p61 = scmp.eq.s32.totalorder %s11, 3
    %p62 = scmp.ne.s32.totalorder %s57, %s59
    %p63 = scmp.eq.s32.totalorder %s11, 0
    %p64 = por %p62, %p63
    %p65 = scmp.ne.s32.totalorder %s57, %s59
    %p66 = scmp.eq.s32.totalorder %s16, 3
    %p67 = por %p65, %p66
    %p68 = scmp.ne.s32.totalorder %s59, %s60
    %p69 = scmp.eq.s32.totalorder %s16, 0
    %p70 = por %p68, %p69
    %p71 = scmp.ne.s32.totalorder %s59, %s60
    %p72 = scmp.eq.s32.totalorder %s17, 3
    %p73 = por %p71, %p72
    %p75 = scmp.ne.s32.totalorder %s60, %s74
    %p76 = scmp.eq.s32.totalorder %s17, 0
    %p77 = por %p75, %p76
    %s79 = sadd.s32 %s78, 1
    %p82 = scmp.eq.s32.totalorder %s11, 3
    %p83 = scmp.ne.s32.totalorder %s78, %s80
    %p84 = scmp.eq.s32.totalorder %s11, 0
    %p85 = por %p83, %p84
    %p86 = scmp.ne.s32.totalorder %s78, %s80
    %p87 = scmp.eq.s32.totalorder %s16, 3
    %p88 = por %p86, %p87
    %p89 = scmp.ne.s32.totalorder %s80, %s81
    %p90 = scmp.eq.s32.totalorder %s16, 0
    %p91 = por %p89, %p90
    %p92 = scmp.ne.s32.totalorder %s80, %s81
    %p93 = scmp.eq.s32.totalorder %s17, 3
    %p94 = por %p92, %p93
    %p96 = scmp.ne.s32.totalorder %s81, %s95
    %p97 = scmp.eq.s32.totalorder %s17, 0
    %p98 = por %p96, %p97
    %s100 = sadd.s32 %s99, 1
    %p103 = scmp.eq.s32.totalorder %s11, 3
    %p104 = scmp.ne.s32.totalorder %s99, %s101
    %p105 = scmp.eq.s32.totalorder %s11, 0
    %p106 = por %p104, %p105
    %p107 = scmp.ne.s32.totalorder %s99, %s101
    %p108 = scmp.eq.s32.totalorder %s16, 3
    %p109 = por %p107, %p108
    %p110 = scmp.ne.s32.totalorder %s101, %s102
    %p111 = scmp.eq.s32.totalorder %s16, 0
    %p112 = por %p110, %p111
    %p113 = scmp.ne.s32.totalorder %s101, %s102
    %p114 = scmp.eq.s32.totalorder %s17, 3
    %p115 = por %p113, %p114
    %p117 = scmp.ne.s32.totalorder %s102, %s116
    %p118 = scmp.eq.s32.totalorder %s17, 0
    %p119 = por %p117, %p118
    %s121 = sadd.s32 %s120, 1
    %p124 = scmp.eq.s32.totalorder %s11, 3
    %p125 = scmp.ne.s32.totalorder %s120, %s122
    %p126 = scmp.eq.s32.totalorder %s11, 0
    %p127 = por %p125, %p126
    %p128 = scmp.ne.s32.totalorder %s120, %s122
    %p129 = scmp.eq.s32.totalorder %s16, 3
    %p130 = por %p128, %p129
    %p131 = scmp.ne.s32.totalorder %s122, %s123
    %p132 = scmp.eq.s32.totalorder %s16, 0
    %p133 = por %p131, %p132
    %p134 = scmp.ne.s32.totalorder %s122, %s123
    %p135 = scmp.eq.s32.totalorder %s17, 3
    %p136 = por %p134, %p135
    %p138 = scmp.ne.s32.totalorder %s123, %s137
    %p139 = scmp.eq.s32.totalorder %s17, 0
    %p140 = por %p138, %p139
    %s141 = ssub.s32 %s19, %s26
    %p142 = scmp.eq.s32.totalorder %s141, 0
    %s144 = sadd.s32 %s143, 1
    %s145 = scalar_select %p142, %s143, %s144
    %p148 = pneg %p142
    %p149 = scmp.eq.s32.totalorder %s11, 3
    %p150 = por %p148, %p149
    %p151 = scmp.ne.s32.totalorder %s143, %s146
    %p152 = scmp.eq.s32.totalorder %s11, 0
    %p153 = por %p151, %p152
    %p154 = scmp.ne.s32.totalorder %s143, %s146
    %p155 = scmp.eq.s32.totalorder %s16, 3
    %p156 = por %p154, %p155
    %p157 = scmp.ne.s32.totalorder %s146, %s147
    %p158 = scmp.eq.s32.totalorder %s16, 0
    %p159 = por %p157, %p158
    %p160 = scmp.ne.s32.totalorder %s146, %s147
    %p161 = scmp.eq.s32.totalorder %s17, 3
    %p162 = por %p160, %p161
    %p164 = scmp.ne.s32.totalorder %s147, %s163
    %p165 = scmp.eq.s32.totalorder %s17, 0
    %p166 = por %p164, %p165
    %p167 = scmp.le.s32.totalorder 1, %s11
    %p168 = scmp.lt.s32.totalorder %s11, 5
    %p169 = pnand %p167, %p168
    %p170 = pneg %p169
    // Predicated region
    $region9: #{forward.6} parent=5 // pred_check
      _
    $region10: #{forward.6} parent=5 // pred_check_branch
      %172 = sbr.rel (%p169) target = $region12
    $region11: #{forward.6} parent=5 // pred_region
      %s173 = ssub.s32 %s11, 1
      // Predicated region
      $region13: #{forward.6} parent=11 // pred_check
        %p174 = pneg %p70
      $region14: #{forward.6} parent=11 // pred_check_branch
        %176 = sbr.rel (%p174) target = $region16
      $region15: #{forward.6} parent=11 // pred_region
        _
      $region16: #{forward.6} parent=11 // pred_fallthru
        _
      // Predicated region
      $region17: #{forward.6} parent=11 // pred_check
        %p177 = pneg %p91
      $region18: #{forward.6} parent=11 // pred_check_branch
        %179 = sbr.rel (%p177) target = $region20
      $region19: #{forward.6} parent=11 // pred_region
        _
      $region20: #{forward.6} parent=11 // pred_fallthru
        _
      // Predicated region
      $region21: #{forward.6} parent=11 // pred_check
        %p180 = pneg %p112
      $region22: #{forward.6} parent=11 // pred_check_branch
        %182 = sbr.rel (%p180) target = $region24
      $region23: #{forward.6} parent=11 // pred_region
        _
      $region24: #{forward.6} parent=11 // pred_fallthru
        _
      // Predicated region
      $region25: #{forward.6} parent=11 // pred_check
        %p183 = pneg %p133
      $region26: #{forward.6} parent=11 // pred_check_branch
        %185 = sbr.rel (%p183) target = $region28
      $region27: #{forward.6} parent=11 // pred_region
        _
      $region28: #{forward.6} parent=11 // pred_fallthru
        _
    $region12: #{forward.6} parent=5 // pred_fallthru
      _
    %p186 = scmp.lt.s32.totalorder %s11, 4
    // Predicated region
    $region29: #{forward.6} parent=5 // pred_check
      %p187 = pneg %p186
    $region30: #{forward.6} parent=5 // pred_check_branch
      %189 = sbr.rel (%p187) target = $region32
    $region31: #{forward.6} parent=5 // pred_region
      // Predicated region
      $region33: #{forward.6} parent=31 // pred_check
        %p190 = pneg %p43
      $region34: #{forward.6} parent=31 // pred_check_branch
        %192 = sbr.rel (%p190) target = $region36
      $region35: #{forward.6} parent=31 // pred_region
        %p193 = scmp.lt.s32.totalorder %s19, 1
        %s194 = scalar_select %p193, %s19, 1
        %s195 = smul.addr %s194, 10
        %s196 = smul.addr %s195, 4
        %s197 = scalar_lea.vmem %s0, %s196
      $region36: #{forward.6} parent=31 // pred_fallthru
        _
    $region32: #{forward.6} parent=5 // pred_fallthru
      _
    %p198 = scmp.le.s32.totalorder 1, %s11
    %p199 = scmp.lt.s32.totalorder %s11, 5
    %p200 = pnand %p198, %p199
    %p201 = pneg %p200
    // Predicated region
    $region37: #{forward.6} parent=5 // pred_check
      _
    $region38: #{forward.6} parent=5 // pred_check_branch
      %203 = sbr.rel (%p200) target = $region40
    $region39: #{forward.6} parent=5 // pred_region
      %s204 = ssub.s32 %s11, 1
      %p205 = scmp.lt.s32.totalorder %s21, 1
      %s206 = scalar_select %p205, %s21, 1
      %s207 = smul.addr %s206, 10
      %s208 = smul.addr %s207, 4
      %s209 = scalar_lea.vmem %s0, %s208
      %p210 = pneg %p49
      %p211 = pneg %p46
      %p212 = pneg %p70
      %p213 = pneg %p67
      %p214 = pneg %p91
      %p215 = pneg %p88
      %p216 = pneg %p112
      %p217 = pneg %p109
      %p218 = pneg %p133
      %p219 = pneg %p130
      %p220 = pneg %p159
      %p221 = pneg %p156
      %p222 = scmp.lt.s32.totalorder %s21, 1
      %s223 = scalar_select %p222, %s21, 1
      %s224 = smul.addr %s223, 2
      %s225 = smul.addr %s224, 4
      %s226 = scalar_lea.vmem %s5, %s225
      %p227 = scmp.lt.s32.totalorder %s21, 1
      %s228 = scalar_select %p227, %s21, 1
      %s229 = smul.addr %s228, 10
      %s230 = smul.addr %s229, 4
      %s231 = scalar_lea.vmem %s0, %s230
      %p232 = scmp.lt.s32.totalorder %s21, 1
      %s233 = scalar_select %p232, %s21, 1
      %s234 = smul.addr %s233, 2
      %s235 = smul.addr %s234, 4
      %s236 = scalar_lea.vmem %s5, %s235
      %v238 = vld [vmem:[%s231] sm:$0xf]
      %v239 = vld [vmem:[%s231 + $0x4] sm:$0xf]
      %v240 = vld [vmem:[%s231 + $0x8] sm:$0xf]
      %v241 = vld [vmem:[%s231 + $0xc] sm:$0xf]
      %v242 = vld [vmem:[%s231 + $0x10] sm:$0xf]
      %v243 = vld [vmem:[%s231 + $0x14] sm:$0xf]
      %v244 = vld [vmem:[%s231 + $0x18] sm:$0xf]
      %v245 = vld [vmem:[%s231 + $0x1c] sm:$0xf]
      %v246 = vld [vmem:[%s1] sm:$0xf]
      %v247 = vld [vmem:[%s1 + $0x4] sm:$0xf]
      %v248 = vld [vmem:[%s1 + $0x8] sm:$0xf]
      %v249 = vld [vmem:[%s231 + $0x20] sm:$0xf]
      %s250 = scalar_lea.vmem %s1, 12
      %v251 = vld [vmem:[%s250] sm:$0xf]
      %v252 = vld [vmem:[%s250 + $0x4] sm:$0xf]
      %v253 = vld [vmem:[%s250 + $0x8] sm:$0xf]
      %v262 = vunpack.c.l.b16 %v239
      %v263 = vunpack.c.l.b16 %v240
      %v264 = vunpack.c.l.b16 %v241
      %v265 = vunpack.c.l.b16 %v242
      %v266 = vunpack.c.l.b16 %v243
      %v267 = vunpack.c.l.b16 %v244
      %v268 = vunpack.c.l.b16 %v245
      %v269 = vunpack.c.l.b16 %v249
      %v270 = vpack.c.b16 %v263, %v262
      %v271 = vpack.c.b16 %v265, %v264
      %v272 = vpack.c.b16 %v267, %v266
      %v273 = vpack.c.b16 %v269, %v268
      %v277 = vunpack.c.l.b16 %v251
      %v278 = vunpack.c.l.b16 %v252
      %v279 = vunpack.c.l.b16 %v253
      %v280 = vpack.c.b16 %v278, %v277
      %v281 = vpack.c.b16 %v279, %v279
      %vm283 = vcmask 195584
      %v285 = vsel %vm283, %v270, 0
      %v288 = vsel %vm283, %v271, 0
      %v291 = vsel %vm283, %v272, 0
      %v294 = vsel %vm283, %v273, 0
      %vm296 = vcmask 1043456
      %v298 = vsel %vm296, %v281, 0
      %300 = vmatprep.subr.bf16.mxu0 0
      %301 = vmatpush1.bf16.msra.mxu0 0
      %302 = vmatprep.subr.bf16.mxu0 0
      %303 = vmatpush1.bf16.msra.mxu0 0
      %304 = vmatprep.subr.bf16.mxu0 0
      %305 = vmatpush1.bf16.msra.mxu0 0
      %306 = vmatprep.subr.bf16.mxu0 0
      %307 = vmatpush1.bf16.msra.mxu0 0
      %308 = vmatprep.subr.bf16.mxu0 0
      %309 = vmatpush1.bf16.msra.mxu0 0
      %310 = vmatprep.subr.bf16.mxu0 0
      %311 = vmatpush1.bf16.msra.mxu0 0
      %312 = vmatprep.subr.bf16.mxu0 0
      %313 = vmatpush1.bf16.msra.mxu0 %v298
      %314 = vmatprep.subr.bf16.mxu0 0
      %315 = vmatpush1.bf16.msra.mxu0 %v280
      %316 = vmatprep.subr.bf16.mxu0 0
      %317 = vmatpush2.bf16.msra.mxu0 0
      %318 = vmatprep.subr.bf16.mxu0 0
      %319 = vmatpush2.bf16.msra.mxu0 0
      %320 = vmatprep.subr.bf16.mxu0 0
      %321 = vmatpush2.bf16.msra.mxu0 0
      %322 = vmatprep.subr.bf16.mxu0 0
      %323 = vmatpush2.bf16.msra.mxu0 0
      %324 = vmatprep.subr.bf16.mxu0 0
      %325 = vmatpush2.bf16.msra.mxu0 0
      %326 = vmatprep.subr.bf16.mxu0 0
      %327 = vmatpush2.bf16.msra.mxu0 0
      %328 = vmatprep.subr.bf16.mxu0 0
      %329 = vmatpush2.bf16.msra.mxu0 0
      %330 = vmatprep.subr.bf16.mxu0 0
      %331 = vmatpush2.bf16.msra.mxu0 0
      %332 = vmatprep.mubr.bf16.mxu0 0
      %333 = vmatmul.mubr.bf16.gmra.mxu0 %v285
      %v334 = vpop.f32.mrf.mxu0
      %v335 = vadd.f32 0.0, %v334
      %v336 = vpop.f32.mrf.mxu0
      %v337 = vpop.f32.mrf.mxu0
      %v338 = vadd.f32 0.0, %v337
      %v339 = vpop.f32.mrf.mxu0
      %340 = vmatprep.mubr.bf16.mxu0 0
      %341 = vmatmul.mubr.bf16.gmra.mxu0 %v288
      %v342 = vpop.f32.mrf.mxu0
      %v343 = vadd.f32 0.0, %v342
      %v344 = vpop.f32.mrf.mxu0
      %v345 = vpop.f32.mrf.mxu0
      %v346 = vadd.f32 0.0, %v345
      %v347 = vpop.f32.mrf.mxu0
      %348 = vmatprep.mubr.bf16.mxu0 0
      %349 = vmatmul.mubr.bf16.gmra.mxu0 %v291
      %v350 = vpop.f32.mrf.mxu0
      %v351 = vadd.f32 0.0, %v350
      %v352 = vpop.f32.mrf.mxu0
      %v353 = vpop.f32.mrf.mxu0
      %v354 = vadd.f32 0.0, %v353
      %v355 = vpop.f32.mrf.mxu0
      %356 = vmatprep.mubr.bf16.mxu0 0
      %357 = vmatmul.mubr.bf16.gmra.mxu0 %v294
      %v358 = vpop.f32.mrf.mxu0
      %v359 = vadd.f32 0.0, %v358
      %v360 = vpop.f32.mrf.mxu0
      %v361 = vpop.f32.mrf.mxu0
      %v362 = vadd.f32 0.0, %v361
      %v363 = vpop.f32.mrf.mxu0
      %364 = vdwg.mxu0
      %v366 = vunpack.c.l.b16 %v238
      %v367 = vpack.c.b16 %v262, %v366
      %v368 = vpack.c.b16 %v264, %v263
      %v369 = vpack.c.b16 %v266, %v265
      %v370 = vpack.c.b16 %v268, %v267
      %v374 = vunpack.c.l.b16 %v246
      %v375 = vunpack.c.l.b16 %v247
      %v376 = vunpack.c.l.b16 %v248
      %v377 = vpack.c.b16 %v375, %v374
      %v378 = vpack.c.b16 %v376, %v376
      %v381 = vsel %vm283, %v367, 0
      %v384 = vsel %vm283, %v368, 0
      %v387 = vsel %vm283, %v369, 0
      %v390 = vsel %vm283, %v370, 0
      %v393 = vsel %vm296, %v378, 0
      %395 = vmatprep.subr.bf16.mxu0 0
      %396 = vmatpush1.bf16.msra.mxu0 0
      %397 = vmatprep.subr.bf16.mxu0 0
      %398 = vmatpush1.bf16.msra.mxu0 0
      %399 = vmatprep.subr.bf16.mxu0 0
      %400 = vmatpush1.bf16.msra.mxu0 0
      %401 = vmatprep.subr.bf16.mxu0 0
      %402 = vmatpush1.bf16.msra.mxu0 0
      %403 = vmatprep.subr.bf16.mxu0 0
      %404 = vmatpush1.bf16.msra.mxu0 0
      %405 = vmatprep.subr.bf16.mxu0 0
      %406 = vmatpush1.bf16.msra.mxu0 0
      %407 = vmatprep.subr.bf16.mxu0 0
      %408 = vmatpush1.bf16.msra.mxu0 %v393
      %409 = vmatprep.subr.bf16.mxu0 0
      %410 = vmatpush1.bf16.msra.mxu0 %v377
      %411 = vmatprep.subr.bf16.mxu0 0
      %412 = vmatpush2.bf16.msra.mxu0 0
      %413 = vmatprep.subr.bf16.mxu0 0
      %414 = vmatpush2.bf16.msra.mxu0 0
      %415 = vmatprep.subr.bf16.mxu0 0
      %416 = vmatpush2.bf16.msra.mxu0 0
      %417 = vmatprep.subr.bf16.mxu0 0
      %418 = vmatpush2.bf16.msra.mxu0 0
      %419 = vmatprep.subr.bf16.mxu0 0
      %420 = vmatpush2.bf16.msra.mxu0 0
      %421 = vmatprep.subr.bf16.mxu0 0
      %422 = vmatpush2.bf16.msra.mxu0 0
      %423 = vmatprep.subr.bf16.mxu0 0
      %424 = vmatpush2.bf16.msra.mxu0 0
      %425 = vmatprep.subr.bf16.mxu0 0
      %426 = vmatpush2.bf16.msra.mxu0 0
      %427 = vmatprep.mubr.bf16.mxu0 0
      %428 = vmatmul.mubr.bf16.gmra.mxu0 %v381
      %v429 = vpop.f32.mrf.mxu0
      %v430 = vadd.f32 %v335, %v429
      %v431 = vpop.f32.mrf.mxu0
      %v432 = vpop.f32.mrf.mxu0
      %v433 = vadd.f32 %v338, %v432
      %v434 = vpop.f32.mrf.mxu0
      %435 = vmatprep.mubr.bf16.mxu0 0
      %436 = vmatmul.mubr.bf16.gmra.mxu0 %v384
      %v437 = vpop.f32.mrf.mxu0
      %v438 = vadd.f32 %v343, %v437
      %v439 = vpop.f32.mrf.mxu0
      %v440 = vpop.f32.mrf.mxu0
      %v441 = vadd.f32 %v346, %v440
      %v442 = vpop.f32.mrf.mxu0
      %443 = vmatprep.mubr.bf16.mxu0 0
      %444 = vmatmul.mubr.bf16.gmra.mxu0 %v387
      %v445 = vpop.f32.mrf.mxu0
      %v446 = vadd.f32 %v351, %v445
      %v447 = vpop.f32.mrf.mxu0
      %v448 = vpop.f32.mrf.mxu0
      %v449 = vadd.f32 %v354, %v448
      %v450 = vpop.f32.mrf.mxu0
      %451 = vmatprep.mubr.bf16.mxu0 0
      %452 = vmatmul.mubr.bf16.gmra.mxu0 %v390
      %v453 = vpop.f32.mrf.mxu0
      %v454 = vadd.f32 %v359, %v453
      %v455 = vpop.f32.mrf.mxu0
      %v456 = vpop.f32.mrf.mxu0
      %v457 = vadd.f32 %v362, %v456
      %v458 = vpop.f32.mrf.mxu0
      %459 = vdwg.mxu0
      %v460 = vld [vmem:[%s231 + $0x8] sm:$0xf]
      %v461 = vld [vmem:[%s231 + $0xc] sm:$0xf]
      %v462 = vld [vmem:[%s231 + $0x10] sm:$0xf]
      %v463 = vld [vmem:[%s231 + $0x14] sm:$0xf]
      %v464 = vld [vmem:[%s231 + $0x18] sm:$0xf]
      %v465 = vld [vmem:[%s231 + $0x1c] sm:$0xf]
      %v466 = vld [vmem:[%s231 + $0x20] sm:$0xf]
      %v467 = vld [vmem:[%s231 + $0x24] sm:$0xf]
      %s468 = scalar_lea.vmem %s1, 24
      %v469 = vld [vmem:[%s468] sm:$0xf]
      %v470 = vld [vmem:[%s468 + $0x4] sm:$0xf]
      %v471 = vld [vmem:[%s468 + $0x8] sm:$0xf]
      %v480 = vunpack.c.l.b16 %v460
      %v481 = vunpack.c.l.b16 %v461
      %v482 = vunpack.c.l.b16 %v462
      %v483 = vunpack.c.l.b16 %v463
      %v484 = vunpack.c.l.b16 %v464
      %v485 = vunpack.c.l.b16 %v465
      %v486 = vunpack.c.l.b16 %v466
      %v487 = vunpack.c.l.b16 %v467
      %v488 = vpack.c.b16 %v481, %v480
      %v489 = vpack.c.b16 %v483, %v482
      %v490 = vpack.c.b16 %v485, %v484
      %v491 = vpack.c.b16 %v487, %v486
      %v495 = vunpack.c.l.b16 %v469
      %v496 = vunpack.c.l.b16 %v470
      %v497 = vunpack.c.l.b16 %v471
      %v498 = vpack.c.b16 %v496, %v495
      %v499 = vpack.c.b16 %v497, %v497
      %v502 = vsel %vm283, %v488, 0
      %v505 = vsel %vm283, %v489, 0
      %v508 = vsel %vm283, %v490, 0
      %v511 = vsel %vm283, %v491, 0
      %v514 = vsel %vm296, %v499, 0
      %516 = vmatprep.subr.bf16.mxu0 0
      %517 = vmatpush1.bf16.msra.mxu0 0
      %518 = vmatprep.subr.bf16.mxu0 0
      %519 = vmatpush1.bf16.msra.mxu0 0
      %520 = vmatprep.subr.bf16.mxu0 0
      %521 = vmatpush1.bf16.msra.mxu0 0
      %522 = vmatprep.subr.bf16.mxu0 0
      %523 = vmatpush1.bf16.msra.mxu0 0
      %524 = vmatprep.subr.bf16.mxu0 0
      %525 = vmatpush1.bf16.msra.mxu0 0
      %526 = vmatprep.subr.bf16.mxu0 0
      %527 = vmatpush1.bf16.msra.mxu0 0
      %528 = vmatprep.subr.bf16.mxu0 0
      %529 = vmatpush1.bf16.msra.mxu0 %v514
      %530 = vmatprep.subr.bf16.mxu0 0
      %531 = vmatpush1.bf16.msra.mxu0 %v498
      %532 = vmatprep.subr.bf16.mxu0 0
      %533 = vmatpush2.bf16.msra.mxu0 0
      %534 = vmatprep.subr.bf16.mxu0 0
      %535 = vmatpush2.bf16.msra.mxu0 0
      %536 = vmatprep.subr.bf16.mxu0 0
      %537 = vmatpush2.bf16.msra.mxu0 0
      %538 = vmatprep.subr.bf16.mxu0 0
      %539 = vmatpush2.bf16.msra.mxu0 0
      %540 = vmatprep.subr.bf16.mxu0 0
      %541 = vmatpush2.bf16.msra.mxu0 0
      %542 = vmatprep.subr.bf16.mxu0 0
      %543 = vmatpush2.bf16.msra.mxu0 0
      %544 = vmatprep.subr.bf16.mxu0 0
      %545 = vmatpush2.bf16.msra.mxu0 0
      %546 = vmatprep.subr.bf16.mxu0 0
      %547 = vmatpush2.bf16.msra.mxu0 0
      %548 = vmatprep.mubr.bf16.mxu0 0
      %549 = vmatmul.mubr.bf16.gmra.mxu0 %v502
      %v550 = vpop.f32.mrf.mxu0
      %v551 = vadd.f32 0.0, %v550
      %v552 = vpop.f32.mrf.mxu0
      %v553 = vpop.f32.mrf.mxu0
      %v554 = vadd.f32 0.0, %v553
      %v555 = vpop.f32.mrf.mxu0
      %556 = vmatprep.mubr.bf16.mxu0 0
      %557 = vmatmul.mubr.bf16.gmra.mxu0 %v505
      %v558 = vpop.f32.mrf.mxu0
      %v559 = vadd.f32 0.0, %v558
      %v560 = vpop.f32.mrf.mxu0
      %v561 = vpop.f32.mrf.mxu0
      %v562 = vadd.f32 0.0, %v561
      %v563 = vpop.f32.mrf.mxu0
      %564 = vmatprep.mubr.bf16.mxu0 0
      %565 = vmatmul.mubr.bf16.gmra.mxu0 %v508
      %v566 = vpop.f32.mrf.mxu0
      %v567 = vadd.f32 0.0, %v566
      %v568 = vpop.f32.mrf.mxu0
      %v569 = vpop.f32.mrf.mxu0
      %v570 = vadd.f32 0.0, %v569
      %v571 = vpop.f32.mrf.mxu0
      %572 = vmatprep.mubr.bf16.mxu0 0
      %573 = vmatmul.mubr.bf16.gmra.mxu0 %v511
      %v574 = vpop.f32.mrf.mxu0
      %v575 = vadd.f32 0.0, %v574
      %v576 = vpop.f32.mrf.mxu0
      %v577 = vpop.f32.mrf.mxu0
      %v578 = vadd.f32 0.0, %v577
      %v579 = vpop.f32.mrf.mxu0
      %580 = vdwg.mxu0
      %v581 = vadd.f32 %v430, %v551
      %v582 = vadd.f32 %v433, %v554
      %v583 = vadd.f32 %v438, %v559
      %v584 = vadd.f32 %v441, %v562
      %v585 = vadd.f32 %v446, %v567
      %v586 = vadd.f32 %v449, %v570
      %v587 = vadd.f32 %v454, %v575
      %v588 = vadd.f32 %v457, %v578
      %v589 = vld [vmem:[%s2] sm:$0x1]
      %v591 = vlaneseq
      %v592 = vshrl.u32 %v591, 7
      %v593 = vsub.s32 0, %v592
      %v594 = vrot.slane %v589, %v593
      %v596 = vadd.f32 %v581, %v594
      %v597 = vadd.f32 %v582, %v594
      %v598 = vadd.f32 %v583, %v594
      %v599 = vadd.f32 %v584, %v594
      %v600 = vadd.f32 %v585, %v594
      %v601 = vadd.f32 %v586, %v594
      %v602 = vadd.f32 %v587, %v594
      %v603 = vadd.f32 %v588, %v594
      %p604 = scmp.eq.s32.totalorder %s20, 0
      %p605 = scmp.eq.s32.totalorder %s21, 0
      %p606 = pnand %p604, %p605
      %p607 = pneg %p606
      // Predicated region
      $region41: #{forward.6} parent=39 // pred_check
        _
      $region42: #{forward.6} parent=39 // pred_check_branch
        %609 = sbr.rel (%p606) target = $region44
      $region43: #{forward.6} parent=39 // pred_region
        %vm610 = vcmask 122880
        %611 = vst.msk [vmem:[#allocation2] sm:$0x1] %vm610, 0.0
        %612 = vst.msk [vmem:[#allocation3] sm:$0x1] %vm610, 0.0
      $region44: #{forward.6} parent=39 // pred_fallthru
        _
      // Predicated region
      $region45: #{forward.6} parent=39 // pred_check
        %p613 = pneg %p604
      $region46: #{forward.6} parent=39 // pred_check_branch
        %615 = sbr.rel (%p613) target = $region48
      $region47: #{forward.6} parent=39 // pred_region
        %v616 = vld [vmem:[#allocation2] sm:$0x1]
        %vm617 = vcmask 130048
        %v618 = vsel %vm617, %v596, 0.0
        %v619 = vsel %vm617, %v597, 0.0
        %v620 = vadd.f32 %v618, %v619
        %v621 = vsel %vm617, %v598, 0.0
        %v622 = vadd.f32 %v620, %v621
        %v623 = vsel %vm617, %v599, 0.0
        %v624 = vadd.f32 %v622, %v623
        %v625 = vsel %vm617, %v600, 0.0
        %v626 = vadd.f32 %v624, %v625
        %v627 = vsel %vm617, %v601, 0.0
        %v628 = vadd.f32 %v626, %v627
        %v629 = vsel %vm617, %v602, 0.0
        %v630 = vadd.f32 %v628, %v629
        %v631 = vsel %vm617, %v603, 0.0
        %v632 = vadd.f32 %v630, %v631
        %v633 = vrot.slane %v632, 4
        %v634 = vadd.f32 %v632, %v633
        %v635 = vrot.slane %v634, 2
        %v636 = vadd.f32 %v634, %v635
        %v637 = vrot.slane %v636, 1
        %v638 = vadd.f32 %v636, %v637
        %v639 = vadd.f32 %v616, %v638
        %vm640 = vcmask 122880
        %641 = vst.msk [vmem:[#allocation2] sm:$0x1] %vm640, %v639
        %v642 = vld [vmem:[#allocation3] sm:$0x1]
        %v643 = vmul.f32 %v596, %v596
        %v644 = vmul.f32 %v597, %v597
        %v645 = vmul.f32 %v598, %v598
        %v646 = vmul.f32 %v599, %v599
        %v647 = vmul.f32 %v600, %v600
        %v648 = vmul.f32 %v601, %v601
        %v649 = vmul.f32 %v602, %v602
        %v650 = vmul.f32 %v603, %v603
        %v651 = vsel %vm617, %v643, 0.0
        %v652 = vsel %vm617, %v644, 0.0
        %v653 = vadd.f32 %v651, %v652
        %v654 = vsel %vm617, %v645, 0.0
        %v655 = vadd.f32 %v653, %v654
        %v656 = vsel %vm617, %v646, 0.0
        %v657 = vadd.f32 %v655, %v656
        %v658 = vsel %vm617, %v647, 0.0
        %v659 = vadd.f32 %v657, %v658
        %v660 = vsel %vm617, %v648, 0.0
        %v661 = vadd.f32 %v659, %v660
        %v662 = vsel %vm617, %v649, 0.0
        %v663 = vadd.f32 %v661, %v662
        %v664 = vsel %vm617, %v650, 0.0
        %v665 = vadd.f32 %v663, %v664
        %v666 = vrot.slane %v665, 4
        %v667 = vadd.f32 %v665, %v666
        %v668 = vrot.slane %v667, 2
        %v669 = vadd.f32 %v667, %v668
        %v670 = vrot.slane %v669, 1
        %v671 = vadd.f32 %v669, %v670
        %v672 = vadd.f32 %v642, %v671
        %673 = vst.msk [vmem:[#allocation3] sm:$0x1] %vm640, %v672
      $region48: #{forward.6} parent=39 // pred_fallthru
        _
      %p674 = scmp.eq.s32.totalorder %s20, 1
      // Predicated region
      $region49: #{forward.6} parent=39 // pred_check
        %p675 = pneg %p674
      $region50: #{forward.6} parent=39 // pred_check_branch
        %677 = sbr.rel (%p675) target = $region52
      $region51: #{forward.6} parent=39 // pred_region
        %v678 = vld [vmem:[#allocation2] sm:$0x1]
        %v679 = vmul.f32 %v678, 0.0078125
        %v680 = vld [vmem:[#allocation3] sm:$0x1]
        %v681 = vmul.f32 %v680, 0.0078125
        %v682 = vmul.f32 %v679, %v679
        %v683 = vsub.f32 %v681, %v682
        %v684 = vmax.f32 %v683, 0.0
        %v685 = vadd.f32 %v684, 1e-05
        %v686 = vrsqrt.pop %v685
        %v687 = vld [vmem:[%s3] sm:$0x1]
        %v688 = vmul.f32 %v687, %v686
        %v689 = vld [vmem:[%s4] sm:$0x1]
        %v690 = vmul.f32 %v679, %v688
        %v691 = vsub.f32 %v689, %v690
        %v693 = vlaneseq
        %v694 = vshrl.u32 %v693, 7
        %v695 = vsub.s32 0, %v694
        %v696 = vrot.slane %v688, %v695
        %v698 = vmul.f32 %v596, %v696
        %v699 = vmul.f32 %v597, %v696
        %v700 = vmul.f32 %v598, %v696
        %v701 = vmul.f32 %v599, %v696
        %v702 = vmul.f32 %v600, %v696
        %v703 = vmul.f32 %v601, %v696
        %v704 = vmul.f32 %v602, %v696
        %v705 = vmul.f32 %v603, %v696
        %v707 = vlaneseq
        %v708 = vshrl.u32 %v707, 7
        %v709 = vsub.s32 0, %v708
        %v710 = vrot.slane %v691, %v709
        %v712 = vadd.f32 %v698, %v710
        %v713 = vadd.f32 %v699, %v710
        %v714 = vadd.f32 %v700, %v710
        %v715 = vadd.f32 %v701, %v710
        %v716 = vadd.f32 %v702, %v710
        %v717 = vadd.f32 %v703, %v710
        %v718 = vadd.f32 %v704, %v710
        %v719 = vadd.f32 %v705, %v710
        %v720 = vmax.f32 %v712, 0.0
        %v721 = vmax.f32 %v713, 0.0
        %v722 = vmax.f32 %v714, 0.0
        %v723 = vmax.f32 %v715, 0.0
        %v724 = vmax.f32 %v716, 0.0
        %v725 = vmax.f32 %v717, 0.0
        %v726 = vmax.f32 %v718, 0.0
        %v727 = vmax.f32 %v719, 0.0
        %vm728 = vcmask 130048
        %729 = vst.msk [vmem:[#allocation4] sm:$0xff] %vm728, %v720
        %730 = vst.msk [vmem:[#allocation4 + $0x8] sm:$0xff] %vm728, %v721
        %731 = vst.msk [vmem:[#allocation4 + $0x10] sm:$0xff] %vm728, %v722
        %732 = vst.msk [vmem:[#allocation4 + $0x18] sm:$0xff] %vm728, %v723
        %733 = vst.msk [vmem:[#allocation4 + $0x20] sm:$0xff] %vm728, %v724
        %734 = vst.msk [vmem:[#allocation4 + $0x28] sm:$0xff] %vm728, %v725
        %735 = vst.msk [vmem:[#allocation4 + $0x30] sm:$0xff] %vm728, %v726
        %736 = vst.msk [vmem:[#allocation4 + $0x38] sm:$0xff] %vm728, %v727
        %v737 = vld [vmem:[#allocation4] ss:$2 sm:$0xf]
        %s738 = scalar_lea.vmem [#allocation4], 1
        %v739 = vld [vmem:[%s738] ss:$2 sm:$0xf]
        %s740 = scalar_lea.vmem [#allocation4], 8
        %v741 = vld [vmem:[%s740] ss:$2 sm:$0xf]
        %s742 = scalar_lea.vmem [#allocation4], 9
        %v743 = vld [vmem:[%s742] ss:$2 sm:$0xf]
        %v744 = vmax.f32 %v737, %v739
        %v745 = vmax.f32 %v741, %v743
        %v746 = vmax.f32 %v744, %v745
        %v747 = vpack.c.bf16 %v746, %v746
        %vm748 = vcmask 123904
        %749 = vst.msk [vmem:[%s236] sm:$0x3] %vm748, %v747
        %s750 = scalar_lea.vmem [#allocation4], 16
        %v751 = vld [vmem:[%s750] ss:$2 sm:$0xf]
        %s752 = scalar_lea.vmem [#allocation4], 17
        %v753 = vld [vmem:[%s752] ss:$2 sm:$0xf]
        %s754 = scalar_lea.vmem [#allocation4], 24
        %v755 = vld [vmem:[%s754] ss:$2 sm:$0xf]
        %s756 = scalar_lea.vmem [#allocation4], 25
        %v757 = vld [vmem:[%s756] ss:$2 sm:$0xf]
        %v758 = vmax.f32 %v751, %v753
        %v759 = vmax.f32 %v755, %v757
        %v760 = vmax.f32 %v758, %v759
        %v761 = vpack.c.bf16 %v760, %v760
        %v763 = vunpack.c.l.b16 %v761
        %v764 = vpack.c.b16 %v763, %v763
        %v765 = vrot.slane %v764, 6
        %vm767 = vcmask 125954
        %768 = vst.msk [vmem:[%s236] sm:$0xc] %vm767, %v765
        %s769 = scalar_lea.vmem [#allocation4], 32
        %v770 = vld [vmem:[%s769] ss:$2 sm:$0xf]
        %s771 = scalar_lea.vmem [#allocation4], 33
        %v772 = vld [vmem:[%s771] ss:$2 sm:$0xf]
        %s773 = scalar_lea.vmem [#allocation4], 40
        %v774 = vld [vmem:[%s773] ss:$2 sm:$0xf]
        %s775 = scalar_lea.vmem [#allocation4], 41
        %v776 = vld [vmem:[%s775] ss:$2 sm:$0xf]
        %v777 = vmax.f32 %v770, %v772
        %v778 = vmax.f32 %v774, %v776
        %v779 = vmax.f32 %v777, %v778
        %v780 = vpack.c.bf16 %v779, %v779
        %781 = vst.msk [vmem:[%s236 + $0x4] sm:$0x3] %vm748, %v780
        %s782 = scalar_lea.vmem [#allocation4], 48
        %v783 = vld [vmem:[%s782] ss:$2 sm:$0xf]
        %s784 = scalar_lea.vmem [#allocation4], 49
        %v785 = vld [vmem:[%s784] ss:$2 sm:$0xf]
        %s786 = scalar_lea.vmem [#allocation4], 56
        %v787 = vld [vmem:[%s786] ss:$2 sm:$0xf]
        %s788 = scalar_lea.vmem [#allocation4], 57
        %v789 = vld [vmem:[%s788] ss:$2 sm:$0xf]
        %v790 = vmax.f32 %v783, %v785
        %v791 = vmax.f32 %v787, %v789
        %v792 = vmax.f32 %v790, %v791
        %v793 = vpack.c.bf16 %v792, %v792
        %v795 = vunpack.c.l.b16 %v793
        %v796 = vpack.c.b16 %v795, %v795
        %v797 = vrot.slane %v796, 6
        %799 = vst.msk [vmem:[%s236 + $0x4] sm:$0xc] %vm767, %v797
      $region52: #{forward.6} parent=39 // pred_fallthru
        _
      %p800 = scmp.lt.s32.totalorder %s21, 1
      %s801 = scalar_select %p800, %s21, 1
      %s802 = smul.addr %s801, 2
      %s803 = smul.addr %s802, 4
      %s804 = scalar_lea.vmem %s5, %s803
      // Predicated region
      $region53: #{forward.6} parent=39 // pred_check
        %p805 = pneg %p156
      $region54: #{forward.6} parent=39 // pred_check_branch
        %807 = sbr.rel (%p805) target = $region56
      $region55: #{forward.6} parent=39 // pred_region
        _
      $region56: #{forward.6} parent=39 // pred_fallthru
        _
    $region40: #{forward.6} parent=5 // pred_fallthru
      _
    %p808 = scmp.le.s32.totalorder 2, %s11
    // Predicated region
    $region57: #{forward.6} parent=5 // pred_check
      %p809 = pneg %p808
    $region58: #{forward.6} parent=5 // pred_check_branch
      %811 = sbr.rel (%p809) target = $region60
    $region59: #{forward.6} parent=5 // pred_region
      %s812 = ssub.s32 %s11, 2
      // Predicated region
      $region61: #{forward.6} parent=59 // pred_check
        %p813 = pneg %p162
      $region62: #{forward.6} parent=59 // pred_check_branch
        %815 = sbr.rel (%p813) target = $region64
      $region63: #{forward.6} parent=59 // pred_region
        %p816 = scmp.lt.s32.totalorder %s23, 1
        %s817 = scalar_select %p816, %s23, 1
        %s818 = smul.addr %s817, 2
        %s819 = smul.addr %s818, 4
        %s820 = scalar_lea.vmem %s5, %s819
      $region64: #{forward.6} parent=59 // pred_fallthru
        _
    $region60: #{forward.6} parent=5 // pred_fallthru
      _
  $region6: #{forward.6} parent=0 // loop_footer
    %s15 = sadd.s32 1, %s11
  $region7: #{forward.6} parent=0 // loop_footer_branch
    %10 = sbr.rel target = $region3
  $region8: #{forward.6} parent=0 // loop_exit
    _

// kernel: forward.7
$region0: #{forward.7}
  #allocation0 [shape = 'u32[]', space=smem, size = 0x4, offset = 0x4, fixed_abs, tag = 'smem constant byte address 0x4 - core index']
  #allocation1 [shape = 'u32[144,128]{1,0:T(1,128)}', space=vmem, size = 0x12000, scoped, tag = 'internal scratch']
  #allocation2 [shape = 'f32[1,32]{1,0:T(1,128)}', space=vmem, size = 0x200, scoped, tag = 'scratch operand']
  #allocation3 [shape = 'f32[1,32]{1,0:T(1,128)}', space=vmem, size = 0x200, scoped, tag = 'scratch operand']
  #allocation4 [shape = 'f32[16,32]{1,0:T(8,128)}', space=vmem, size = 0x2000, scoped, tag = 'scratch operand']
  %s0 = inlined_call_operand.vmem [shape: bf16[2,24,48], index: 0, kind: input, shape index: {}]
  %s1 = inlined_call_operand.vmem [shape: bf16[3,48,32], index: 1, kind: input, shape index: {}]
  %s2 = inlined_call_operand.vmem [shape: f32[1,32], index: 2, kind: input, shape index: {}]
  %s3 = inlined_call_operand.vmem [shape: f32[1,32], index: 3, kind: input, shape index: {}]
  %s4 = inlined_call_operand.vmem [shape: f32[1,32], index: 4, kind: input, shape index: {}]
  %s5 = inlined_call_operand.vmem [shape: bf16[2,4,32], index: 5, kind: output, shape index: {}]
  %s6 = sld [smem:[#allocation0]]
  $region65: #{forward.7} parent=0
    _
  %s8 = ssub.s32 1, %s6
  %s9 = scalar_select 0, %s8, %s6
  loop: start=0, step=1, limit=6
  $region2: #{forward.7} parent=0 // loop_pre_header
    _
  $region3: #{forward.7} parent=0 // loop_header
    %s11 = sphi 0, %s15
    %p12 = scmp.ge.s32.totalorder %s11, 6
    %s18 = sphi 0, %s30
    %s19 = sphi 0, %s26
    %s20 = sphi 0, %s18
    %s21 = sphi 0, %s19
    %s22 = sphi 0, %s20
    %s23 = sphi 0, %s21
    %s33 = sphi 0, %s35
    %s36 = sphi 0, %s33
    %s37 = sphi 0, %s36
    %s53 = sphi 0, %s37
    %s57 = sphi 0, %s57
    %s59 = sphi 0, %s57
    %s60 = sphi 0, %s59
    %s74 = sphi 0, %s60
    %s78 = sphi 0, %s78
    %s80 = sphi 0, %s78
    %s81 = sphi 0, %s80
    %s95 = sphi 0, %s81
    %s99 = sphi 0, %s99
    %s101 = sphi 0, %s99
    %s102 = sphi 0, %s101
    %s116 = sphi 0, %s102
    %s120 = sphi 0, %s120
    %s122 = sphi 0, %s120
    %s123 = sphi 0, %s122
    %s137 = sphi 0, %s123
    %s143 = sphi 0, %s145
    %s146 = sphi 0, %s143
    %s147 = sphi 0, %s146
    %s163 = sphi 0, %s147
  $region4: #{forward.7} parent=0 // loop_header_branch
    %14 = sbr.rel (%p12) target = $region8
  $region5: #{forward.7} parent=0 // loop_body
    %s16 = ssub.s32 %s11, 1
    %s17 = ssub.s32 %s11, 2
    %s24 = sadd.s32 1, %s19
    %p25 = scmp.ge.s32.totalorder %s24, 2
    %s26 = scalar_select %p25, 0, %s24
    %s27 = sadd.s32 1, %s18
    %s28 = scalar_select %p25, %s27, %s18
    %p29 = scmp.ge.s32.totalorder %s28, 2
    %s30 = scalar_select %p29, 0, %s28
    %s31 = ssub.s32 %s19, %s26
    %p32 = scmp.eq.s32.totalorder %s31, 0
    %s34 = sadd.s32 %s33, 1
    %s35 = scalar_select %p32, %s33, %s34
    %p38 = pneg %p32
    %p39 = scmp.eq.s32.totalorder %s11, 3
    %p40 = por %p38, %p39
    %p41 = scmp.ne.s32.totalorder %s33, %s36
    %p42 = scmp.eq.s32.totalorder %s11, 0
    %p43 = por %p41, %p42
    %p44 = scmp.ne.s32.totalorder %s33, %s36
    %p45 = scmp.eq.s32.totalorder %s16, 3
    %p46 = por %p44, %p45
    %p47 = scmp.ne.s32.totalorder %s36, %s37
    %p48 = scmp.eq.s32.totalorder %s16, 0
    %p49 = por %p47, %p48
    %p50 = scmp.ne.s32.totalorder %s36, %s37
    %p51 = scmp.eq.s32.totalorder %s17, 3
    %p52 = por %p50, %p51
    %p54 = scmp.ne.s32.totalorder %s37, %s53
    %p55 = scmp.eq.s32.totalorder %s17, 0
    %p56 = por %p54, %p55
    %s58 = sadd.s32 %s57, 1
    %p61 = scmp.eq.s32.totalorder %s11, 3
    %p62 = scmp.ne.s32.totalorder %s57, %s59
    %p63 = scmp.eq.s32.totalorder %s11, 0
    %p64 = por %p62, %p63
    %p65 = scmp.ne.s32.totalorder %s57, %s59
    %p66 = scmp.eq.s32.totalorder %s16, 3
    %p67 = por %p65, %p66
    %p68 = scmp.ne.s32.totalorder %s59, %s60
    %p69 = scmp.eq.s32.totalorder %s16, 0
    %p70 = por %p68, %p69
    %p71 = scmp.ne.s32.totalorder %s59, %s60
    %p72 = scmp.eq.s32.totalorder %s17, 3
    %p73 = por %p71, %p72
    %p75 = scmp.ne.s32.totalorder %s60, %s74
    %p76 = scmp.eq.s32.totalorder %s17, 0
    %p77 = por %p75, %p76
    %s79 = sadd.s32 %s78, 1
    %p82 = scmp.eq.s32.totalorder %s11, 3
    %p83 = scmp.ne.s32.totalorder %s78, %s80
    %p84 = scmp.eq.s32.totalorder %s11, 0
    %p85 = por %p83, %p84
    %p86 = scmp.ne.s32.totalorder %s78, %s80
    %p87 = scmp.eq.s32.totalorder %s16, 3
    %p88 = por %p86, %p87
    %p89 = scmp.ne.s32.totalorder %s80, %s81
    %p90 = scmp.eq.s32.totalorder %s16, 0
    %p91 = por %p89, %p90
    %p92 = scmp.ne.s32.totalorder %s80, %s81
    %p93 = scmp.eq.s32.totalorder %s17, 3
    %p94 = por %p92, %p93
    %p96 = scmp.ne.s32.totalorder %s81, %s95
    %p97 = scmp.eq.s32.totalorder %s17, 0
    %p98 = por %p96, %p97
    %s100 = sadd.s32 %s99, 1
    %p103 = scmp.eq.s32.totalorder %s11, 3
    %p104 = scmp.ne.s32.totalorder %s99, %s101
    %p105 = scmp.eq.s32.totalorder %s11, 0
    %p106 = por %p104, %p105
    %p107 = scmp.ne.s32.totalorder %s99, %s101
    %p108 = scmp.eq.s32.totalorder %s16, 3
    %p109 = por %p107, %p108
    %p110 = scmp.ne.s32.totalorder %s101, %s102
    %p111 = scmp.eq.s32.totalorder %s16, 0
    %p112 = por %p110, %p111
    %p113 = scmp.ne.s32.totalorder %s101, %s102
    %p114 = scmp.eq.s32.totalorder %s17, 3
    %p115 = por %p113, %p114
    %p117 = scmp.ne.s32.totalorder %s102, %s116
    %p118 = scmp.eq.s32.totalorder %s17, 0
    %p119 = por %p117, %p118
    %s121 = sadd.s32 %s120, 1
    %p124 = scmp.eq.s32.totalorder %s11, 3
    %p125 = scmp.ne.s32.totalorder %s120, %s122
    %p126 = scmp.eq.s32.totalorder %s11, 0
    %p127 = por %p125, %p126
    %p128 = scmp.ne.s32.totalorder %s120, %s122
    %p129 = scmp.eq.s32.totalorder %s16, 3
    %p130 = por %p128, %p129
    %p131 = scmp.ne.s32.totalorder %s122, %s123
    %p132 = scmp.eq.s32.totalorder %s16, 0
    %p133 = por %p131, %p132
    %p134 = scmp.ne.s32.totalorder %s122, %s123
    %p135 = scmp.eq.s32.totalorder %s17, 3
    %p136 = por %p134, %p135
    %p138 = scmp.ne.s32.totalorder %s123, %s137
    %p139 = scmp.eq.s32.totalorder %s17, 0
    %p140 = por %p138, %p139
    %s141 = ssub.s32 %s19, %s26
    %p142 = scmp.eq.s32.totalorder %s141, 0
    %s144 = sadd.s32 %s143, 1
    %s145 = scalar_select %p142, %s143, %s144
    %p148 = pneg %p142
    %p149 = scmp.eq.s32.totalorder %s11, 3
    %p150 = por %p148, %p149
    %p151 = scmp.ne.s32.totalorder %s143, %s146
    %p152 = scmp.eq.s32.totalorder %s11, 0
    %p153 = por %p151, %p152
    %p154 = scmp.ne.s32.totalorder %s143, %s146
    %p155 = scmp.eq.s32.totalorder %s16, 3
    %p156 = por %p154, %p155
    %p157 = scmp.ne.s32.totalorder %s146, %s147
    %p158 = scmp.eq.s32.totalorder %s16, 0
    %p159 = por %p157, %p158
    %p160 = scmp.ne.s32.totalorder %s146, %s147
    %p161 = scmp.eq.s32.totalorder %s17, 3
    %p162 = por %p160, %p161
    %p164 = scmp.ne.s32.totalorder %s147, %s163
    %p165 = scmp.eq.s32.totalorder %s17, 0
    %p166 = por %p164, %p165
    %p167 = scmp.le.s32.totalorder 1, %s11
    %p168 = scmp.lt.s32.totalorder %s11, 5
    %p169 = pnand %p167, %p168
    %p170 = pneg %p169
    // Predicated region
    $region9: #{forward.7} parent=5 // pred_check
      _
    $region10: #{forward.7} parent=5 // pred_check_branch
      %172 = sbr.rel (%p169) target = $region12
    $region11: #{forward.7} parent=5 // pred_region
      %s173 = ssub.s32 %s11, 1
      // Predicated region
      $region13: #{forward.7} parent=11 // pred_check
        %p174 = pneg %p70
      $region14: #{forward.7} parent=11 // pred_check_branch
        %176 = sbr.rel (%p174) target = $region16
      $region15: #{forward.7} parent=11 // pred_region
        _
      $region16: #{forward.7} parent=11 // pred_fallthru
        _
      // Predicated region
      $region17: #{forward.7} parent=11 // pred_check
        %p177 = pneg %p91
      $region18: #{forward.7} parent=11 // pred_check_branch
        %179 = sbr.rel (%p177) target = $region20
      $region19: #{forward.7} parent=11 // pred_region
        _
      $region20: #{forward.7} parent=11 // pred_fallthru
        _
      // Predicated region
      $region21: #{forward.7} parent=11 // pred_check
        %p180 = pneg %p112
      $region22: #{forward.7} parent=11 // pred_check_branch
        %182 = sbr.rel (%p180) target = $region24
      $region23: #{forward.7} parent=11 // pred_region
        _
      $region24: #{forward.7} parent=11 // pred_fallthru
        _
      // Predicated region
      $region25: #{forward.7} parent=11 // pred_check
        %p183 = pneg %p133
      $region26: #{forward.7} parent=11 // pred_check_branch
        %185 = sbr.rel (%p183) target = $region28
      $region27: #{forward.7} parent=11 // pred_region
        _
      $region28: #{forward.7} parent=11 // pred_fallthru
        _
    $region12: #{forward.7} parent=5 // pred_fallthru
      _
    %p186 = scmp.lt.s32.totalorder %s11, 4
    // Predicated region
    $region29: #{forward.7} parent=5 // pred_check
      %p187 = pneg %p186
    $region30: #{forward.7} parent=5 // pred_check_branch
      %189 = sbr.rel (%p187) target = $region32
    $region31: #{forward.7} parent=5 // pred_region
      // Predicated region
      $region33: #{forward.7} parent=31 // pred_check
        %p190 = pneg %p43
      $region34: #{forward.7} parent=31 // pred_check_branch
        %192 = sbr.rel (%p190) target = $region36
      $region35: #{forward.7} parent=31 // pred_region
        %p193 = scmp.lt.s32.totalorder %s19, 1
        %s194 = scalar_select %p193, %s19, 1
        %s195 = smul.addr %s194, 3
        %s196 = smul.addr %s195, 4
        %s197 = scalar_lea.vmem %s0, %s196
      $region36: #{forward.7} parent=31 // pred_fallthru
        _
    $region32: #{forward.7} parent=5 // pred_fallthru
      _
    %p198 = scmp.le.s32.totalorder 1, %s11
    %p199 = scmp.lt.s32.totalorder %s11, 5
    %p200 = pnand %p198, %p199
    %p201 = pneg %p200
    // Predicated region
    $region37: #{forward.7} parent=5 // pred_check
      _
    $region38: #{forward.7} parent=5 // pred_check_branch
      %203 = sbr.rel (%p200) target = $region40
    $region39: #{forward.7} parent=5 // pred_region
      %s204 = ssub.s32 %s11, 1
      %p205 = scmp.lt.s32.totalorder %s21, 1
      %s206 = scalar_select %p205, %s21, 1
      %s207 = smul.addr %s206, 3
      %s208 = smul.addr %s207, 4
      %s209 = scalar_lea.vmem %s0, %s208
      %p210 = pneg %p49
      %p211 = pneg %p46
      %p212 = pneg %p70
      %p213 = pneg %p67
      %p214 = pneg %p91
      %p215 = pneg %p88
      %p216 = pneg %p112
      %p217 = pneg %p109
      %p218 = pneg %p133
      %p219 = pneg %p130
      %p220 = pneg %p159
      %p221 = pneg %p156
      %p222 = scmp.lt.s32.totalorder %s21, 1
      %s223 = scalar_select %p222, %s21, 1
      %s224 = smul.addr %s223, 2
      %s225 = scalar_lea.vmem %s5, %s224
      %p226 = scmp.lt.s32.totalorder %s21, 1
      %s227 = scalar_select %p226, %s21, 1
      %s228 = smul.addr %s227, 3
      %s229 = smul.addr %s228, 4
      %s230 = scalar_lea.vmem %s0, %s229
      %p231 = scmp.lt.s32.totalorder %s21, 1
      %s232 = scalar_select %p231, %s21, 1
      %s233 = smul.addr %s232, 2
      %s234 = scalar_lea.vmem %s5, %s233
      %v236 = vld [vmem:[%s230] sm:$0xf]
      %v237 = vld [vmem:[%s230 + $0x4] sm:$0xf]
      %v238 = vld [vmem:[%s1] sm:$0xf]
      %v239 = vld [vmem:[%s1 + $0x4] sm:$0xf]
      %v240 = vld [vmem:[%s1 + $0x8] sm:$0xf]
      %v241 = vld [vmem:[%s1 + $0xc] sm:$0xf]
      %v242 = vld [vmem:[%s1 + $0x10] sm:$0xf]
      %v243 = vld [vmem:[%s1 + $0x14] sm:$0xf]
      %v244 = vld [vmem:[%s230] sm:$0xc]
      %v245 = vld [vmem:[%s230 + $0x8] sm:$0x3]
      %s246 = scalar_lea.vmem %s1, 24
      %v247 = vld [vmem:[%s246] sm:$0xf]
      %v248 = vld [vmem:[%s246 + $0x4] sm:$0xf]
      %v249 = vld [vmem:[%s246 + $0x8] sm:$0xf]
      %v250 = vld [vmem:[%s246 + $0xc] sm:$0xf]
      %v251 = vld [vmem:[%s246 + $0x10] sm:$0xf]
      %v252 = vld [vmem:[%s246 + $0x14] sm:$0xf]
      %v256 = vunpack.c.l.b16 %v244
      %v257 = vunpack.c.l.b16 %v237
      %v258 = vunpack.c.l.b16 %v245
      %v259 = vpack.c.b16 %v257, %v256
      %v260 = vpack.c.b16 %v258, %v258
      %vm261 = vcmask 1045504
      %v262 = vrot.slane %v259, 2
      %v263 = vrot.slane %v260, 2
      %v264 = vsel %vm261, %v262, %v263
      %v271 = vunpack.c.l.b16 %v247
      %v272 = vunpack.c.l.b16 %v248
      %v273 = vunpack.c.l.b16 %v249
      %v274 = vunpack.c.l.b16 %v250
      %v275 = vunpack.c.l.b16 %v251
      %v276 = vunpack.c.l.b16 %v252
      %v277 = vpack.c.b16 %v272, %v271
      %v278 = vpack.c.b16 %v274, %v273
      %v279 = vpack.c.b16 %v276, %v275
      %vm283 = vcmask 392192
      %v285 = vsel %vm283, %v264, 0
      %287 = vmatprep.subr.bf16.mxu0 0
      %288 = vmatpush1.bf16.msra.mxu0 0
      %289 = vmatprep.subr.bf16.mxu0 0
      %290 = vmatpush1.bf16.msra.mxu0 0
      %291 = vmatprep.subr.bf16.mxu0 0
      %292 = vmatpush1.bf16.msra.mxu0 0
      %293 = vmatprep.subr.bf16.mxu0 0
      %294 = vmatpush1.bf16.msra.mxu0 0
      %295 = vmatprep.subr.bf16.mxu0 0
      %296 = vmatpush1.bf16.msra.mxu0 0
      %297 = vmatprep.subr.bf16.mxu0 0
      %298 = vmatpush1.bf16.msra.mxu0 %v279
      %299 = vmatprep.subr.bf16.mxu0 0
      %300 = vmatpush1.bf16.msra.mxu0 %v278
      %301 = vmatprep.subr.bf16.mxu0 0
      %302 = vmatpush1.bf16.msra.mxu0 %v277
      %303 = vmatprep.subr.bf16.mxu0 0
      %304 = vmatpush2.bf16.msra.mxu0 0
      %305 = vmatprep.subr.bf16.mxu0 0
      %306 = vmatpush2.bf16.msra.mxu0 0
      %307 = vmatprep.subr.bf16.mxu0 0
      %308 = vmatpush2.bf16.msra.mxu0 0
      %309 = vmatprep.subr.bf16.mxu0 0
      %310 = vmatpush2.bf16.msra.mxu0 0
      %311 = vmatprep.subr.bf16.mxu0 0
      %312 = vmatpush2.bf16.msra.mxu0 0
      %313 = vmatprep.subr.bf16.mxu0 0
      %314 = vmatpush2.bf16.msra.mxu0 0
      %315 = vmatprep.subr.bf16.mxu0 0
      %316 = vmatpush2.bf16.msra.mxu0 0
      %317 = vmatprep.subr.bf16.mxu0 0
      %318 = vmatpush2.bf16.msra.mxu0 0
      %319 = vmatprep.mubr.bf16.mxu0 0
      %320 = vmatmul.mubr.bf16.gmra.mxu0 %v285
      %v321 = vpop.f32.mrf.mxu0
      %v322 = vadd.f32 0.0, %v321
      %v323 = vpop.f32.mrf.mxu0
      %v324 = vpop.f32.mrf.mxu0
      %v325 = vadd.f32 0.0, %v324
      %v326 = vpop.f32.mrf.mxu0
      %327 = vdwg.mxu0
      %v329 = vunpack.c.l.b16 %v236
      %v330 = vpack.c.b16 %v257, %v329
      %v337 = vunpack.c.l.b16 %v238
      %v338 = vunpack.c.l.b16 %v239
      %v339 = vunpack.c.l.b16 %v240
      %v340 = vunpack.c.l.b16 %v241
      %v341 = vunpack.c.l.b16 %v242
      %v342 = vunpack.c.l.b16 %v243
      %v343 = vpack.c.b16 %v338, %v337
      %v344 = vpack.c.b16 %v340, %v339
      %v345 = vpack.c.b16 %v342, %v341
      %v350 = vsel %vm283, %v330, 0
      %352 = vmatprep.subr.bf16.mxu0 0
      %353 = vmatpush1.bf16.msra.mxu0 0
      %354 = vmatprep.subr.bf16.mxu0 0
      %355 = vmatpush1.bf16.msra.mxu0 0
      %356 = vmatprep.subr.bf16.mxu0 0
      %357 = vmatpush1.bf16.msra.mxu0 0
      %358 = vmatprep.subr.bf16.mxu0 0
      %359 = vmatpush1.bf16.msra.mxu0 0
      %360 = vmatprep.subr.bf16.mxu0 0
      %361 = vmatpush1.bf16.msra.mxu0 0
      %362 = vmatprep.subr.bf16.mxu0 0
      %363 = vmatpush1.bf16.msra.mxu0 %v345
      %364 = vmatprep.subr.bf16.mxu0 0
      %365 = vmatpush1.bf16.msra.mxu0 %v344
      %366 = vmatprep.subr.bf16.mxu0 0
      %367 = vmatpush1.bf16.msra.mxu0 %v343
      %368 = vmatprep.subr.bf16.mxu0 0
      %369 = vmatpush2.bf16.msra.mxu0 0
      %370 = vmatprep.subr.bf16.mxu0 0
      %371 = vmatpush2.bf16.msra.mxu0 0
      %372 = vmatprep.subr.bf16.mxu0 0
      %373 = vmatpush2.bf16.msra.mxu0 0
      %374 = vmatprep.subr.bf16.mxu0 0
      %375 = vmatpush2.bf16.msra.mxu0 0
      %376 = vmatprep.subr.bf16.mxu0 0
      %377 = vmatpush2.bf16.msra.mxu0 0
      %378 = vmatprep.subr.bf16.mxu0 0
      %379 = vmatpush2.bf16.msra.mxu0 0
      %380 = vmatprep.subr.bf16.mxu0 0
      %381 = vmatpush2.bf16.msra.mxu0 0
      %382 = vmatprep.subr.bf16.mxu0 0
      %383 = vmatpush2.bf16.msra.mxu0 0
      %384 = vmatprep.mubr.bf16.mxu0 0
      %385 = vmatmul.mubr.bf16.gmra.mxu0 %v350
      %v386 = vpop.f32.mrf.mxu0
      %v387 = vadd.f32 %v322, %v386
      %v388 = vpop.f32.mrf.mxu0
      %v389 = vpop.f32.mrf.mxu0
      %v390 = vadd.f32 %v325, %v389
      %v391 = vpop.f32.mrf.mxu0
      %392 = vdwg.mxu0
      %v393 = vld [vmem:[%s230 + $0x8] sm:$0xf]
      %s394 = scalar_lea.vmem %s1, 48
      %v395 = vld [vmem:[%s394] sm:$0xf]
      %v396 = vld [vmem:[%s394 + $0x4] sm:$0xf]
      %v397 = vld [vmem:[%s394 + $0x8] sm:$0xf]
      %v398 = vld [vmem:[%s394 + $0xc] sm:$0xf]
      %v399 = vld [vmem:[%s394 + $0x10] sm:$0xf]
      %v400 = vld [vmem:[%s394 + $0x14] sm:$0xf]
      %v402 = vunpack.c.l.b16 %v393
      %v403 = vpack.c.b16 %v402, %v257
      %v410 = vunpack.c.l.b16 %v395
      %v411 = vunpack.c.l.b16 %v396
      %v412 = vunpack.c.l.b16 %v397
      %v413 = vunpack.c.l.b16 %v398
      %v414 = vunpack.c.l.b16 %v399
      %v415 = vunpack.c.l.b16 %v400
      %v416 = vpack.c.b16 %v411, %v410
      %v417 = vpack.c.b16 %v413, %v412
      %v418 = vpack.c.b16 %v415, %v414
      %v423 = vsel %vm283, %v403, 0
      %425 = vmatprep.subr.bf16.mxu0 0
      %426 = vmatpush1.bf16.msra.mxu0 0
      %427 = vmatprep.subr.bf16.mxu0 0
      %428 = vmatpush1.bf16.msra.mxu0 0
      %429 = vmatprep.subr.bf16.mxu0 0
      %430 = vmatpush1.bf16.msra.mxu0 0
      %431 = vmatprep.subr.bf16.mxu0 0
      %432 = vmatpush1.bf16.msra.mxu0 0
      %433 = vmatprep.subr.bf16.mxu0 0
      %434 = vmatpush1.bf16.msra.mxu0 0
      %435 = vmatprep.subr.bf16.mxu0 0
      %436 = vmatpush1.bf16.msra.mxu0 %v418
      %437 = vmatprep.subr.bf16.mxu0 0
      %438 = vmatpush1.bf16.msra.mxu0 %v417
      %439 = vmatprep.subr.bf16.mxu0 0
      %440 = vmatpush1.bf16.msra.mxu0 %v416
      %441 = vmatprep.subr.bf16.mxu0 0
      %442 = vmatpush2.bf16.msra.mxu0 0
      %443 = vmatprep.subr.bf16.mxu0 0
      %444 = vmatpush2.bf16.msra.mxu0 0
      %445 = vmatprep.subr.bf16.mxu0 0
      %446 = vmatpush2.bf16.msra.mxu0 0
      %447 = vmatprep.subr.bf16.mxu0 0
      %448 = vmatpush2.bf16.msra.mxu0 0
      %449 = vmatprep.subr.bf16.mxu0 0
      %450 = vmatpush2.bf16.msra.mxu0 0
      %451 = vmatprep.subr.bf16.mxu0 0
      %452 = vmatpush2.bf16.msra.mxu0 0
      %453 = vmatprep.subr.bf16.mxu0 0
      %454 = vmatpush2.bf16.msra.mxu0 0
      %455 = vmatprep.subr.bf16.mxu0 0
      %456 = vmatpush2.bf16.msra.mxu0 0
      %457 = vmatprep.mubr.bf16.mxu0 0
      %458 = vmatmul.mubr.bf16.gmra.mxu0 %v423
      %v459 = vpop.f32.mrf.mxu0
      %v460 = vadd.f32 0.0, %v459
      %v461 = vpop.f32.mrf.mxu0
      %v462 = vpop.f32.mrf.mxu0
      %v463 = vadd.f32 0.0, %v462
      %v464 = vpop.f32.mrf.mxu0
      %465 = vdwg.mxu0
      %v466 = vadd.f32 %v387, %v460
      %v467 = vadd.f32 %v390, %v463
      %v468 = vld [vmem:[%s2] sm:$0x1]
      %v470 = vlaneseq
      %v471 = vshrl.u32 %v470, 7
      %v472 = vsub.s32 0, %v471
      %v473 = vrot.slane %v468, %v472
      %v475 = vadd.f32 %v466, %v473
      %v476 = vadd.f32 %v467, %v473
      %p477 = scmp.eq.s32.totalorder %s20, 0
      %p478 = scmp.eq.s32.totalorder %s21, 0
      %p479 = pnand %p477, %p478
      %p480 = pneg %p479
      // Predicated region
      $region41: #{forward.7} parent=39 // pred_check
        _
      $region42: #{forward.7} parent=39 // pred_check_branch
        %482 = sbr.rel (%p479) target = $region44
      $region43: #{forward.7} parent=39 // pred_region
        %vm483 = vcmask 253952
        %484 = vst.msk [vmem:[#allocation2] sm:$0x1] %vm483, 0.0
        %485 = vst.msk [vmem:[#allocation3] sm:$0x1] %vm483, 0.0
      $region44: #{forward.7} parent=39 // pred_fallthru
        _
      // Predicated region
      $region45: #{forward.7} parent=39 // pred_check
        %p486 = pneg %p477
      $region46: #{forward.7} parent=39 // pred_check_branch
        %488 = sbr.rel (%p486) target = $region48
      $region47: #{forward.7} parent=39 // pred_region
        %v489 = vld [vmem:[#allocation2] sm:$0x1]
        %vm490 = vcmask 261120
        %v491 = vsel %vm490, %v475, 0.0
        %v492 = vsel %vm490, %v476, 0.0
        %v493 = vadd.f32 %v491, %v492
        %v494 = vrot.slane %v493, 4
        %v495 = vadd.f32 %v493, %v494
        %v496 = vrot.slane %v495, 2
        %v497 = vadd.f32 %v495, %v496
        %v498 = vrot.slane %v497, 1
        %v499 = vadd.f32 %v497, %v498
        %v500 = vadd.f32 %v489, %v499
        %vm501 = vcmask 253952
        %502 = vst.msk [vmem:[#allocation2] sm:$0x1] %vm501, %v500
        %v503 = vld [vmem:[#allocation3] sm:$0x1]
        %v504 = vmul.f32 %v475, %v475
        %v505 = vmul.f32 %v476, %v476
        %v506 = vsel %vm490, %v504, 0.0
        %v507 = vsel %vm490, %v505, 0.0
        %v508 = vadd.f32 %v506, %v507
        %v509 = vrot.slane %v508, 4
        %v510 = vadd.f32 %v508, %v509
        %v511 = vrot.slane %v510, 2
        %v512 = vadd.f32 %v510, %v511
        %v513 = vrot.slane %v512, 1
        %v514 = vadd.f32 %v512, %v513
        %v515 = vadd.f32 %v503, %v514
        %516 = vst.msk [vmem:[#allocation3] sm:$0x1] %vm501, %v515
      $region48: #{forward.7} parent=39 // pred_fallthru
        _
      %p517 = scmp.eq.s32.totalorder %s20, 1
      // Predicated region
      $region49: #{forward.7} parent=39 // pred_check
        %p518 = pneg %p517
      $region50: #{forward.7} parent=39 // pred_check_branch
        %520 = sbr.rel (%p518) target = $region52
      $region51: #{forward.7} parent=39 // pred_region
        %v521 = vld [vmem:[#allocation2] sm:$0x1]
        %v522 = vmul.f32 %v521, 0.03125
        %v523 = vld [vmem:[#allocation3] sm:$0x1]
        %v524 = vmul.f32 %v523, 0.03125
        %v525 = vmul.f32 %v522, %v522
        %v526 = vsub.f32 %v524, %v525
        %v527 = vmax.f32 %v526, 0.0
        %v528 = vadd.f32 %v527, 1e-05
        %v529 = vrsqrt.pop %v528
        %v530 = vld [vmem:[%s3] sm:$0x1]
        %v531 = vmul.f32 %v530, %v529
        %v532 = vld [vmem:[%s4] sm:$0x1]
        %v533 = vmul.f32 %v522, %v531
        %v534 = vsub.f32 %v532, %v533
        %v536 = vlaneseq
        %v537 = vshrl.u32 %v536, 7
        %v538 = vsub.s32 0, %v537
        %v539 = vrot.slane %v531, %v538
        %v541 = vmul.f32 %v475, %v539
        %v542 = vmul.f32 %v476, %v539
        %v544 = vlaneseq
        %v545 = vshrl.u32 %v544, 7
        %v546 = vsub.s32 0, %v545
        %v547 = vrot.slane %v534, %v546
        %v549 = vadd.f32 %v541, %v547
        %v550 = vadd.f32 %v542, %v547
        %v551 = vmax.f32 %v549, 0.0
        %v552 = vmax.f32 %v550, 0.0
        %vm553 = vcmask 261120
        %554 = vst.msk [vmem:[#allocation4] sm:$0xff] %vm553, %v551
        %555 = vst.msk [vmem:[#allocation4 + $0x8] sm:$0xff] %vm553, %v552
        %v556 = vld [vmem:[#allocation4] ss:$2 sm:$0x3]
        %s557 = scalar_lea.vmem [#allocation4], 1
        %v558 = vld [vmem:[%s557] ss:$2 sm:$0x3]
        %s559 = scalar_lea.vmem [#allocation4], 4
        %v560 = vld [vmem:[%s559] ss:$2 sm:$0x3]
        %s561 = scalar_lea.vmem [#allocation4], 5
        %v562 = vld [vmem:[%s561] ss:$2 sm:$0x3]
        %v563 = vmax.f32 %v556, %v558
        %v564 = vmax.f32 %v560, %v562
        %v565 = vmax.f32 %v563, %v564
        %v566 = vpack.c.bf16 %v565, %v565
        %vm567 = vcmask 253952
        %568 = vst.msk [vmem:[%s234] sm:$0x1] %vm567, %v566
        %s569 = scalar_lea.vmem [#allocation4], 8
        %v570 = vld [vmem:[%s569] ss:$2 sm:$0x3]
        %s571 = scalar_lea.vmem [#allocation4], 9
        %v572 = vld [vmem:[%s571] ss:$2 sm:$0x3]
        %s573 = scalar_lea.vmem [#allocation4], 12
        %v574 = vld [vmem:[%s573] ss:$2 sm:$0x3]
        %s575 = scalar_lea.vmem [#allocation4], 13
        %v576 = vld [vmem:[%s575] ss:$2 sm:$0x3]
        %v577 = vmax.f32 %v570, %v572
        %v578 = vmax.f32 %v574, %v576
        %v579 = vmax.f32 %v577, %v578
        %v580 = vpack.c.bf16 %v579, %v579
        %v583 = vunpack.c.l.s4 1983009808
        %v584 = vunpack.c.0.s8 %v583
        %v585 = vlaneseq
        %v586 = vshrl.u32 %v585, 7
        %v587 = vsub.s32 %v584, %v586
        %v588 = vrot.slane %v580, %v587
        %v589 = vrot.slane %v588, 7
        %vm591 = vcmask 254977
        %592 = vst.msk [vmem:[%s234] sm:$0x2] %vm591, %v589
      $region52: #{forward.7} parent=39 // pred_fallthru
        _
      %p593 = scmp.lt.s32.totalorder %s21, 1
      %s594 = scalar_select %p593, %s21, 1
      %s595 = smul.addr %s594, 2
      %s596 = scalar_lea.vmem %s5, %s595
      // Predicated region
      $region53: #{forward.7} parent=39 // pred_check
        %p597 = pneg %p156
      $region54: #{forward.7} parent=39 // pred_check_branch
        %599 = sbr.rel (%p597) target = $region56
      $region55: #{forward.7} parent=39 // pred_region
        _
      $region56: #{forward.7} parent=39 // pred_fallthru
        _
    $region40: #{forward.7} parent=5 // pred_fallthru
      _
    %p600 = scmp.le.s32.totalorder 2, %s11
    // Predicated region
    $region57: #{forward.7} parent=5 // pred_check
      %p601 = pneg %p600
    $region58: #{forward.7} parent=5 // pred_check_branch
      %603 = sbr.rel (%p601) target = $region60
    $region59: #{forward.7} parent=5 // pred_region
      %s604 = ssub.s32 %s11, 2
      // Predicated region
      $region61: #{forward.7} parent=59 // pred_check
        %p605 = pneg %p162
      $region62: #{forward.7} parent=59 // pred_check_branch
        %607 = sbr.rel (%p605) target = $region64
      $region63: #{forward.7} parent=59 // pred_region
        %p608 = scmp.lt.s32.totalorder %s23, 1
        %s609 = scalar_select %p608, %s23, 1
        %s610 = smul.addr %s609, 2
        %s611 = scalar_lea.vmem %s5, %s610
      $region64: #{forward.7} parent=59 // pred_fallthru
        _
    $region60: #{forward.7} parent=5 // pred_fallthru
      _
  $region6: #{forward.7} parent=0 // loop_footer
    %s15 = sadd.s32 1, %s11
  $region7: #{forward.7} parent=0 // loop_footer_branch
    %10 = sbr.rel target = $region3
  $region8: #{forward.7} parent=0 // loop_exit
    _

// kernel: forward.5
$region0: #{forward.5}
  #allocation0 [shape = 'u32[]', space=smem, size = 0x4, offset = 0x4, fixed_abs, tag = 'smem constant byte address 0x4 - core index']
  #allocation1 [shape = 'u32[144,128]{1,0:T(1,128)}', space=vmem, size = 0x12000, scoped, tag = 'internal scratch']
  #allocation2 [shape = 'f32[1,8]{1,0:T(1,128)}', space=vmem, size = 0x200, scoped, tag = 'scratch operand']
  #allocation3 [shape = 'f32[1,8]{1,0:T(1,128)}', space=vmem, size = 0x200, scoped, tag = 'scratch operand']
  #allocation4 [shape = 'f32[256,8]{1,0:T(8,128)}', space=vmem, size = 0x20000, scoped, tag = 'scratch operand']
  %s0 = inlined_call_operand.vmem [shape: bf16[2,288,9], index: 0, kind: input, shape index: {}]
  %s1 = inlined_call_operand.vmem [shape: bf16[3,9,8], index: 1, kind: input, shape index: {}]
  %s2 = inlined_call_operand.vmem [shape: f32[1,8], index: 2, kind: input, shape index: {}]
  %s3 = inlined_call_operand.vmem [shape: f32[1,8], index: 3, kind: input, shape index: {}]
  %s4 = inlined_call_operand.vmem [shape: f32[1,8], index: 4, kind: input, shape index: {}]
  %s5 = inlined_call_operand.vmem [shape: bf16[2,64,8], index: 5, kind: output, shape index: {}]
  %s6 = sld [smem:[#allocation0]]
  $region65: #{forward.5} parent=0
    _
  %s8 = ssub.s32 1, %s6
  %s9 = scalar_select 0, %s8, %s6
  loop: start=0, step=1, limit=6
  $region2: #{forward.5} parent=0 // loop_pre_header
    _
  $region3: #{forward.5} parent=0 // loop_header
    %s11 = sphi 0, %s15
    %p12 = scmp.ge.s32.totalorder %s11, 6
    %s18 = sphi 0, %s30
    %s19 = sphi 0, %s26
    %s20 = sphi 0, %s18
    %s21 = sphi 0, %s19
    %s22 = sphi 0, %s20
    %s23 = sphi 0, %s21
    %s33 = sphi 0, %s35
    %s36 = sphi 0, %s33
    %s37 = sphi 0, %s36
    %s53 = sphi 0, %s37
    %s57 = sphi 0, %s57
    %s59 = sphi 0, %s57
    %s60 = sphi 0, %s59
    %s74 = sphi 0, %s60
    %s78 = sphi 0, %s78
    %s80 = sphi 0, %s78
    %s81 = sphi 0, %s80
    %s95 = sphi 0, %s81
    %s99 = sphi 0, %s99
    %s101 = sphi 0, %s99
    %s102 = sphi 0, %s101
    %s116 = sphi 0, %s102
    %s120 = sphi 0, %s120
    %s122 = sphi 0, %s120
    %s123 = sphi 0, %s122
    %s137 = sphi 0, %s123
    %s143 = sphi 0, %s145
    %s146 = sphi 0, %s143
    %s147 = sphi 0, %s146
    %s163 = sphi 0, %s147
  $region4: #{forward.5} parent=0 // loop_header_branch
    %14 = sbr.rel (%p12) target = $region8
  $region5: #{forward.5} parent=0 // loop_body
    %s16 = ssub.s32 %s11, 1
    %s17 = ssub.s32 %s11, 2
    %s24 = sadd.s32 1, %s19
    %p25 = scmp.ge.s32.totalorder %s24, 2
    %s26 = scalar_select %p25, 0, %s24
    %s27 = sadd.s32 1, %s18
    %s28 = scalar_select %p25, %s27, %s18
    %p29 = scmp.ge.s32.totalorder %s28, 2
    %s30 = scalar_select %p29, 0, %s28
    %s31 = ssub.s32 %s19, %s26
    %p32 = scmp.eq.s32.totalorder %s31, 0
    %s34 = sadd.s32 %s33, 1
    %s35 = scalar_select %p32, %s33, %s34
    %p38 = pneg %p32
    %p39 = scmp.eq.s32.totalorder %s11, 3
    %p40 = por %p38, %p39
    %p41 = scmp.ne.s32.totalorder %s33, %s36
    %p42 = scmp.eq.s32.totalorder %s11, 0
    %p43 = por %p41, %p42
    %p44 = scmp.ne.s32.totalorder %s33, %s36
    %p45 = scmp.eq.s32.totalorder %s16, 3
    %p46 = por %p44, %p45
    %p47 = scmp.ne.s32.totalorder %s36, %s37
    %p48 = scmp.eq.s32.totalorder %s16, 0
    %p49 = por %p47, %p48
    %p50 = scmp.ne.s32.totalorder %s36, %s37
    %p51 = scmp.eq.s32.totalorder %s17, 3
    %p52 = por %p50, %p51
    %p54 = scmp.ne.s32.totalorder %s37, %s53
    %p55 = scmp.eq.s32.totalorder %s17, 0
    %p56 = por %p54, %p55
    %s58 = sadd.s32 %s57, 1
    %p61 = scmp.eq.s32.totalorder %s11, 3
    %p62 = scmp.ne.s32.totalorder %s57, %s59
    %p63 = scmp.eq.s32.totalorder %s11, 0
    %p64 = por %p62, %p63
    %p65 = scmp.ne.s32.totalorder %s57, %s59
    %p66 = scmp.eq.s32.totalorder %s16, 3
    %p67 = por %p65, %p66
    %p68 = scmp.ne.s32.totalorder %s59, %s60
    %p69 = scmp.eq.s32.totalorder %s16, 0
    %p70 = por %p68, %p69
    %p71 = scmp.ne.s32.totalorder %s59, %s60
    %p72 = scmp.eq.s32.totalorder %s17, 3
    %p73 = por %p71, %p72
    %p75 = scmp.ne.s32.totalorder %s60, %s74
    %p76 = scmp.eq.s32.totalorder %s17, 0
    %p77 = por %p75, %p76
    %s79 = sadd.s32 %s78, 1
    %p82 = scmp.eq.s32.totalorder %s11, 3
    %p83 = scmp.ne.s32.totalorder %s78, %s80
    %p84 = scmp.eq.s32.totalorder %s11, 0
    %p85 = por %p83, %p84
    %p86 = scmp.ne.s32.totalorder %s78, %s80
    %p87 = scmp.eq.s32.totalorder %s16, 3
    %p88 = por %p86, %p87
    %p89 = scmp.ne.s32.totalorder %s80, %s81
    %p90 = scmp.eq.s32.totalorder %s16, 0
    %p91 = por %p89, %p90
    %p92 = scmp.ne.s32.totalorder %s80, %s81
    %p93 = scmp.eq.s32.totalorder %s17, 3
    %p94 = por %p92, %p93
    %p96 = scmp.ne.s32.totalorder %s81, %s95
    %p97 = scmp.eq.s32.totalorder %s17, 0
    %p98 = por %p96, %p97
    %s100 = sadd.s32 %s99, 1
    %p103 = scmp.eq.s32.totalorder %s11, 3
    %p104 = scmp.ne.s32.totalorder %s99, %s101
    %p105 = scmp.eq.s32.totalorder %s11, 0
    %p106 = por %p104, %p105
    %p107 = scmp.ne.s32.totalorder %s99, %s101
    %p108 = scmp.eq.s32.totalorder %s16, 3
    %p109 = por %p107, %p108
    %p110 = scmp.ne.s32.totalorder %s101, %s102
    %p111 = scmp.eq.s32.totalorder %s16, 0
    %p112 = por %p110, %p111
    %p113 = scmp.ne.s32.totalorder %s101, %s102
    %p114 = scmp.eq.s32.totalorder %s17, 3
    %p115 = por %p113, %p114
    %p117 = scmp.ne.s32.totalorder %s102, %s116
    %p118 = scmp.eq.s32.totalorder %s17, 0
    %p119 = por %p117, %p118
    %s121 = sadd.s32 %s120, 1
    %p124 = scmp.eq.s32.totalorder %s11, 3
    %p125 = scmp.ne.s32.totalorder %s120, %s122
    %p126 = scmp.eq.s32.totalorder %s11, 0
    %p127 = por %p125, %p126
    %p128 = scmp.ne.s32.totalorder %s120, %s122
    %p129 = scmp.eq.s32.totalorder %s16, 3
    %p130 = por %p128, %p129
    %p131 = scmp.ne.s32.totalorder %s122, %s123
    %p132 = scmp.eq.s32.totalorder %s16, 0
    %p133 = por %p131, %p132
    %p134 = scmp.ne.s32.totalorder %s122, %s123
    %p135 = scmp.eq.s32.totalorder %s17, 3
    %p136 = por %p134, %p135
    %p138 = scmp.ne.s32.totalorder %s123, %s137
    %p139 = scmp.eq.s32.totalorder %s17, 0
    %p140 = por %p138, %p139
    %s141 = ssub.s32 %s19, %s26
    %p142 = scmp.eq.s32.totalorder %s141, 0
    %s144 = sadd.s32 %s143, 1
    %s145 = scalar_select %p142, %s143, %s144
    %p148 = pneg %p142
    %p149 = scmp.eq.s32.totalorder %s11, 3
    %p150 = por %p148, %p149
    %p151 = scmp.ne.s32.totalorder %s143, %s146
    %p152 = scmp.eq.s32.totalorder %s11, 0
    %p153 = por %p151, %p152
    %p154 = scmp.ne.s32.totalorder %s143, %s146
    %p155 = scmp.eq.s32.totalorder %s16, 3
    %p156 = por %p154, %p155
    %p157 = scmp.ne.s32.totalorder %s146, %s147
    %p158 = scmp.eq.s32.totalorder %s16, 0
    %p159 = por %p157, %p158
    %p160 = scmp.ne.s32.totalorder %s146, %s147
    %p161 = scmp.eq.s32.totalorder %s17, 3
    %p162 = por %p160, %p161
    %p164 = scmp.ne.s32.totalorder %s147, %s163
    %p165 = scmp.eq.s32.totalorder %s17, 0
    %p166 = por %p164, %p165
    %p167 = scmp.le.s32.totalorder 1, %s11
    %p168 = scmp.lt.s32.totalorder %s11, 5
    %p169 = pnand %p167, %p168
    %p170 = pneg %p169
    // Predicated region
    $region9: #{forward.5} parent=5 // pred_check
      _
    $region10: #{forward.5} parent=5 // pred_check_branch
      %172 = sbr.rel (%p169) target = $region12
    $region11: #{forward.5} parent=5 // pred_region
      %s173 = ssub.s32 %s11, 1
      // Predicated region
      $region13: #{forward.5} parent=11 // pred_check
        %p174 = pneg %p70
      $region14: #{forward.5} parent=11 // pred_check_branch
        %176 = sbr.rel (%p174) target = $region16
      $region15: #{forward.5} parent=11 // pred_region
        _
      $region16: #{forward.5} parent=11 // pred_fallthru
        _
      // Predicated region
      $region17: #{forward.5} parent=11 // pred_check
        %p177 = pneg %p91
      $region18: #{forward.5} parent=11 // pred_check_branch
        %179 = sbr.rel (%p177) target = $region20
      $region19: #{forward.5} parent=11 // pred_region
        _
      $region20: #{forward.5} parent=11 // pred_fallthru
        _
      // Predicated region
      $region21: #{forward.5} parent=11 // pred_check
        %p180 = pneg %p112
      $region22: #{forward.5} parent=11 // pred_check_branch
        %182 = sbr.rel (%p180) target = $region24
      $region23: #{forward.5} parent=11 // pred_region
        _
      $region24: #{forward.5} parent=11 // pred_fallthru
        _
      // Predicated region
      $region25: #{forward.5} parent=11 // pred_check
        %p183 = pneg %p133
      $region26: #{forward.5} parent=11 // pred_check_branch
        %185 = sbr.rel (%p183) target = $region28
      $region27: #{forward.5} parent=11 // pred_region
        _
      $region28: #{forward.5} parent=11 // pred_fallthru
        _
    $region12: #{forward.5} parent=5 // pred_fallthru
      _
    %p186 = scmp.lt.s32.totalorder %s11, 4
    // Predicated region
    $region29: #{forward.5} parent=5 // pred_check
      %p187 = pneg %p186
    $region30: #{forward.5} parent=5 // pred_check_branch
      %189 = sbr.rel (%p187) target = $region32
    $region31: #{forward.5} parent=5 // pred_region
      // Predicated region
      $region33: #{forward.5} parent=31 // pred_check
        %p190 = pneg %p43
      $region34: #{forward.5} parent=31 // pred_check_branch
        %192 = sbr.rel (%p190) target = $region36
      $region35: #{forward.5} parent=31 // pred_region
        %p193 = scmp.lt.s32.totalorder %s19, 1
        %s194 = scalar_select %p193, %s19, 1
        %s195 = smul.addr %s194, 36
        %s196 = smul.addr %s195, 4
        %s197 = scalar_lea.vmem %s0, %s196
      $region36: #{forward.5} parent=31 // pred_fallthru
        _
    $region32: #{forward.5} parent=5 // pred_fallthru
      _
    %p198 = scmp.le.s32.totalorder 1, %s11
    %p199 = scmp.lt.s32.totalorder %s11, 5
    %p200 = pnand %p198, %p199
    %p201 = pneg %p200
    // Predicated region
    $region37: #{forward.5} parent=5 // pred_check
      _
    $region38: #{forward.5} parent=5 // pred_check_branch
      %203 = sbr.rel (%p200) target = $region40
    $region39: #{forward.5} parent=5 // pred_region
      %s204 = ssub.s32 %s11, 1
      %p205 = scmp.lt.s32.totalorder %s21, 1
      %s206 = scalar_select %p205, %s21, 1
      %s207 = smul.addr %s206, 36
      %s208 = smul.addr %s207, 4
      %s209 = scalar_lea.vmem %s0, %s208
      %p210 = pneg %p49
      %p211 = pneg %p46
      %p212 = pneg %p70
      %p213 = pneg %p67
      %p214 = pneg %p91
      %p215 = pneg %p88
      %p216 = pneg %p112
      %p217 = pneg %p109
      %p218 = pneg %p133
      %p219 = pneg %p130
      %p220 = pneg %p159
      %p221 = pneg %p156
      %p222 = scmp.lt.s32.totalorder %s21, 1
      %s223 = scalar_select %p222, %s21, 1
      %s224 = smul.addr %s223, 8
      %s225 = smul.addr %s224, 4
      %s226 = scalar_lea.vmem %s5, %s225
      %p227 = scmp.lt.s32.totalorder %s21, 1
      %s228 = scalar_select %p227, %s21, 1
      %s229 = smul.addr %s228, 36
      %s230 = smul.addr %s229, 4
      %s231 = scalar_lea.vmem %s0, %s230
      %p232 = scmp.lt.s32.totalorder %s21, 1
      %s233 = scalar_select %p232, %s21, 1
      %s234 = smul.addr %s233, 8
      %s235 = smul.addr %s234, 4
      %s236 = scalar_lea.vmem %s5, %s235
      %v238 = vld [vmem:[%s231] sm:$0xf]
      %v239 = vld [vmem:[%s231 + $0x4] sm:$0xf]
      %v240 = vld [vmem:[%s231 + $0x8] sm:$0xf]
      %v241 = vld [vmem:[%s231 + $0xc] sm:$0xf]
      %v242 = vld [vmem:[%s231 + $0x10] sm:$0xf]
      %v243 = vld [vmem:[%s231 + $0x14] sm:$0xf]
      %v244 = vld [vmem:[%s231 + $0x18] sm:$0xf]
      %v245 = vld [vmem:[%s231 + $0x1c] sm:$0xf]
      %v246 = vld [vmem:[%s231 + $0x20] sm:$0xf]
      %v247 = vld [vmem:[%s231 + $0x24] sm:$0xf]
      %v248 = vld [vmem:[%s231 + $0x28] sm:$0xf]
      %v249 = vld [vmem:[%s231 + $0x2c] sm:$0xf]
      %v250 = vld [vmem:[%s231 + $0x30] sm:$0xf]
      %v251 = vld [vmem:[%s231 + $0x34] sm:$0xf]
      %v252 = vld [vmem:[%s231 + $0x38] sm:$0xf]
      %v253 = vld [vmem:[%s231 + $0x3c] sm:$0xf]
      %v254 = vld [vmem:[%s231 + $0x40] sm:$0xf]
      %v255 = vld [vmem:[%s231 + $0x44] sm:$0xf]
      %v256 = vld [vmem:[%s231 + $0x48] sm:$0xf]
      %v257 = vld [vmem:[%s231 + $0x4c] sm:$0xf]
      %v258 = vld [vmem:[%s231 + $0x50] sm:$0xf]
      %v259 = vld [vmem:[%s231 + $0x54] sm:$0xf]
      %v260 = vld [vmem:[%s231 + $0x58] sm:$0xf]
      %v261 = vld [vmem:[%s231 + $0x5c] sm:$0xf]
      %v262 = vld [vmem:[%s231 + $0x60] sm:$0xf]
      %v263 = vld [vmem:[%s231 + $0x64] sm:$0xf]
      %v264 = vld [vmem:[%s231 + $0x68] sm:$0xf]
      %v265 = vld [vmem:[%s231 + $0x6c] sm:$0xf]
      %v266 = vld [vmem:[%s231 + $0x70] sm:$0xf]
      %v267 = vld [vmem:[%s231 + $0x74] sm:$0xf]
      %v268 = vld [vmem:[%s231 + $0x78] sm:$0xf]
      %v269 = vld [vmem:[%s231 + $0x7c] sm:$0xf]
      %v270 = vld [vmem:[%s1] sm:$0xf]
      %v271 = vld [vmem:[%s1 + $0x4] sm:$0x1]
      %v272 = vld [vmem:[%s231 + $0x80] sm:$0xf]
      %v273 = vld [vmem:[%s231 + $0x84] sm:$0xf]
      %s274 = scalar_lea.vmem %s1, 8
      %v275 = vld [vmem:[%s274] sm:$0xf]
      %v276 = vld [vmem:[%s274 + $0x4] sm:$0x1]
      %v309 = vunpack.c.l.b16 %v240
      %v310 = vunpack.c.l.b16 %v241
      %v311 = vunpack.c.l.b16 %v242
      %v312 = vunpack.c.l.b16 %v243
      %v313 = vunpack.c.l.b16 %v244
      %v314 = vunpack.c.l.b16 %v245
      %v315 = vunpack.c.l.b16 %v246
      %v316 = vunpack.c.l.b16 %v247
      %v317 = vunpack.c.l.b16 %v248
      %v318 = vunpack.c.l.b16 %v249
      %v319 = vunpack.c.l.b16 %v250
      %v320 = vunpack.c.l.b16 %v251
      %v321 = vunpack.c.l.b16 %v252
      %v322 = vunpack.c.l.b16 %v253
      %v323 = vunpack.c.l.b16 %v254
      %v324 = vunpack.c.l.b16 %v255
      %v325 = vunpack.c.l.b16 %v256
      %v326 = vunpack.c.l.b16 %v257
      %v327 = vunpack.c.l.b16 %v258
      %v328 = vunpack.c.l.b16 %v259
      %v329 = vunpack.c.l.b16 %v260
      %v330 = vunpack.c.l.b16 %v261
      %v331 = vunpack.c.l.b16 %v262
      %v332 = vunpack.c.l.b16 %v263
      %v333 = vunpack.c.l.b16 %v264
      %v334 = vunpack.c.l.b16 %v265
      %v335 = vunpack.c.l.b16 %v266
      %v336 = vunpack.c.l.b16 %v267
      %v337 = vunpack.c.l.b16 %v268
      %v338 = vunpack.c.l.b16 %v269
      %v339 = vunpack.c.l.b16 %v272
      %v340 = vunpack.c.l.b16 %v273
      %v341 = vpack.c.b16 %v310, %v309
      %v342 = vpack.c.b16 %v312, %v311
      %v343 = vpack.c.b16 %v314, %v313
      %v344 = vpack.c.b16 %v316, %v315
      %v345 = vpack.c.b16 %v318, %v317
      %v346 = vpack.c.b16 %v320, %v319
      %v347 = vpack.c.b16 %v322, %v321
      %v348 = vpack.c.b16 %v324, %v323
      %v349 = vpack.c.b16 %v326, %v325
      %v350 = vpack.c.b16 %v328, %v327
      %v351 = vpack.c.b16 %v330, %v329
      %v352 = vpack.c.b16 %v332, %v331
      %v353 = vpack.c.b16 %v334, %v333
      %v354 = vpack.c.b16 %v336, %v335
      %v355 = vpack.c.b16 %v338, %v337
      %v356 = vpack.c.b16 %v340, %v339
      %v359 = vunpack.c.l.b16 %v275
      %v360 = vunpack.c.l.b16 %v276
      %v361 = vpack.c.b16 %v360, %v359
      %vm362 = vcmask 72704
      %v364 = vsel %vm362, %v341, 0
      %v367 = vsel %vm362, %v342, 0
      %v370 = vsel %vm362, %v343, 0
      %v373 = vsel %vm362, %v344, 0
      %v376 = vsel %vm362, %v345, 0
      %v379 = vsel %vm362, %v346, 0
      %v382 = vsel %vm362, %v347, 0
      %v385 = vsel %vm362, %v348, 0
      %v388 = vsel %vm362, %v349, 0
      %v391 = vsel %vm362, %v350, 0
      %v394 = vsel %vm362, %v351, 0
      %v397 = vsel %vm362, %v352, 0
      %v400 = vsel %vm362, %v353, 0
      %v403 = vsel %vm362, %v354, 0
      %v406 = vsel %vm362, %v355, 0
      %v409 = vsel %vm362, %v356, 0
      %vm411 = vcmask 1043456
      %vm412 = vcmask 1044480
      %v413 = vsel %vm411, 4294967295, 65535
      %v414 = vsel %vm412, %v413, 0
      %v416 = vand.u32 %v361, %v414
      %418 = vmatprep.subr.bf16.mxu0 0
      %419 = vmatpush1.bf16.msra.mxu0 0
      %420 = vmatprep.subr.bf16.mxu0 0
      %421 = vmatpush1.bf16.msra.mxu0 0
      %422 = vmatprep.subr.bf16.mxu0 0
      %423 = vmatpush1.bf16.msra.mxu0 0
      %424 = vmatprep.subr.bf16.mxu0 0
      %425 = vmatpush1.bf16.msra.mxu0 0
      %426 = vmatprep.subr.bf16.mxu0 0
      %427 = vmatpush1.bf16.msra.mxu0 0
      %428 = vmatprep.subr.bf16.mxu0 0
      %429 = vmatpush1.bf16.msra.mxu0 0
      %430 = vmatprep.subr.bf16.mxu0 0
      %431 = vmatpush1.bf16.msra.mxu0 0
      %432 = vmatprep.subr.bf16.mxu0 0
      %433 = vmatpush1.bf16.msra.mxu0 %v416
      %434 = vmatprep.subr.bf16.mxu0 0
      %435 = vmatpush2.bf16.msra.mxu0 0
      %436 = vmatprep.subr.bf16.mxu0 0
      %437 = vmatpush2.bf16.msra.mxu0 0
      %438 = vmatprep.subr.bf16.mxu0 0
      %439 = vmatpush2.bf16.msra.mxu0 0
      %440 = vmatprep.subr.bf16.mxu0 0
      %441 = vmatpush2.bf16.msra.mxu0 0
      %442 = vmatprep.subr.bf16.mxu0 0
      %443 = vmatpush2.bf16.msra.mxu0 0
      %444 = vmatprep.subr.bf16.mxu0 0
      %445 = vmatpush2.bf16.msra.mxu0 0
      %446 = vmatprep.subr.bf16.mxu0 0
      %447 = vmatpush2.bf16.msra.mxu0 0
      %448 = vmatprep.subr.bf16.mxu0 0
      %449 = vmatpush2.bf16.msra.mxu0 0
      %450 = vmatprep.mubr.bf16.mxu0 0
      %451 = vmatmul.mubr.bf16.gmra.mxu0 %v364
      %v452 = vpop.f32.mrf.mxu0
      %v453 = vadd.f32 0.0, %v452
      %v454 = vpop.f32.mrf.mxu0
      %v455 = vpop.f32.mrf.mxu0
      %v456 = vadd.f32 0.0, %v455
      %v457 = vpop.f32.mrf.mxu0
      %458 = vmatprep.mubr.bf16.mxu0 0
      %459 = vmatmul.mubr.bf16.gmra.mxu0 %v367
      %v460 = vpop.f32.mrf.mxu0
      %v461 = vadd.f32 0.0, %v460
      %v462 = vpop.f32.mrf.mxu0
      %v463 = vpop.f32.mrf.mxu0
      %v464 = vadd.f32 0.0, %v463
      %v465 = vpop.f32.mrf.mxu0
      %466 = vmatprep.mubr.bf16.mxu0 0
      %467 = vmatmul.mubr.bf16.gmra.mxu0 %v370
      %v468 = vpop.f32.mrf.mxu0
      %v469 = vadd.f32 0.0, %v468
      %v470 = vpop.f32.mrf.mxu0
      %v471 = vpop.f32.mrf.mxu0
      %v472 = vadd.f32 0.0, %v471
      %v473 = vpop.f32.mrf.mxu0
      %474 = vmatprep.mubr.bf16.mxu0 0
      %475 = vmatmul.mubr.bf16.gmra.mxu0 %v373
      %v476 = vpop.f32.mrf.mxu0
      %v477 = vadd.f32 0.0, %v476
      %v478 = vpop.f32.mrf.mxu0
      %v479 = vpop.f32.mrf.mxu0
      %v480 = vadd.f32 0.0, %v479
      %v481 = vpop.f32.mrf.mxu0
      %482 = vmatprep.mubr.bf16.mxu0 0
      %483 = vmatmul.mubr.bf16.gmra.mxu0 %v376
      %v484 = vpop.f32.mrf.mxu0
      %v485 = vadd.f32 0.0, %v484
      %v486 = vpop.f32.mrf.mxu0
      %v487 = vpop.f32.mrf.mxu0
      %v488 = vadd.f32 0.0, %v487
      %v489 = vpop.f32.mrf.mxu0
      %490 = vmatprep.mubr.bf16.mxu0 0
      %491 = vmatmul.mubr.bf16.gmra.mxu0 %v379
      %v492 = vpop.f32.mrf.mxu0
      %v493 = vadd.f32 0.0, %v492
      %v494 = vpop.f32.mrf.mxu0
      %v495 = vpop.f32.mrf.mxu0
      %v496 = vadd.f32 0.0, %v495
      %v497 = vpop.f32.mrf.mxu0
      %498 = vmatprep.mubr.bf16.mxu0 0
      %499 = vmatmul.mubr.bf16.gmra.mxu0 %v382
      %v500 = vpop.f32.mrf.mxu0
      %v501 = vadd.f32 0.0, %v500
      %v502 = vpop.f32.mrf.mxu0
      %v503 = vpop.f32.mrf.mxu0
      %v504 = vadd.f32 0.0, %v503
      %v505 = vpop.f32.mrf.mxu0
      %506 = vmatprep.mubr.bf16.mxu0 0
      %507 = vmatmul.mubr.bf16.gmra.mxu0 %v385
      %v508 = vpop.f32.mrf.mxu0
      %v509 = vadd.f32 0.0, %v508
      %v510 = vpop.f32.mrf.mxu0
      %v511 = vpop.f32.mrf.mxu0
      %v512 = vadd.f32 0.0, %v511
      %v513 = vpop.f32.mrf.mxu0
      %514 = vmatprep.mubr.bf16.mxu0 0
      %515 = vmatmul.mubr.bf16.gmra.mxu0 %v388
      %v516 = vpop.f32.mrf.mxu0
      %v517 = vadd.f32 0.0, %v516
      %v518 = vpop.f32.mrf.mxu0
      %v519 = vpop.f32.mrf.mxu0
      %v520 = vadd.f32 0.0, %v519
      %v521 = vpop.f32.mrf.mxu0
      %522 = vmatprep.mubr.bf16.mxu0 0
      %523 = vmatmul.mubr.bf16.gmra.mxu0 %v391
      %v524 = vpop.f32.mrf.mxu0
      %v525 = vadd.f32 0.0, %v524
      %v526 = vpop.f32.mrf.mxu0
      %v527 = vpop.f32.mrf.mxu0
      %v528 = vadd.f32 0.0, %v527
      %v529 = vpop.f32.mrf.mxu0
      %530 = vmatprep.mubr.bf16.mxu0 0
      %531 = vmatmul.mubr.bf16.gmra.mxu0 %v394
      %v532 = vpop.f32.mrf.mxu0
      %v533 = vadd.f32 0.0, %v532
      %v534 = vpop.f32.mrf.mxu0
      %v535 = vpop.f32.mrf.mxu0
      %v536 = vadd.f32 0.0, %v535
      %v537 = vpop.f32.mrf.mxu0
      %538 = vmatprep.mubr.bf16.mxu0 0
      %539 = vmatmul.mubr.bf16.gmra.mxu0 %v397
      %v540 = vpop.f32.mrf.mxu0
      %v541 = vadd.f32 0.0, %v540
      %v542 = vpop.f32.mrf.mxu0
      %v543 = vpop.f32.mrf.mxu0
      %v544 = vadd.f32 0.0, %v543
      %v545 = vpop.f32.mrf.mxu0
      %546 = vmatprep.mubr.bf16.mxu0 0
      %547 = vmatmul.mubr.bf16.gmra.mxu0 %v400
      %v548 = vpop.f32.mrf.mxu0
      %v549 = vadd.f32 0.0, %v548
      %v550 = vpop.f32.mrf.mxu0
      %v551 = vpop.f32.mrf.mxu0
      %v552 = vadd.f32 0.0, %v551
      %v553 = vpop.f32.mrf.mxu0
      %554 = vmatprep.mubr.bf16.mxu0 0
      %555 = vmatmul.mubr.bf16.gmra.mxu0 %v403
      %v556 = vpop.f32.mrf.mxu0
      %v557 = vadd.f32 0.0, %v556
      %v558 = vpop.f32.mrf.mxu0
      %v559 = vpop.f32.mrf.mxu0
      %v560 = vadd.f32 0.0, %v559
      %v561 = vpop.f32.mrf.mxu0
      %562 = vmatprep.mubr.bf16.mxu0 0
      %563 = vmatmul.mubr.bf16.gmra.mxu0 %v406
      %v564 = vpop.f32.mrf.mxu0
      %v565 = vadd.f32 0.0, %v564
      %v566 = vpop.f32.mrf.mxu0
      %v567 = vpop.f32.mrf.mxu0
      %v568 = vadd.f32 0.0, %v567
      %v569 = vpop.f32.mrf.mxu0
      %570 = vmatprep.mubr.bf16.mxu0 0
      %571 = vmatmul.mubr.bf16.gmra.mxu0 %v409
      %v572 = vpop.f32.mrf.mxu0
      %v573 = vadd.f32 0.0, %v572
      %v574 = vpop.f32.mrf.mxu0
      %v575 = vpop.f32.mrf.mxu0
      %v576 = vadd.f32 0.0, %v575
      %v577 = vpop.f32.mrf.mxu0
      %578 = vdwg.mxu0
      %v581 = vunpack.c.l.b16 %v238
      %v582 = vunpack.c.l.b16 %v239
      %v583 = vpack.c.b16 %v582, %v581
      %v586 = vunpack.c.l.b16 %v270
      %v587 = vunpack.c.l.b16 %v271
      %v588 = vpack.c.b16 %v587, %v586
      %v590 = vsel %vm362, %v583, 0
      %v593 = vand.u32 %v588, %v414
      %595 = vmatprep.subr.bf16.mxu0 0
      %596 = vmatpush1.bf16.msra.mxu0 0
      %597 = vmatprep.subr.bf16.mxu0 0
      %598 = vmatpush1.bf16.msra.mxu0 0
      %599 = vmatprep.subr.bf16.mxu0 0
      %600 = vmatpush1.bf16.msra.mxu0 0
      %601 = vmatprep.subr.bf16.mxu0 0
      %602 = vmatpush1.bf16.msra.mxu0 0
      %603 = vmatprep.subr.bf16.mxu0 0
      %604 = vmatpush1.bf16.msra.mxu0 0
      %605 = vmatprep.subr.bf16.mxu0 0
      %606 = vmatpush1.bf16.msra.mxu0 0
      %607 = vmatprep.subr.bf16.mxu0 0
      %608 = vmatpush1.bf16.msra.mxu0 0
      %609 = vmatprep.subr.bf16.mxu0 0
      %610 = vmatpush1.bf16.msra.mxu0 %v593
      %611 = vmatprep.subr.bf16.mxu0 0
      %612 = vmatpush2.bf16.msra.mxu0 0
      %613 = vmatprep.subr.bf16.mxu0 0
      %614 = vmatpush2.bf16.msra.mxu0 0
      %615 = vmatprep.subr.bf16.mxu0 0
      %616 = vmatpush2.bf16.msra.mxu0 0
      %617 = vmatprep.subr.bf16.mxu0 0
      %618 = vmatpush2.bf16.msra.mxu0 0
      %619 = vmatprep.subr.bf16.mxu0 0
      %620 = vmatpush2.bf16.msra.mxu0 0
      %621 = vmatprep.subr.bf16.mxu0 0
      %622 = vmatpush2.bf16.msra.mxu0 0
      %623 = vmatprep.subr.bf16.mxu0 0
      %624 = vmatpush2.bf16.msra.mxu0 0
      %625 = vmatprep.subr.bf16.mxu0 0
      %626 = vmatpush2.bf16.msra.mxu0 0
      %627 = vmatprep.mubr.bf16.mxu0 0
      %628 = vmatmul.mubr.bf16.gmra.mxu0 %v590
      %v629 = vpop.f32.mrf.mxu0
      %v630 = vadd.f32 %v453, %v629
      %v631 = vpop.f32.mrf.mxu0
      %v632 = vpop.f32.mrf.mxu0
      %v633 = vadd.f32 %v456, %v632
      %v634 = vpop.f32.mrf.mxu0
      %635 = vmatprep.mubr.bf16.mxu0 0
      %636 = vmatmul.mubr.bf16.gmra.mxu0 %v364
      %v637 = vpop.f32.mrf.mxu0
      %v638 = vadd.f32 %v461, %v637
      %v639 = vpop.f32.mrf.mxu0
      %v640 = vpop.f32.mrf.mxu0
      %v641 = vadd.f32 %v464, %v640
      %v642 = vpop.f32.mrf.mxu0
      %643 = vmatprep.mubr.bf16.mxu0 0
      %644 = vmatmul.mubr.bf16.gmra.mxu0 %v367
      %v645 = vpop.f32.mrf.mxu0
      %v646 = vadd.f32 %v469, %v645
      %v647 = vpop.f32.mrf.mxu0
      %v648 = vpop.f32.mrf.mxu0
      %v649 = vadd.f32 %v472, %v648
      %v650 = vpop.f32.mrf.mxu0
      %651 = vmatprep.mubr.bf16.mxu0 0
      %652 = vmatmul.mubr.bf16.gmra.mxu0 %v370
      %v653 = vpop.f32.mrf.mxu0
      %v654 = vadd.f32 %v477, %v653
      %v655 = vpop.f32.mrf.mxu0
      %v656 = vpop.f32.mrf.mxu0
      %v657 = vadd.f32 %v480, %v656
      %v658 = vpop.f32.mrf.mxu0
      %659 = vmatprep.mubr.bf16.mxu0 0
      %660 = vmatmul.mubr.bf16.gmra.mxu0 %v373
      %v661 = vpop.f32.mrf.mxu0
      %v662 = vadd.f32 %v485, %v661
      %v663 = vpop.f32.mrf.mxu0
      %v664 = vpop.f32.mrf.mxu0
      %v665 = vadd.f32 %v488, %v664
      %v666 = vpop.f32.mrf.mxu0
      %667 = vmatprep.mubr.bf16.mxu0 0
      %668 = vmatmul.mubr.bf16.gmra.mxu0 %v376
      %v669 = vpop.f32.mrf.mxu0
      %v670 = vadd.f32 %v493, %v669
      %v671 = vpop.f32.mrf.mxu0
      %v672 = vpop.f32.mrf.mxu0
      %v673 = vadd.f32 %v496, %v672
      %v674 = vpop.f32.mrf.mxu0
      %675 = vmatprep.mubr.bf16.mxu0 0
      %676 = vmatmul.mubr.bf16.gmra.mxu0 %v379
      %v677 = vpop.f32.mrf.mxu0
      %v678 = vadd.f32 %v501, %v677
      %v679 = vpop.f32.mrf.mxu0
      %v680 = vpop.f32.mrf.mxu0
      %v681 = vadd.f32 %v504, %v680
      %v682 = vpop.f32.mrf.mxu0
      %683 = vmatprep.mubr.bf16.mxu0 0
      %684 = vmatmul.mubr.bf16.gmra.mxu0 %v382
      %v685 = vpop.f32.mrf.mxu0
      %v686 = vadd.f32 %v509, %v685
      %v687 = vpop.f32.mrf.mxu0
      %v688 = vpop.f32.mrf.mxu0
      %v689 = vadd.f32 %v512, %v688
      %v690 = vpop.f32.mrf.mxu0
      %691 = vmatprep.mubr.bf16.mxu0 0
      %692 = vmatmul.mubr.bf16.gmra.mxu0 %v385
      %v693 = vpop.f32.mrf.mxu0
      %v694 = vadd.f32 %v517, %v693
      %v695 = vpop.f32.mrf.mxu0
      %v696 = vpop.f32.mrf.mxu0
      %v697 = vadd.f32 %v520, %v696
      %v698 = vpop.f32.mrf.mxu0
      %699 = vmatprep.mubr.bf16.mxu0 0
      %700 = vmatmul.mubr.bf16.gmra.mxu0 %v388
      %v701 = vpop.f32.mrf.mxu0
      %v702 = vadd.f32 %v525, %v701
      %v703 = vpop.f32.mrf.mxu0
      %v704 = vpop.f32.mrf.mxu0
      %v705 = vadd.f32 %v528, %v704
      %v706 = vpop.f32.mrf.mxu0
      %707 = vmatprep.mubr.bf16.mxu0 0
      %708 = vmatmul.mubr.bf16.gmra.mxu0 %v391
      %v709 = vpop.f32.mrf.mxu0
      %v710 = vadd.f32 %v533, %v709
      %v711 = vpop.f32.mrf.mxu0
      %v712 = vpop.f32.mrf.mxu0
      %v713 = vadd.f32 %v536, %v712
      %v714 = vpop.f32.mrf.mxu0
      %715 = vmatprep.mubr.bf16.mxu0 0
      %716 = vmatmul.mubr.bf16.gmra.mxu0 %v394
      %v717 = vpop.f32.mrf.mxu0
      %v718 = vadd.f32 %v541, %v717
      %v719 = vpop.f32.mrf.mxu0
      %v720 = vpop.f32.mrf.mxu0
      %v721 = vadd.f32 %v544, %v720
      %v722 = vpop.f32.mrf.mxu0
      %723 = vmatprep.mubr.bf16.mxu0 0
      %724 = vmatmul.mubr.bf16.gmra.mxu0 %v397
      %v725 = vpop.f32.mrf.mxu0
      %v726 = vadd.f32 %v549, %v725
      %v727 = vpop.f32.mrf.mxu0
      %v728 = vpop.f32.mrf.mxu0
      %v729 = vadd.f32 %v552, %v728
      %v730 = vpop.f32.mrf.mxu0
      %731 = vmatprep.mubr.bf16.mxu0 0
      %732 = vmatmul.mubr.bf16.gmra.mxu0 %v400
      %v733 = vpop.f32.mrf.mxu0
      %v734 = vadd.f32 %v557, %v733
      %v735 = vpop.f32.mrf.mxu0
      %v736 = vpop.f32.mrf.mxu0
      %v737 = vadd.f32 %v560, %v736
      %v738 = vpop.f32.mrf.mxu0
      %739 = vmatprep.mubr.bf16.mxu0 0
      %740 = vmatmul.mubr.bf16.gmra.mxu0 %v403
      %v741 = vpop.f32.mrf.mxu0
      %v742 = vadd.f32 %v565, %v741
      %v743 = vpop.f32.mrf.mxu0
      %v744 = vpop.f32.mrf.mxu0
      %v745 = vadd.f32 %v568, %v744
      %v746 = vpop.f32.mrf.mxu0
      %747 = vmatprep.mubr.bf16.mxu0 0
      %748 = vmatmul.mubr.bf16.gmra.mxu0 %v406
      %v749 = vpop.f32.mrf.mxu0
      %v750 = vadd.f32 %v573, %v749
      %v751 = vpop.f32.mrf.mxu0
      %v752 = vpop.f32.mrf.mxu0
      %v753 = vadd.f32 %v576, %v752
      %v754 = vpop.f32.mrf.mxu0
      %755 = vdwg.mxu0
      %v756 = vld [vmem:[%s231 + $0x10] sm:$0xf]
      %v757 = vld [vmem:[%s231 + $0x14] sm:$0xf]
      %v758 = vld [vmem:[%s231 + $0x18] sm:$0xf]
      %v759 = vld [vmem:[%s231 + $0x1c] sm:$0xf]
      %v760 = vld [vmem:[%s231 + $0x20] sm:$0xf]
      %v761 = vld [vmem:[%s231 + $0x24] sm:$0xf]
      %v762 = vld [vmem:[%s231 + $0x28] sm:$0xf]
      %v763 = vld [vmem:[%s231 + $0x2c] sm:$0xf]
      %v764 = vld [vmem:[%s231 + $0x30] sm:$0xf]
      %v765 = vld [vmem:[%s231 + $0x34] sm:$0xf]
      %v766 = vld [vmem:[%s231 + $0x38] sm:$0xf]
      %v767 = vld [vmem:[%s231 + $0x3c] sm:$0xf]
      %v768 = vld [vmem:[%s231 + $0x40] sm:$0xf]
      %v769 = vld [vmem:[%s231 + $0x44] sm:$0xf]
      %v770 = vld [vmem:[%s231 + $0x48] sm:$0xf]
      %v771 = vld [vmem:[%s231 + $0x4c] sm:$0xf]
      %v772 = vld [vmem:[%s231 + $0x50] sm:$0xf]
      %v773 = vld [vmem:[%s231 + $0x54] sm:$0xf]
      %v774 = vld [vmem:[%s231 + $0x58] sm:$0xf]
      %v775 = vld [vmem:[%s231 + $0x5c] sm:$0xf]
      %v776 = vld [vmem:[%s231 + $0x60] sm:$0xf]
      %v777 = vld [vmem:[%s231 + $0x64] sm:$0xf]
      %v778 = vld [vmem:[%s231 + $0x68] sm:$0xf]
      %v779 = vld [vmem:[%s231 + $0x6c] sm:$0xf]
      %v780 = vld [vmem:[%s231 + $0x70] sm:$0xf]
      %v781 = vld [vmem:[%s231 + $0x74] sm:$0xf]
      %v782 = vld [vmem:[%s231 + $0x78] sm:$0xf]
      %v783 = vld [vmem:[%s231 + $0x7c] sm:$0xf]
      %v784 = vld [vmem:[%s231 + $0x80] sm:$0xf]
      %v785 = vld [vmem:[%s231 + $0x84] sm:$0xf]
      %v786 = vld [vmem:[%s231 + $0x88] sm:$0xf]
      %v787 = vld [vmem:[%s231 + $0x8c] sm:$0xf]
      %s788 = scalar_lea.vmem %s1, 16
      %v789 = vld [vmem:[%s788] sm:$0xf]
      %v790 = vld [vmem:[%s788 + $0x4] sm:$0x1]
      %v823 = vunpack.c.l.b16 %v756
      %v824 = vunpack.c.l.b16 %v757
      %v825 = vunpack.c.l.b16 %v758
      %v826 = vunpack.c.l.b16 %v759
      %v827 = vunpack.c.l.b16 %v760
      %v828 = vunpack.c.l.b16 %v761
      %v829 = vunpack.c.l.b16 %v762
      %v830 = vunpack.c.l.b16 %v763
      %v831 = vunpack.c.l.b16 %v764
      %v832 = vunpack.c.l.b16 %v765
      %v833 = vunpack.c.l.b16 %v766
      %v834 = vunpack.c.l.b16 %v767
      %v835 = vunpack.c.l.b16 %v768
      %v836 = vunpack.c.l.b16 %v769
      %v837 = vunpack.c.l.b16 %v770
      %v838 = vunpack.c.l.b16 %v771
      %v839 = vunpack.c.l.b16 %v772
      %v840 = vunpack.c.l.b16 %v773
      %v841 = vunpack.c.l.b16 %v774
      %v842 = vunpack.c.l.b16 %v775
      %v843 = vunpack.c.l.b16 %v776
      %v844 = vunpack.c.l.b16 %v777
      %v845 = vunpack.c.l.b16 %v778
      %v846 = vunpack.c.l.b16 %v779
      %v847 = vunpack.c.l.b16 %v780
      %v848 = vunpack.c.l.b16 %v781
      %v849 = vunpack.c.l.b16 %v782
      %v850 = vunpack.c.l.b16 %v783
      %v851 = vunpack.c.l.b16 %v784
      %v852 = vunpack.c.l.b16 %v785
      %v853 = vunpack.c.l.b16 %v786
      %v854 = vunpack.c.l.b16 %v787
      %v855 = vpack.c.b16 %v824, %v823
      %v856 = vpack.c.b16 %v826, %v825
      %v857 = vpack.c.b16 %v828, %v827
      %v858 = vpack.c.b16 %v830, %v829
      %v859 = vpack.c.b16 %v832, %v831
      %v860 = vpack.c.b16 %v834, %v833
      %v861 = vpack.c.b16 %v836, %v835
      %v862 = vpack.c.b16 %v838, %v837
      %v863 = vpack.c.b16 %v840, %v839
      %v864 = vpack.c.b16 %v842, %v841
      %v865 = vpack.c.b16 %v844, %v843
      %v866 = vpack.c.b16 %v846, %v845
      %v867 = vpack.c.b16 %v848, %v847
      %v868 = vpack.c.b16 %v850, %v849
      %v869 = vpack.c.b16 %v852, %v851
      %v870 = vpack.c.b16 %v854, %v853
      %v873 = vunpack.c.l.b16 %v789
      %v874 = vunpack.c.l.b16 %v790
      %v875 = vpack.c.b16 %v874, %v873
      %v877 = vsel %vm362, %v855, 0
      %v880 = vsel %vm362, %v856, 0
      %v883 = vsel %vm362, %v857, 0
      %v886 = vsel %vm362, %v858, 0
      %v889 = vsel %vm362, %v859, 0
      %v892 = vsel %vm362, %v860, 0
      %v895 = vsel %vm362, %v861, 0
      %v898 = vsel %vm362, %v862, 0
      %v901 = vsel %vm362, %v863, 0
      %v904 = vsel %vm362, %v864, 0
      %v907 = vsel %vm362, %v865, 0
      %v910 = vsel %vm362, %v866, 0
      %v913 = vsel %vm362, %v867, 0
      %v916 = vsel %vm362, %v868, 0
      %v919 = vsel %vm362, %v869, 0
      %v922 = vsel %vm362, %v870, 0
      %v925 = vand.u32 %v875, %v414
      %927 = vmatprep.subr.bf16.mxu0 0
      %928 = vmatpush1.bf16.msra.mxu0 0
      %929 = vmatprep.subr.bf16.mxu0 0
      %930 = vmatpush1.bf16.msra.mxu0 0
      %931 = vmatprep.subr.bf16.mxu0 0
      %932 = vmatpush1.bf16.msra.mxu0 0
      %933 = vmatprep.subr.bf16.mxu0 0
      %934 = vmatpush1.bf16.msra.mxu0 0
      %935 = vmatprep.subr.bf16.mxu0 0
      %936 = vmatpush1.bf16.msra.mxu0 0
      %937 = vmatprep.subr.bf16.mxu0 0
      %938 = vmatpush1.bf16.msra.mxu0 0
      %939 = vmatprep.subr.bf16.mxu0 0
      %940 = vmatpush1.bf16.msra.mxu0 0
      %941 = vmatprep.subr.bf16.mxu0 0
      %942 = vmatpush1.bf16.msra.mxu0 %v925
      %943 = vmatprep.subr.bf16.mxu0 0
      %944 = vmatpush2.bf16.msra.mxu0 0
      %945 = vmatprep.subr.bf16.mxu0 0
      %946 = vmatpush2.bf16.msra.mxu0 0
      %947 = vmatprep.subr.bf16.mxu0 0
      %948 = vmatpush2.bf16.msra.mxu0 0
      %949 = vmatprep.subr.bf16.mxu0 0
      %950 = vmatpush2.bf16.msra.mxu0 0
      %951 = vmatprep.subr.bf16.mxu0 0
      %952 = vmatpush2.bf16.msra.mxu0 0
      %953 = vmatprep.subr.bf16.mxu0 0
      %954 = vmatpush2.bf16.msra.mxu0 0
      %955 = vmatprep.subr.bf16.mxu0 0
      %956 = vmatpush2.bf16.msra.mxu0 0
      %957 = vmatprep.subr.bf16.mxu0 0
      %958 = vmatpush2.bf16.msra.mxu0 0
      %959 = vmatprep.mubr.bf16.mxu0 0
      %960 = vmatmul.mubr.bf16.gmra.mxu0 %v877
      %v961 = vpop.f32.mrf.mxu0
      %v962 = vadd.f32 0.0, %v961
      %v963 = vpop.f32.mrf.mxu0
      %v964 = vpop.f32.mrf.mxu0
      %v965 = vadd.f32 0.0, %v964
      %v966 = vpop.f32.mrf.mxu0
      %967 = vmatprep.mubr.bf16.mxu0 0
      %968 = vmatmul.mubr.bf16.gmra.mxu0 %v880
      %v969 = vpop.f32.mrf.mxu0
      %v970 = vadd.f32 0.0, %v969
      %v971 = vpop.f32.mrf.mxu0
      %v972 = vpop.f32.mrf.mxu0
      %v973 = vadd.f32 0.0, %v972
      %v974 = vpop.f32.mrf.mxu0
      %975 = vmatprep.mubr.bf16.mxu0 0
      %976 = vmatmul.mubr.bf16.gmra.mxu0 %v883
      %v977 = vpop.f32.mrf.mxu0
      %v978 = vadd.f32 0.0, %v977
      %v979 = vpop.f32.mrf.mxu0
      %v980 = vpop.f32.mrf.mxu0
      %v981 = vadd.f32 0.0, %v980
      %v982 = vpop.f32.mrf.mxu0
      %983 = vmatprep.mubr.bf16.mxu0 0
      %984 = vmatmul.mubr.bf16.gmra.mxu0 %v886
      %v985 = vpop.f32.mrf.mxu0
      %v986 = vadd.f32 0.0, %v985
      %v987 = vpop.f32.mrf.mxu0
      %v988 = vpop.f32.mrf.mxu0
      %v989 = vadd.f32 0.0, %v988
      %v990 = vpop.f32.mrf.mxu0
      %991 = vmatprep.mubr.bf16.mxu0 0
      %992 = vmatmul.mubr.bf16.gmra.mxu0 %v889
      %v993 = vpop.f32.mrf.mxu0
      %v994 = vadd.f32 0.0, %v993
      %v995 = vpop.f32.mrf.mxu0
      %v996 = vpop.f32.mrf.mxu0
      %v997 = vadd.f32 0.0, %v996
      %v998 = vpop.f32.mrf.mxu0
      %999 = vmatprep.mubr.bf16.mxu0 0
      %1000 = vmatmul.mubr.bf16.gmra.mxu0 %v892
      %v1001 = vpop.f32.mrf.mxu0
      %v1002 = vadd.f32 0.0, %v1001
      %v1003 = vpop.f32.mrf.mxu0
      %v1004 = vpop.f32.mrf.mxu0
      %v1005 = vadd.f32 0.0, %v1004
      %v1006 = vpop.f32.mrf.mxu0
      %1007 = vmatprep.mubr.bf16.mxu0 0
      %1008 = vmatmul.mubr.bf16.gmra.mxu0 %v895
      %v1009 = vpop.f32.mrf.mxu0
      %v1010 = vadd.f32 0.0, %v1009
      %v1011 = vpop.f32.mrf.mxu0
      %v1012 = vpop.f32.mrf.mxu0
      %v1013 = vadd.f32 0.0, %v1012
      %v1014 = vpop.f32.mrf.mxu0
      %1015 = vmatprep.mubr.bf16.mxu0 0
      %1016 = vmatmul.mubr.bf16.gmra.mxu0 %v898
      %v1017 = vpop.f32.mrf.mxu0
      %v1018 = vadd.f32 0.0, %v1017
      %v1019 = vpop.f32.mrf.mxu0
      %v1020 = vpop.f32.mrf.mxu0
      %v1021 = vadd.f32 0.0, %v1020
      %v1022 = vpop.f32.mrf.mxu0
      %1023 = vmatprep.mubr.bf16.mxu0 0
      %1024 = vmatmul.mubr.bf16.gmra.mxu0 %v901
      %v1025 = vpop.f32.mrf.mxu0
      %v1026 = vadd.f32 0.0, %v1025
      %v1027 = vpop.f32.mrf.mxu0
      %v1028 = vpop.f32.mrf.mxu0
      %v1029 = vadd.f32 0.0, %v1028
      %v1030 = vpop.f32.mrf.mxu0
      %1031 = vmatprep.mubr.bf16.mxu0 0
      %1032 = vmatmul.mubr.bf16.gmra.mxu0 %v904
      %v1033 = vpop.f32.mrf.mxu0
      %v1034 = vadd.f32 0.0, %v1033
      %v1035 = vpop.f32.mrf.mxu0
      %v1036 = vpop.f32.mrf.mxu0
      %v1037 = vadd.f32 0.0, %v1036
      %v1038 = vpop.f32.mrf.mxu0
      %1039 = vmatprep.mubr.bf16.mxu0 0
      %1040 = vmatmul.mubr.bf16.gmra.mxu0 %v907
      %v1041 = vpop.f32.mrf.mxu0
      %v1042 = vadd.f32 0.0, %v1041
      %v1043 = vpop.f32.mrf.mxu0
      %v1044 = vpop.f32.mrf.mxu0
      %v1045 = vadd.f32 0.0, %v1044
      %v1046 = vpop.f32.mrf.mxu0
      %1047 = vmatprep.mubr.bf16.mxu0 0
      %1048 = vmatmul.mubr.bf16.gmra.mxu0 %v910
      %v1049 = vpop.f32.mrf.mxu0
      %v1050 = vadd.f32 0.0, %v1049
      %v1051 = vpop.f32.mrf.mxu0
      %v1052 = vpop.f32.mrf.mxu0
      %v1053 = vadd.f32 0.0, %v1052
      %v1054 = vpop.f32.mrf.mxu0
      %1055 = vmatprep.mubr.bf16.mxu0 0
      %1056 = vmatmul.mubr.bf16.gmra.mxu0 %v913
      %v1057 = vpop.f32.mrf.mxu0
      %v1058 = vadd.f32 0.0, %v1057
      %v1059 = vpop.f32.mrf.mxu0
      %v1060 = vpop.f32.mrf.mxu0
      %v1061 = vadd.f32 0.0, %v1060
      %v1062 = vpop.f32.mrf.mxu0
      %1063 = vmatprep.mubr.bf16.mxu0 0
      %1064 = vmatmul.mubr.bf16.gmra.mxu0 %v916
      %v1065 = vpop.f32.mrf.mxu0
      %v1066 = vadd.f32 0.0, %v1065
      %v1067 = vpop.f32.mrf.mxu0
      %v1068 = vpop.f32.mrf.mxu0
      %v1069 = vadd.f32 0.0, %v1068
      %v1070 = vpop.f32.mrf.mxu0
      %1071 = vmatprep.mubr.bf16.mxu0 0
      %1072 = vmatmul.mubr.bf16.gmra.mxu0 %v919
      %v1073 = vpop.f32.mrf.mxu0
      %v1074 = vadd.f32 0.0, %v1073
      %v1075 = vpop.f32.mrf.mxu0
      %v1076 = vpop.f32.mrf.mxu0
      %v1077 = vadd.f32 0.0, %v1076
      %v1078 = vpop.f32.mrf.mxu0
      %1079 = vmatprep.mubr.bf16.mxu0 0
      %1080 = vmatmul.mubr.bf16.gmra.mxu0 %v922
      %v1081 = vpop.f32.mrf.mxu0
      %v1082 = vadd.f32 0.0, %v1081
      %v1083 = vpop.f32.mrf.mxu0
      %v1084 = vpop.f32.mrf.mxu0
      %v1085 = vadd.f32 0.0, %v1084
      %v1086 = vpop.f32.mrf.mxu0
      %1087 = vdwg.mxu0
      %v1088 = vadd.f32 %v630, %v962
      %v1089 = vadd.f32 %v633, %v965
      %v1090 = vadd.f32 %v638, %v970
      %v1091 = vadd.f32 %v641, %v973
      %v1092 = vadd.f32 %v646, %v978
      %v1093 = vadd.f32 %v649, %v981
      %v1094 = vadd.f32 %v654, %v986
      %v1095 = vadd.f32 %v657, %v989
      %v1096 = vadd.f32 %v662, %v994
      %v1097 = vadd.f32 %v665, %v997
      %v1098 = vadd.f32 %v670, %v1002
      %v1099 = vadd.f32 %v673, %v1005
      %v1100 = vadd.f32 %v678, %v1010
      %v1101 = vadd.f32 %v681, %v1013
      %v1102 = vadd.f32 %v686, %v1018
      %v1103 = vadd.f32 %v689, %v1021
      %v1104 = vadd.f32 %v694, %v1026
      %v1105 = vadd.f32 %v697, %v1029
      %v1106 = vadd.f32 %v702, %v1034
      %v1107 = vadd.f32 %v705, %v1037
      %v1108 = vadd.f32 %v710, %v1042
      %v1109 = vadd.f32 %v713, %v1045
      %v1110 = vadd.f32 %v718, %v1050
      %v1111 = vadd.f32 %v721, %v1053
      %v1112 = vadd.f32 %v726, %v1058
      %v1113 = vadd.f32 %v729, %v1061
      %v1114 = vadd.f32 %v734, %v1066
      %v1115 = vadd.f32 %v737, %v1069
      %v1116 = vadd.f32 %v742, %v1074
      %v1117 = vadd.f32 %v745, %v1077
      %v1118 = vadd.f32 %v750, %v1082
      %v1119 = vadd.f32 %v753, %v1085
      %v1120 = vld [vmem:[%s2] sm:$0x1]
      %v1122 = vlaneseq
      %v1123 = vshrl.u32 %v1122, 7
      %v1124 = vsub.s32 0, %v1123
      %v1125 = vrot.slane %v1120, %v1124
      %v1127 = vadd.f32 %v1088, %v1125
      %v1128 = vadd.f32 %v1089, %v1125
      %v1129 = vadd.f32 %v1090, %v1125
      %v1130 = vadd.f32 %v1091, %v1125
      %v1131 = vadd.f32 %v1092, %v1125
      %v1132 = vadd.f32 %v1093, %v1125
      %v1133 = vadd.f32 %v1094, %v1125
      %v1134 = vadd.f32 %v1095, %v1125
      %v1135 = vadd.f32 %v1096, %v1125
      %v1136 = vadd.f32 %v1097, %v1125
      %v1137 = vadd.f32 %v1098, %v1125
      %v1138 = vadd.f32 %v1099, %v1125
      %v1139 = vadd.f32 %v1100, %v1125
      %v1140 = vadd.f32 %v1101, %v1125
      %v1141 = vadd.f32 %v1102, %v1125
      %v1142 = vadd.f32 %v1103, %v1125
      %v1143 = vadd.f32 %v1104, %v1125
      %v1144 = vadd.f32 %v1105, %v1125
      %v1145 = vadd.f32 %v1106, %v1125
      %v1146 = vadd.f32 %v1107, %v1125
      %v1147 = vadd.f32 %v1108, %v1125
      %v1148 = vadd.f32 %v1109, %v1125
      %v1149 = vadd.f32 %v1110, %v1125
      %v1150 = vadd.f32 %v1111, %v1125
      %v1151 = vadd.f32 %v1112, %v1125
      %v1152 = vadd.f32 %v1113, %v1125
      %v1153 = vadd.f32 %v1114, %v1125
      %v1154 = vadd.f32 %v1115, %v1125
      %v1155 = vadd.f32 %v1116, %v1125
      %v1156 = vadd.f32 %v1117, %v1125
      %v1157 = vadd.f32 %v1118, %v1125
      %v1158 = vadd.f32 %v1119, %v1125
      %p1159 = scmp.eq.s32.totalorder %s20, 0
      %p1160 = scmp.eq.s32.totalorder %s21, 0
      %p1161 = pnand %p1159, %p1160
      %p1162 = pneg %p1161
      // Predicated region
      $region41: #{forward.5} parent=39 // pred_check
        _
      $region42: #{forward.5} parent=39 // pred_check_branch
        %1164 = sbr.rel (%p1161) target = $region44
      $region43: #{forward.5} parent=39 // pred_region
        %vm1165 = vcmask 57344
        %1166 = vst.msk [vmem:[#allocation2] sm:$0x1] %vm1165, 0.0
        %1167 = vst.msk [vmem:[#allocation3] sm:$0x1] %vm1165, 0.0
      $region44: #{forward.5} parent=39 // pred_fallthru
        _
      // Predicated region
      $region45: #{forward.5} parent=39 // pred_check
        %p1168 = pneg %p1159
      $region46: #{forward.5} parent=39 // pred_check_branch
        %1170 = sbr.rel (%p1168) target = $region48
      $region47: #{forward.5} parent=39 // pred_region
        %v1171 = vld [vmem:[#allocation2] sm:$0x1]
        %vm1172 = vcmask 64512
        %v1173 = vsel %vm1172, %v1127, 0.0
        %v1174 = vsel %vm1172, %v1128, 0.0
        %v1175 = vadd.f32 %v1173, %v1174
        %v1176 = vsel %vm1172, %v1129, 0.0
        %v1177 = vadd.f32 %v1175, %v1176
        %v1178 = vsel %vm1172, %v1130, 0.0
        %v1179 = vadd.f32 %v1177, %v1178
        %v1180 = vsel %vm1172, %v1131, 0.0
        %v1181 = vadd.f32 %v1179, %v1180
        %v1182 = vsel %vm1172, %v1132, 0.0
        %v1183 = vadd.f32 %v1181, %v1182
        %v1184 = vsel %vm1172, %v1133, 0.0
        %v1185 = vadd.f32 %v1183, %v1184
        %v1186 = vsel %vm1172, %v1134, 0.0
        %v1187 = vadd.f32 %v1185, %v1186
        %v1188 = vsel %vm1172, %v1135, 0.0
        %v1189 = vadd.f32 %v1187, %v1188
        %v1190 = vsel %vm1172, %v1136, 0.0
        %v1191 = vadd.f32 %v1189, %v1190
        %v1192 = vsel %vm1172, %v1137, 0.0
        %v1193 = vadd.f32 %v1191, %v1192
        %v1194 = vsel %vm1172, %v1138, 0.0
        %v1195 = vadd.f32 %v1193, %v1194
        %v1196 = vsel %vm1172, %v1139, 0.0
        %v1197 = vadd.f32 %v1195, %v1196
        %v1198 = vsel %vm1172, %v1140, 0.0
        %v1199 = vadd.f32 %v1197, %v1198
        %v1200 = vsel %vm1172, %v1141, 0.0
        %v1201 = vadd.f32 %v1199, %v1200
        %v1202 = vsel %vm1172, %v1142, 0.0
        %v1203 = vadd.f32 %v1201, %v1202
        %v1204 = vsel %vm1172, %v1143, 0.0
        %v1205 = vadd.f32 %v1203, %v1204
        %v1206 = vsel %vm1172, %v1144, 0.0
        %v1207 = vadd.f32 %v1205, %v1206
        %v1208 = vsel %vm1172, %v1145, 0.0
        %v1209 = vadd.f32 %v1207, %v1208
        %v1210 = vsel %vm1172, %v1146, 0.0
        %v1211 = vadd.f32 %v1209, %v1210
        %v1212 = vsel %vm1172, %v1147, 0.0
        %v1213 = vadd.f32 %v1211, %v1212
        %v1214 = vsel %vm1172, %v1148, 0.0
        %v1215 = vadd.f32 %v1213, %v1214
        %v1216 = vsel %vm1172, %v1149, 0.0
        %v1217 = vadd.f32 %v1215, %v1216
        %v1218 = vsel %vm1172, %v1150, 0.0
        %v1219 = vadd.f32 %v1217, %v1218
        %v1220 = vsel %vm1172, %v1151, 0.0
        %v1221 = vadd.f32 %v1219, %v1220
        %v1222 = vsel %vm1172, %v1152, 0.0
        %v1223 = vadd.f32 %v1221, %v1222
        %v1224 = vsel %vm1172, %v1153, 0.0
        %v1225 = vadd.f32 %v1223, %v1224
        %v1226 = vsel %vm1172, %v1154, 0.0
        %v1227 = vadd.f32 %v1225, %v1226
        %v1228 = vsel %vm1172, %v1155, 0.0
        %v1229 = vadd.f32 %v1227, %v1228
        %v1230 = vsel %vm1172, %v1156, 0.0
        %v1231 = vadd.f32 %v1229, %v1230
        %v1232 = vsel %vm1172, %v1157, 0.0
        %v1233 = vadd.f32 %v1231, %v1232
        %v1234 = vsel %vm1172, %v1158, 0.0
        %v1235 = vadd.f32 %v1233, %v1234
        %v1236 = vrot.slane %v1235, 4
        %v1237 = vadd.f32 %v1235, %v1236
        %v1238 = vrot.slane %v1237, 2
        %v1239 = vadd.f32 %v1237, %v1238
        %v1240 = vrot.slane %v1239, 1
        %v1241 = vadd.f32 %v1239, %v1240
        %v1242 = vadd.f32 %v1171, %v1241
        %vm1243 = vcmask 57344
        %1244 = vst.msk [vmem:[#allocation2] sm:$0x1] %vm1243, %v1242
        %v1245 = vld [vmem:[#allocation3] sm:$0x1]
        %v1246 = vmul.f32 %v1127, %v1127
        %v1247 = vmul.f32 %v1128, %v1128
        %v1248 = vmul.f32 %v1129, %v1129
        %v1249 = vmul.f32 %v1130, %v1130
        %v1250 = vmul.f32 %v1131, %v1131
        %v1251 = vmul.f32 %v1132, %v1132
        %v1252 = vmul.f32 %v1133, %v1133
        %v1253 = vmul.f32 %v1134, %v1134
        %v1254 = vmul.f32 %v1135, %v1135
        %v1255 = vmul.f32 %v1136, %v1136
        %v1256 = vmul.f32 %v1137, %v1137
        %v1257 = vmul.f32 %v1138, %v1138
        %v1258 = vmul.f32 %v1139, %v1139
        %v1259 = vmul.f32 %v1140, %v1140
        %v1260 = vmul.f32 %v1141, %v1141
        %v1261 = vmul.f32 %v1142, %v1142
        %v1262 = vmul.f32 %v1143, %v1143
        %v1263 = vmul.f32 %v1144, %v1144
        %v1264 = vmul.f32 %v1145, %v1145
        %v1265 = vmul.f32 %v1146, %v1146
        %v1266 = vmul.f32 %v1147, %v1147
        %v1267 = vmul.f32 %v1148, %v1148
        %v1268 = vmul.f32 %v1149, %v1149
        %v1269 = vmul.f32 %v1150, %v1150
        %v1270 = vmul.f32 %v1151, %v1151
        %v1271 = vmul.f32 %v1152, %v1152
        %v1272 = vmul.f32 %v1153, %v1153
        %v1273 = vmul.f32 %v1154, %v1154
        %v1274 = vmul.f32 %v1155, %v1155
        %v1275 = vmul.f32 %v1156, %v1156
        %v1276 = vmul.f32 %v1157, %v1157
        %v1277 = vmul.f32 %v1158, %v1158
        %v1278 = vsel %vm1172, %v1246, 0.0
        %v1279 = vsel %vm1172, %v1247, 0.0
        %v1280 = vadd.f32 %v1278, %v1279
        %v1281 = vsel %vm1172, %v1248, 0.0
        %v1282 = vadd.f32 %v1280, %v1281
        %v1283 = vsel %vm1172, %v1249, 0.0
        %v1284 = vadd.f32 %v1282, %v1283
        %v1285 = vsel %vm1172, %v1250, 0.0
        %v1286 = vadd.f32 %v1284, %v1285
        %v1287 = vsel %vm1172, %v1251, 0.0
        %v1288 = vadd.f32 %v1286, %v1287
        %v1289 = vsel %vm1172, %v1252, 0.0
        %v1290 = vadd.f32 %v1288, %v1289
        %v1291 = vsel %vm1172, %v1253, 0.0
        %v1292 = vadd.f32 %v1290, %v1291
        %v1293 = vsel %vm1172, %v1254, 0.0
        %v1294 = vadd.f32 %v1292, %v1293
        %v1295 = vsel %vm1172, %v1255, 0.0
        %v1296 = vadd.f32 %v1294, %v1295
        %v1297 = vsel %vm1172, %v1256, 0.0
        %v1298 = vadd.f32 %v1296, %v1297
        %v1299 = vsel %vm1172, %v1257, 0.0
        %v1300 = vadd.f32 %v1298, %v1299
        %v1301 = vsel %vm1172, %v1258, 0.0
        %v1302 = vadd.f32 %v1300, %v1301
        %v1303 = vsel %vm1172, %v1259, 0.0
        %v1304 = vadd.f32 %v1302, %v1303
        %v1305 = vsel %vm1172, %v1260, 0.0
        %v1306 = vadd.f32 %v1304, %v1305
        %v1307 = vsel %vm1172, %v1261, 0.0
        %v1308 = vadd.f32 %v1306, %v1307
        %v1309 = vsel %vm1172, %v1262, 0.0
        %v1310 = vadd.f32 %v1308, %v1309
        %v1311 = vsel %vm1172, %v1263, 0.0
        %v1312 = vadd.f32 %v1310, %v1311
        %v1313 = vsel %vm1172, %v1264, 0.0
        %v1314 = vadd.f32 %v1312, %v1313
        %v1315 = vsel %vm1172, %v1265, 0.0
        %v1316 = vadd.f32 %v1314, %v1315
        %v1317 = vsel %vm1172, %v1266, 0.0
        %v1318 = vadd.f32 %v1316, %v1317
        %v1319 = vsel %vm1172, %v1267, 0.0
        %v1320 = vadd.f32 %v1318, %v1319
        %v1321 = vsel %vm1172, %v1268, 0.0
        %v1322 = vadd.f32 %v1320, %v1321
        %v1323 = vsel %vm1172, %v1269, 0.0
        %v1324 = vadd.f32 %v1322, %v1323
        %v1325 = vsel %vm1172, %v1270, 0.0
        %v1326 = vadd.f32 %v1324, %v1325
        %v1327 = vsel %vm1172, %v1271, 0.0
        %v1328 = vadd.f32 %v1326, %v1327
        %v1329 = vsel %vm1172, %v1272, 0.0
        %v1330 = vadd.f32 %v1328, %v1329
        %v1331 = vsel %vm1172, %v1273, 0.0
        %v1332 = vadd.f32 %v1330, %v1331
        %v1333 = vsel %vm1172, %v1274, 0.0
        %v1334 = vadd.f32 %v1332, %v1333
        %v1335 = vsel %vm1172, %v1275, 0.0
        %v1336 = vadd.f32 %v1334, %v1335
        %v1337 = vsel %vm1172, %v1276, 0.0
        %v1338 = vadd.f32 %v1336, %v1337
        %v1339 = vsel %vm1172, %v1277, 0.0
        %v1340 = vadd.f32 %v1338, %v1339
        %v1341 = vrot.slane %v1340, 4
        %v1342 = vadd.f32 %v1340, %v1341
        %v1343 = vrot.slane %v1342, 2
        %v1344 = vadd.f32 %v1342, %v1343
        %v1345 = vrot.slane %v1344, 1
        %v1346 = vadd.f32 %v1344, %v1345
        %v1347 = vadd.f32 %v1245, %v1346
        %1348 = vst.msk [vmem:[#allocation3] sm:$0x1] %vm1243, %v1347
      $region48: #{forward.5} parent=39 // pred_fallthru
        _
      %p1349 = scmp.eq.s32.totalorder %s20, 1
      // Predicated region
      $region49: #{forward.5} parent=39 // pred_check
        %p1350 = pneg %p1349
      $region50: #{forward.5} parent=39 // pred_check_branch
        %1352 = sbr.rel (%p1350) target = $region52
      $region51: #{forward.5} parent=39 // pred_region
        %v1353 = vld [vmem:[#allocation2] sm:$0x1]
        %v1354 = vmul.f32 %v1353, 0.001953125
        %v1355 = vld [vmem:[#allocation3] sm:$0x1]
        %v1356 = vmul.f32 %v1355, 0.001953125
        %v1357 = vmul.f32 %v1354, %v1354
        %v1358 = vsub.f32 %v1356, %v1357
        %v1359 = vmax.f32 %v1358, 0.0
        %v1360 = vadd.f32 %v1359, 1e-05
        %v1361 = vrsqrt.pop %v1360
        %v1362 = vld [vmem:[%s3] sm:$0x1]
        %v1363 = vmul.f32 %v1362, %v1361
        %v1364 = vld [vmem:[%s4] sm:$0x1]
        %v1365 = vmul.f32 %v1354, %v1363
        %v1366 = vsub.f32 %v1364, %v1365
        %v1368 = vlaneseq
        %v1369 = vshrl.u32 %v1368, 7
        %v1370 = vsub.s32 0, %v1369
        %v1371 = vrot.slane %v1363, %v1370
        %v1373 = vmul.f32 %v1127, %v1371
        %v1374 = vmul.f32 %v1128, %v1371
        %v1375 = vmul.f32 %v1129, %v1371
        %v1376 = vmul.f32 %v1130, %v1371
        %v1377 = vmul.f32 %v1131, %v1371
        %v1378 = vmul.f32 %v1132, %v1371
        %v1379 = vmul.f32 %v1133, %v1371
        %v1380 = vmul.f32 %v1134, %v1371
        %v1381 = vmul.f32 %v1135, %v1371
        %v1382 = vmul.f32 %v1136, %v1371
        %v1383 = vmul.f32 %v1137, %v1371
        %v1384 = vmul.f32 %v1138, %v1371
        %v1385 = vmul.f32 %v1139, %v1371
        %v1386 = vmul.f32 %v1140, %v1371
        %v1387 = vmul.f32 %v1141, %v1371
        %v1388 = vmul.f32 %v1142, %v1371
        %v1389 = vmul.f32 %v1143, %v1371
        %v1390 = vmul.f32 %v1144, %v1371
        %v1391 = vmul.f32 %v1145, %v1371
        %v1392 = vmul.f32 %v1146, %v1371
        %v1393 = vmul.f32 %v1147, %v1371
        %v1394 = vmul.f32 %v1148, %v1371
        %v1395 = vmul.f32 %v1149, %v1371
        %v1396 = vmul.f32 %v1150, %v1371
        %v1397 = vmul.f32 %v1151, %v1371
        %v1398 = vmul.f32 %v1152, %v1371
        %v1399 = vmul.f32 %v1153, %v1371
        %v1400 = vmul.f32 %v1154, %v1371
        %v1401 = vmul.f32 %v1155, %v1371
        %v1402 = vmul.f32 %v1156, %v1371
        %v1403 = vmul.f32 %v1157, %v1371
        %v1404 = vmul.f32 %v1158, %v1371
        %v1406 = vlaneseq
        %v1407 = vshrl.u32 %v1406, 7
        %v1408 = vsub.s32 0, %v1407
        %v1409 = vrot.slane %v1366, %v1408
        %v1411 = vadd.f32 %v1373, %v1409
        %v1412 = vadd.f32 %v1374, %v1409
        %v1413 = vadd.f32 %v1375, %v1409
        %v1414 = vadd.f32 %v1376, %v1409
        %v1415 = vadd.f32 %v1377, %v1409
        %v1416 = vadd.f32 %v1378, %v1409
        %v1417 = vadd.f32 %v1379, %v1409
        %v1418 = vadd.f32 %v1380, %v1409
        %v1419 = vadd.f32 %v1381, %v1409
        %v1420 = vadd.f32 %v1382, %v1409
        %v1421 = vadd.f32 %v1383, %v1409
        %v1422 = vadd.f32 %v1384, %v1409
        %v1423 = vadd.f32 %v1385, %v1409
        %v1424 = vadd.f32 %v1386, %v1409
        %v1425 = vadd.f32 %v1387, %v1409
        %v1426 = vadd.f32 %v1388, %v1409
        %v1427 = vadd.f32 %v1389, %v1409
        %v1428 = vadd.f32 %v1390, %v1409
        %v1429 = vadd.f32 %v1391, %v1409
        %v1430 = vadd.f32 %v1392, %v1409
        %v1431 = vadd.f32 %v1393, %v1409
        %v1432 = vadd.f32 %v1394, %v1409
        %v1433 = vadd.f32 %v1395, %v1409
        %v1434 = vadd.f32 %v1396, %v1409
        %v1435 = vadd.f32 %v1397, %v1409
        %v1436 = vadd.f32 %v1398, %v1409
        %v1437 = vadd.f32 %v1399, %v1409
        %v1438 = vadd.f32 %v1400, %v1409
        %v1439 = vadd.f32 %v1401, %v1409
        %v1440 = vadd.f32 %v1402, %v1409
        %v1441 = vadd.f32 %v1403, %v1409
        %v1442 = vadd.f32 %v1404, %v1409
        %v1443 = vmax.f32 %v1411, 0.0
        %v1444 = vmax.f32 %v1412, 0.0
        %v1445 = vmax.f32 %v1413, 0.0
        %v1446 = vmax.f32 %v1414, 0.0
        %v1447 = vmax.f32 %v1415, 0.0
        %v1448 = vmax.f32 %v1416, 0.0
        %v1449 = vmax.f32 %v1417, 0.0
        %v1450 = vmax.f32 %v1418, 0.0
        %v1451 = vmax.f32 %v1419, 0.0
        %v1452 = vmax.f32 %v1420, 0.0
        %v1453 = vmax.f32 %v1421, 0.0
        %v1454 = vmax.f32 %v1422, 0.0
        %v1455 = vmax.f32 %v1423, 0.0
        %v1456 = vmax.f32 %v1424, 0.0
        %v1457 = vmax.f32 %v1425, 0.0
        %v1458 = vmax.f32 %v1426, 0.0
        %v1459 = vmax.f32 %v1427, 0.0
        %v1460 = vmax.f32 %v1428, 0.0
        %v1461 = vmax.f32 %v1429, 0.0
        %v1462 = vmax.f32 %v1430, 0.0
        %v1463 = vmax.f32 %v1431, 0.0
        %v1464 = vmax.f32 %v1432, 0.0
        %v1465 = vmax.f32 %v1433, 0.0
        %v1466 = vmax.f32 %v1434, 0.0
        %v1467 = vmax.f32 %v1435, 0.0
        %v1468 = vmax.f32 %v1436, 0.0
        %v1469 = vmax.f32 %v1437, 0.0
        %v1470 = vmax.f32 %v1438, 0.0
        %v1471 = vmax.f32 %v1439, 0.0
        %v1472 = vmax.f32 %v1440, 0.0
        %v1473 = vmax.f32 %v1441, 0.0
        %v1474 = vmax.f32 %v1442, 0.0
        %vm1475 = vcmask 64512
        %1476 = vst.msk [vmem:[#allocation4] sm:$0xff] %vm1475, %v1443
        %1477 = vst.msk [vmem:[#allocation4 + $0x8] sm:$0xff] %vm1475, %v1444
        %1478 = vst.msk [vmem:[#allocation4 + $0x10] sm:$0xff] %vm1475, %v1445
        %1479 = vst.msk [vmem:[#allocation4 + $0x18] sm:$0xff] %vm1475, %v1446
        %1480 = vst.msk [vmem:[#allocation4 + $0x20] sm:$0xff] %vm1475, %v1447
        %1481 = vst.msk [vmem:[#allocation4 + $0x28] sm:$0xff] %vm1475, %v1448
        %1482 = vst.msk [vmem:[#allocation4 + $0x30] sm:$0xff] %vm1475, %v1449
        %1483 = vst.msk [vmem:[#allocation4 + $0x38] sm:$0xff] %vm1475, %v1450
        %1484 = vst.msk [vmem:[#allocation4 + $0x40] sm:$0xff] %vm1475, %v1451
        %1485 = vst.msk [vmem:[#allocation4 + $0x48] sm:$0xff] %vm1475, %v1452
        %1486 = vst.msk [vmem:[#allocation4 + $0x50] sm:$0xff] %vm1475, %v1453
        %1487 = vst.msk [vmem:[#allocation4 + $0x58] sm:$0xff] %vm1475, %v1454
        %1488 = vst.msk [vmem:[#allocation4 + $0x60] sm:$0xff] %vm1475, %v1455
        %1489 = vst.msk [vmem:[#allocation4 + $0x68] sm:$0xff] %vm1475, %v1456
        %1490 = vst.msk [vmem:[#allocation4 + $0x70] sm:$0xff] %vm1475, %v1457
        %1491 = vst.msk [vmem:[#allocation4 + $0x78] sm:$0xff] %vm1475, %v1458
        %1492 = vst.msk [vmem:[#allocation4 + $0x80] sm:$0xff] %vm1475, %v1459
        %1493 = vst.msk [vmem:[#allocation4 + $0x88] sm:$0xff] %vm1475, %v1460
        %1494 = vst.msk [vmem:[#allocation4 + $0x90] sm:$0xff] %vm1475, %v1461
        %1495 = vst.msk [vmem:[#allocation4 + $0x98] sm:$0xff] %vm1475, %v1462
        %1496 = vst.msk [vmem:[#allocation4 + $0xa0] sm:$0xff] %vm1475, %v1463
        %1497 = vst.msk [vmem:[#allocation4 + $0xa8] sm:$0xff] %vm1475, %v1464
        %1498 = vst.msk [vmem:[#allocation4 + $0xb0] sm:$0xff] %vm1475, %v1465
        %1499 = vst.msk [vmem:[#allocation4 + $0xb8] sm:$0xff] %vm1475, %v1466
        %1500 = vst.msk [vmem:[#allocation4 + $0xc0] sm:$0xff] %vm1475, %v1467
        %1501 = vst.msk [vmem:[#allocation4 + $0xc8] sm:$0xff] %vm1475, %v1468
        %1502 = vst.msk [vmem:[#allocation4 + $0xd0] sm:$0xff] %vm1475, %v1469
        %1503 = vst.msk [vmem:[#allocation4 + $0xd8] sm:$0xff] %vm1475, %v1470
        %1504 = vst.msk [vmem:[#allocation4 + $0xe0] sm:$0xff] %vm1475, %v1471
        %1505 = vst.msk [vmem:[#allocation4 + $0xe8] sm:$0xff] %vm1475, %v1472
        %1506 = vst.msk [vmem:[#allocation4 + $0xf0] sm:$0xff] %vm1475, %v1473
        %1507 = vst.msk [vmem:[#allocation4 + $0xf8] sm:$0xff] %vm1475, %v1474
        %v1508 = vld [vmem:[#allocation4] ss:$2 sm:$0xff]
        %s1509 = scalar_lea.vmem [#allocation4], 1
        %v1510 = vld [vmem:[%s1509] ss:$2 sm:$0xff]
        %s1511 = scalar_lea.vmem [#allocation4], 16
        %v1512 = vld [vmem:[%s1511] ss:$2 sm:$0xff]
        %s1513 = scalar_lea.vmem [#allocation4], 17
        %v1514 = vld [vmem:[%s1513] ss:$2 sm:$0xff]
        %v1515 = vmax.f32 %v1508, %v1510
        %v1516 = vmax.f32 %v1512, %v1514
        %v1517 = vmax.f32 %v1515, %v1516
        %v1518 = vpack.c.bf16 %v1517, %v1517
        %vm1519 = vcmask 60416
        %1520 = vst.msk [vmem:[%s236] sm:$0xf] %vm1519, %v1518
        %s1521 = scalar_lea.vmem [#allocation4], 32
        %v1522 = vld [vmem:[%s1521] ss:$2 sm:$0xff]
        %s1523 = scalar_lea.vmem [#allocation4], 33
        %v1524 = vld [vmem:[%s1523] ss:$2 sm:$0xff]
        %s1525 = scalar_lea.vmem [#allocation4], 48
        %v1526 = vld [vmem:[%s1525] ss:$2 sm:$0xff]
        %s1527 = scalar_lea.vmem [#allocation4], 49
        %v1528 = vld [vmem:[%s1527] ss:$2 sm:$0xff]
        %v1529 = vmax.f32 %v1522, %v1524
        %v1530 = vmax.f32 %v1526, %v1528
        %v1531 = vmax.f32 %v1529, %v1530
        %v1532 = vpack.c.bf16 %v1531, %v1531
        %1533 = vst.msk [vmem:[%s236 + $0x4] sm:$0xf] %vm1519, %v1532
        %s1534 = scalar_lea.vmem [#allocation4], 64
        %v1535 = vld [vmem:[%s1534] ss:$2 sm:$0xff]
        %s1536 = scalar_lea.vmem [#allocation4], 65
        %v1537 = vld [vmem:[%s1536] ss:$2 sm:$0xff]
        %s1538 = scalar_lea.vmem [#allocation4], 80
        %v1539 = vld [vmem:[%s1538] ss:$2 sm:$0xff]
        %s1540 = scalar_lea.vmem [#allocation4], 81
        %v1541 = vld [vmem:[%s1540] ss:$2 sm:$0xff]
        %v1542 = vmax.f32 %v1535, %v1537
        %v1543 = vmax.f32 %v1539, %v1541
        %v1544 = vmax.f32 %v1542, %v1543
        %v1545 = vpack.c.bf16 %v1544, %v1544
        %1546 = vst.msk [vmem:[%s236 + $0x8] sm:$0xf] %vm1519, %v1545
        %s1547 = scalar_lea.vmem [#allocation4], 96
        %v1548 = vld [vmem:[%s1547] ss:$2 sm:$0xff]
        %s1549 = scalar_lea.vmem [#allocation4], 97
        %v1550 = vld [vmem:[%s1549] ss:$2 sm:$0xff]
        %s1551 = scalar_lea.vmem [#allocation4], 112
        %v1552 = vld [vmem:[%s1551] ss:$2 sm:$0xff]
        %s1553 = scalar_lea.vmem [#allocation4], 113
        %v1554 = vld [vmem:[%s1553] ss:$2 sm:$0xff]
        %v1555 = vmax.f32 %v1548, %v1550
        %v1556 = vmax.f32 %v1552, %v1554
        %v1557 = vmax.f32 %v1555, %v1556
        %v1558 = vpack.c.bf16 %v1557, %v1557
        %1559 = vst.msk [vmem:[%s236 + $0xc] sm:$0xf] %vm1519, %v1558
        %s1560 = scalar_lea.vmem [#allocation4], 128
        %v1561 = vld [vmem:[%s1560] ss:$2 sm:$0xff]
        %s1562 = scalar_lea.vmem [#allocation4], 129
        %v1563 = vld [vmem:[%s1562] ss:$2 sm:$0xff]
        %s1564 = scalar_lea.vmem [#allocation4], 144
        %v1565 = vld [vmem:[%s1564] ss:$2 sm:$0xff]
        %s1566 = scalar_lea.vmem [#allocation4], 145
        %v1567 = vld [vmem:[%s1566] ss:$2 sm:$0xff]
        %v1568 = vmax.f32 %v1561, %v1563
        %v1569 = vmax.f32 %v1565, %v1567
        %v1570 = vmax.f32 %v1568, %v1569
        %v1571 = vpack.c.bf16 %v1570, %v1570
        %1572 = vst.msk [vmem:[%s236 + $0x10] sm:$0xf] %vm1519, %v1571
        %s1573 = scalar_lea.vmem [#allocation4], 160
        %v1574 = vld [vmem:[%s1573] ss:$2 sm:$0xff]
        %s1575 = scalar_lea.vmem [#allocation4], 161
        %v1576 = vld [vmem:[%s1575] ss:$2 sm:$0xff]
        %s1577 = scalar_lea.vmem [#allocation4], 176
        %v1578 = vld [vmem:[%s1577] ss:$2 sm:$0xff]
        %s1579 = scalar_lea.vmem [#allocation4], 177
        %v1580 = vld [vmem:[%s1579] ss:$2 sm:$0xff]
        %v1581 = vmax.f32 %v1574, %v1576
        %v1582 = vmax.f32 %v1578, %v1580
        %v1583 = vmax.f32 %v1581, %v1582
        %v1584 = vpack.c.bf16 %v1583, %v1583
        %1585 = vst.msk [vmem:[%s236 + $0x14] sm:$0xf] %vm1519, %v1584
        %s1586 = scalar_lea.vmem [#allocation4], 192
        %v1587 = vld [vmem:[%s1586] ss:$2 sm:$0xff]
        %s1588 = scalar_lea.vmem [#allocation4], 193
        %v1589 = vld [vmem:[%s1588] ss:$2 sm:$0xff]
        %s1590 = scalar_lea.vmem [#allocation4], 208
        %v1591 = vld [vmem:[%s1590] ss:$2 sm:$0xff]
        %s1592 = scalar_lea.vmem [#allocation4], 209
        %v1593 = vld [vmem:[%s1592] ss:$2 sm:$0xff]
        %v1594 = vmax.f32 %v1587, %v1589
        %v1595 = vmax.f32 %v1591, %v1593
        %v1596 = vmax.f32 %v1594, %v1595
        %v1597 = vpack.c.bf16 %v1596, %v1596
        %1598 = vst.msk [vmem:[%s236 + $0x18] sm:$0xf] %vm1519, %v1597
        %s1599 = scalar_lea.vmem [#allocation4], 224
        %v1600 = vld [vmem:[%s1599] ss:$2 sm:$0xff]
        %s1601 = scalar_lea.vmem [#allocation4], 225
        %v1602 = vld [vmem:[%s1601] ss:$2 sm:$0xff]
        %s1603 = scalar_lea.vmem [#allocation4], 240
        %v1604 = vld [vmem:[%s1603] ss:$2 sm:$0xff]
        %s1605 = scalar_lea.vmem [#allocation4], 241
        %v1606 = vld [vmem:[%s1605] ss:$2 sm:$0xff]
        %v1607 = vmax.f32 %v1600, %v1602
        %v1608 = vmax.f32 %v1604, %v1606
        %v1609 = vmax.f32 %v1607, %v1608
        %v1610 = vpack.c.bf16 %v1609, %v1609
        %1611 = vst.msk [vmem:[%s236 + $0x1c] sm:$0xf] %vm1519, %v1610
      $region52: #{forward.5} parent=39 // pred_fallthru
        _
      %p1612 = scmp.lt.s32.totalorder %s21, 1
      %s1613 = scalar_select %p1612, %s21, 1
      %s1614 = smul.addr %s1613, 8
      %s1615 = smul.addr %s1614, 4
      %s1616 = scalar_lea.vmem %s5, %s1615
      // Predicated region
      $region53: #{forward.5} parent=39 // pred_check
        %p1617 = pneg %p156
      $region54: #{forward.5} parent=39 // pred_check_branch
        %1619 = sbr.rel (%p1617) target = $region56
      $region55: #{forward.5} parent=39 // pred_region
        _
      $region56: #{forward.5} parent=39 // pred_fallthru
        _
    $region40: #{forward.5} parent=5 // pred_fallthru
      _
    %p1620 = scmp.le.s32.totalorder 2, %s11
    // Predicated region
    $region57: #{forward.5} parent=5 // pred_check
      %p1621 = pneg %p1620
    $region58: #{forward.5} parent=5 // pred_check_branch
      %1623 = sbr.rel (%p1621) target = $region60
    $region59: #{forward.5} parent=5 // pred_region
      %s1624 = ssub.s32 %s11, 2
      // Predicated region
      $region61: #{forward.5} parent=59 // pred_check
        %p1625 = pneg %p162
      $region62: #{forward.5} parent=59 // pred_check_branch
        %1627 = sbr.rel (%p1625) target = $region64
      $region63: #{forward.5} parent=59 // pred_region
        %p1628 = scmp.lt.s32.totalorder %s23, 1
        %s1629 = scalar_select %p1628, %s23, 1
        %s1630 = smul.addr %s1629, 8
        %s1631 = smul.addr %s1630, 4
        %s1632 = scalar_lea.vmem %s5, %s1631
      $region64: #{forward.5} parent=59 // pred_fallthru
        _
    $region60: #{forward.5} parent=5 // pred_fallthru
      _
  $region6: #{forward.5} parent=0 // loop_footer
    %s15 = sadd.s32 1, %s11
  $region7: #{forward.5} parent=0 // loop_footer_branch
    %10 = sbr.rel target = $region3
  $region8: #{forward.5} parent=0 // loop_exit
    _

// kernel: forward.8
$region0: #{forward.8}
  #allocation0 [shape = 'u32[]', space=smem, size = 0x4, offset = 0x4, fixed_abs, tag = 'smem constant byte address 0x4 - core index']
  #allocation1 [shape = 'u32[144,128]{1,0:T(1,128)}', space=vmem, size = 0x12000, scoped, tag = 'internal scratch']
  #allocation2 [shape = 'f32[1,64]{1,0:T(1,128)}', space=vmem, size = 0x200, scoped, tag = 'scratch operand']
  #allocation3 [shape = 'f32[1,64]{1,0:T(1,128)}', space=vmem, size = 0x200, scoped, tag = 'scratch operand']
  #allocation4 [shape = 'f32[4,64]{1,0:T(4,128)}', space=vmem, size = 0x800, scoped, tag = 'scratch operand']
  %s0 = inlined_call_operand.vmem [shape: bf16[2,8,96], index: 0, kind: input, shape index: {}]
  %s1 = inlined_call_operand.vmem [shape: bf16[3,96,64], index: 1, kind: input, shape index: {}]
  %s2 = inlined_call_operand.vmem [shape: f32[1,64], index: 2, kind: input, shape index: {}]
  %s3 = inlined_call_operand.vmem [shape: f32[1,64], index: 3, kind: input, shape index: {}]
  %s4 = inlined_call_operand.vmem [shape: f32[1,64], index: 4, kind: input, shape index: {}]
  %s5 = inlined_call_operand.vmem [shape: bf16[2,1,64], index: 5, kind: output, shape index: {}]
  %s6 = sld [smem:[#allocation0]]
  $region65: #{forward.8} parent=0
    _
  %s8 = ssub.s32 1, %s6
  %s9 = scalar_select 0, %s8, %s6
  loop: start=0, step=1, limit=6
  $region2: #{forward.8} parent=0 // loop_pre_header
    _
  $region3: #{forward.8} parent=0 // loop_header
    %s11 = sphi 0, %s15
    %p12 = scmp.ge.s32.totalorder %s11, 6
    %s18 = sphi 0, %s30
    %s19 = sphi 0, %s26
    %s20 = sphi 0, %s18
    %s21 = sphi 0, %s19
    %s22 = sphi 0, %s20
    %s23 = sphi 0, %s21
    %s33 = sphi 0, %s35
    %s36 = sphi 0, %s33
    %s37 = sphi 0, %s36
    %s53 = sphi 0, %s37
    %s57 = sphi 0, %s57
    %s59 = sphi 0, %s57
    %s60 = sphi 0, %s59
    %s74 = sphi 0, %s60
    %s78 = sphi 0, %s78
    %s80 = sphi 0, %s78
    %s81 = sphi 0, %s80
    %s95 = sphi 0, %s81
    %s99 = sphi 0, %s99
    %s101 = sphi 0, %s99
    %s102 = sphi 0, %s101
    %s116 = sphi 0, %s102
    %s120 = sphi 0, %s120
    %s122 = sphi 0, %s120
    %s123 = sphi 0, %s122
    %s137 = sphi 0, %s123
    %s143 = sphi 0, %s145
    %s146 = sphi 0, %s143
    %s147 = sphi 0, %s146
    %s163 = sphi 0, %s147
  $region4: #{forward.8} parent=0 // loop_header_branch
    %14 = sbr.rel (%p12) target = $region8
  $region5: #{forward.8} parent=0 // loop_body
    %s16 = ssub.s32 %s11, 1
    %s17 = ssub.s32 %s11, 2
    %s24 = sadd.s32 1, %s19
    %p25 = scmp.ge.s32.totalorder %s24, 2
    %s26 = scalar_select %p25, 0, %s24
    %s27 = sadd.s32 1, %s18
    %s28 = scalar_select %p25, %s27, %s18
    %p29 = scmp.ge.s32.totalorder %s28, 2
    %s30 = scalar_select %p29, 0, %s28
    %s31 = ssub.s32 %s19, %s26
    %p32 = scmp.eq.s32.totalorder %s31, 0
    %s34 = sadd.s32 %s33, 1
    %s35 = scalar_select %p32, %s33, %s34
    %p38 = pneg %p32
    %p39 = scmp.eq.s32.totalorder %s11, 3
    %p40 = por %p38, %p39
    %p41 = scmp.ne.s32.totalorder %s33, %s36
    %p42 = scmp.eq.s32.totalorder %s11, 0
    %p43 = por %p41, %p42
    %p44 = scmp.ne.s32.totalorder %s33, %s36
    %p45 = scmp.eq.s32.totalorder %s16, 3
    %p46 = por %p44, %p45
    %p47 = scmp.ne.s32.totalorder %s36, %s37
    %p48 = scmp.eq.s32.totalorder %s16, 0
    %p49 = por %p47, %p48
    %p50 = scmp.ne.s32.totalorder %s36, %s37
    %p51 = scmp.eq.s32.totalorder %s17, 3
    %p52 = por %p50, %p51
    %p54 = scmp.ne.s32.totalorder %s37, %s53
    %p55 = scmp.eq.s32.totalorder %s17, 0
    %p56 = por %p54, %p55
    %s58 = sadd.s32 %s57, 1
    %p61 = scmp.eq.s32.totalorder %s11, 3
    %p62 = scmp.ne.s32.totalorder %s57, %s59
    %p63 = scmp.eq.s32.totalorder %s11, 0
    %p64 = por %p62, %p63
    %p65 = scmp.ne.s32.totalorder %s57, %s59
    %p66 = scmp.eq.s32.totalorder %s16, 3
    %p67 = por %p65, %p66
    %p68 = scmp.ne.s32.totalorder %s59, %s60
    %p69 = scmp.eq.s32.totalorder %s16, 0
    %p70 = por %p68, %p69
    %p71 = scmp.ne.s32.totalorder %s59, %s60
    %p72 = scmp.eq.s32.totalorder %s17, 3
    %p73 = por %p71, %p72
    %p75 = scmp.ne.s32.totalorder %s60, %s74
    %p76 = scmp.eq.s32.totalorder %s17, 0
    %p77 = por %p75, %p76
    %s79 = sadd.s32 %s78, 1
    %p82 = scmp.eq.s32.totalorder %s11, 3
    %p83 = scmp.ne.s32.totalorder %s78, %s80
    %p84 = scmp.eq.s32.totalorder %s11, 0
    %p85 = por %p83, %p84
    %p86 = scmp.ne.s32.totalorder %s78, %s80
    %p87 = scmp.eq.s32.totalorder %s16, 3
    %p88 = por %p86, %p87
    %p89 = scmp.ne.s32.totalorder %s80, %s81
    %p90 = scmp.eq.s32.totalorder %s16, 0
    %p91 = por %p89, %p90
    %p92 = scmp.ne.s32.totalorder %s80, %s81
    %p93 = scmp.eq.s32.totalorder %s17, 3
    %p94 = por %p92, %p93
    %p96 = scmp.ne.s32.totalorder %s81, %s95
    %p97 = scmp.eq.s32.totalorder %s17, 0
    %p98 = por %p96, %p97
    %s100 = sadd.s32 %s99, 1
    %p103 = scmp.eq.s32.totalorder %s11, 3
    %p104 = scmp.ne.s32.totalorder %s99, %s101
    %p105 = scmp.eq.s32.totalorder %s11, 0
    %p106 = por %p104, %p105
    %p107 = scmp.ne.s32.totalorder %s99, %s101
    %p108 = scmp.eq.s32.totalorder %s16, 3
    %p109 = por %p107, %p108
    %p110 = scmp.ne.s32.totalorder %s101, %s102
    %p111 = scmp.eq.s32.totalorder %s16, 0
    %p112 = por %p110, %p111
    %p113 = scmp.ne.s32.totalorder %s101, %s102
    %p114 = scmp.eq.s32.totalorder %s17, 3
    %p115 = por %p113, %p114
    %p117 = scmp.ne.s32.totalorder %s102, %s116
    %p118 = scmp.eq.s32.totalorder %s17, 0
    %p119 = por %p117, %p118
    %s121 = sadd.s32 %s120, 1
    %p124 = scmp.eq.s32.totalorder %s11, 3
    %p125 = scmp.ne.s32.totalorder %s120, %s122
    %p126 = scmp.eq.s32.totalorder %s11, 0
    %p127 = por %p125, %p126
    %p128 = scmp.ne.s32.totalorder %s120, %s122
    %p129 = scmp.eq.s32.totalorder %s16, 3
    %p130 = por %p128, %p129
    %p131 = scmp.ne.s32.totalorder %s122, %s123
    %p132 = scmp.eq.s32.totalorder %s16, 0
    %p133 = por %p131, %p132
    %p134 = scmp.ne.s32.totalorder %s122, %s123
    %p135 = scmp.eq.s32.totalorder %s17, 3
    %p136 = por %p134, %p135
    %p138 = scmp.ne.s32.totalorder %s123, %s137
    %p139 = scmp.eq.s32.totalorder %s17, 0
    %p140 = por %p138, %p139
    %s141 = ssub.s32 %s19, %s26
    %p142 = scmp.eq.s32.totalorder %s141, 0
    %s144 = sadd.s32 %s143, 1
    %s145 = scalar_select %p142, %s143, %s144
    %p148 = pneg %p142
    %p149 = scmp.eq.s32.totalorder %s11, 3
    %p150 = por %p148, %p149
    %p151 = scmp.ne.s32.totalorder %s143, %s146
    %p152 = scmp.eq.s32.totalorder %s11, 0
    %p153 = por %p151, %p152
    %p154 = scmp.ne.s32.totalorder %s143, %s146
    %p155 = scmp.eq.s32.totalorder %s16, 3
    %p156 = por %p154, %p155
    %p157 = scmp.ne.s32.totalorder %s146, %s147
    %p158 = scmp.eq.s32.totalorder %s16, 0
    %p159 = por %p157, %p158
    %p160 = scmp.ne.s32.totalorder %s146, %s147
    %p161 = scmp.eq.s32.totalorder %s17, 3
    %p162 = por %p160, %p161
    %p164 = scmp.ne.s32.totalorder %s147, %s163
    %p165 = scmp.eq.s32.totalorder %s17, 0
    %p166 = por %p164, %p165
    %p167 = scmp.le.s32.totalorder 1, %s11
    %p168 = scmp.lt.s32.totalorder %s11, 5
    %p169 = pnand %p167, %p168
    %p170 = pneg %p169
    // Predicated region
    $region9: #{forward.8} parent=5 // pred_check
      _
    $region10: #{forward.8} parent=5 // pred_check_branch
      %172 = sbr.rel (%p169) target = $region12
    $region11: #{forward.8} parent=5 // pred_region
      %s173 = ssub.s32 %s11, 1
      // Predicated region
      $region13: #{forward.8} parent=11 // pred_check
        %p174 = pneg %p70
      $region14: #{forward.8} parent=11 // pred_check_branch
        %176 = sbr.rel (%p174) target = $region16
      $region15: #{forward.8} parent=11 // pred_region
        _
      $region16: #{forward.8} parent=11 // pred_fallthru
        _
      // Predicated region
      $region17: #{forward.8} parent=11 // pred_check
        %p177 = pneg %p91
      $region18: #{forward.8} parent=11 // pred_check_branch
        %179 = sbr.rel (%p177) target = $region20
      $region19: #{forward.8} parent=11 // pred_region
        _
      $region20: #{forward.8} parent=11 // pred_fallthru
        _
      // Predicated region
      $region21: #{forward.8} parent=11 // pred_check
        %p180 = pneg %p112
      $region22: #{forward.8} parent=11 // pred_check_branch
        %182 = sbr.rel (%p180) target = $region24
      $region23: #{forward.8} parent=11 // pred_region
        _
      $region24: #{forward.8} parent=11 // pred_fallthru
        _
      // Predicated region
      $region25: #{forward.8} parent=11 // pred_check
        %p183 = pneg %p133
      $region26: #{forward.8} parent=11 // pred_check_branch
        %185 = sbr.rel (%p183) target = $region28
      $region27: #{forward.8} parent=11 // pred_region
        _
      $region28: #{forward.8} parent=11 // pred_fallthru
        _
    $region12: #{forward.8} parent=5 // pred_fallthru
      _
    %p186 = scmp.lt.s32.totalorder %s11, 4
    // Predicated region
    $region29: #{forward.8} parent=5 // pred_check
      %p187 = pneg %p186
    $region30: #{forward.8} parent=5 // pred_check_branch
      %189 = sbr.rel (%p187) target = $region32
    $region31: #{forward.8} parent=5 // pred_region
      // Predicated region
      $region33: #{forward.8} parent=31 // pred_check
        %p190 = pneg %p43
      $region34: #{forward.8} parent=31 // pred_check_branch
        %192 = sbr.rel (%p190) target = $region36
      $region35: #{forward.8} parent=31 // pred_region
        %p193 = scmp.lt.s32.totalorder %s19, 1
        %s194 = scalar_select %p193, %s19, 1
        %s195 = smul.addr %s194, 4
        %s196 = scalar_lea.vmem %s0, %s195
      $region36: #{forward.8} parent=31 // pred_fallthru
        _
    $region32: #{forward.8} parent=5 // pred_fallthru
      _
    %p197 = scmp.le.s32.totalorder 1, %s11
    %p198 = scmp.lt.s32.totalorder %s11, 5
    %p199 = pnand %p197, %p198
    %p200 = pneg %p199
    // Predicated region
    $region37: #{forward.8} parent=5 // pred_check
      _
    $region38: #{forward.8} parent=5 // pred_check_branch
      %202 = sbr.rel (%p199) target = $region40
    $region39: #{forward.8} parent=5 // pred_region
      %s203 = ssub.s32 %s11, 1
      %p204 = scmp.lt.s32.totalorder %s21, 1
      %s205 = scalar_select %p204, %s21, 1
      %s206 = smul.addr %s205, 4
      %s207 = scalar_lea.vmem %s0, %s206
      %p208 = pneg %p49
      %p209 = pneg %p46
      %p210 = pneg %p70
      %p211 = pneg %p67
      %p212 = pneg %p91
      %p213 = pneg %p88
      %p214 = pneg %p112
      %p215 = pneg %p109
      %p216 = pneg %p133
      %p217 = pneg %p130
      %p218 = pneg %p159
      %p219 = pneg %p156
      %p220 = scmp.lt.s32.totalorder %s21, 1
      %s221 = scalar_select %p220, %s21, 1
      %s222 = scalar_lea.vmem %s5, %s221
      %p223 = scmp.lt.s32.totalorder %s21, 1
      %s224 = scalar_select %p223, %s21, 1
      %s225 = smul.addr %s224, 4
      %s226 = scalar_lea.vmem %s0, %s225
      %p227 = scmp.lt.s32.totalorder %s21, 1
      %s228 = scalar_select %p227, %s21, 1
      %s229 = scalar_lea.vmem %s5, %s228
      %v231 = vld [vmem:[%s226] sm:$0x3]
      %v232 = vld [vmem:[%s1] sm:$0xf]
      %v233 = vld [vmem:[%s1 + $0x4] sm:$0xf]
      %v234 = vld [vmem:[%s1 + $0x8] sm:$0xf]
      %v235 = vld [vmem:[%s1 + $0xc] sm:$0xf]
      %v236 = vld [vmem:[%s1 + $0x10] sm:$0xf]
      %v237 = vld [vmem:[%s1 + $0x14] sm:$0xf]
      %v238 = vld [vmem:[%s1 + $0x18] sm:$0xf]
      %v239 = vld [vmem:[%s1 + $0x1c] sm:$0xf]
      %v240 = vld [vmem:[%s1 + $0x20] sm:$0xf]
      %v241 = vld [vmem:[%s1 + $0x24] sm:$0xf]
      %v242 = vld [vmem:[%s1 + $0x28] sm:$0xf]
      %v243 = vld [vmem:[%s1 + $0x2c] sm:$0xf]
      %v244 = vld [vmem:[%s226] sm:$0x6]
      %s245 = scalar_lea.vmem %s1, 48
      %v246 = vld [vmem:[%s245] sm:$0xf]
      %v247 = vld [vmem:[%s245 + $0x4] sm:$0xf]
      %v248 = vld [vmem:[%s245 + $0x8] sm:$0xf]
      %v249 = vld [vmem:[%s245 + $0xc] sm:$0xf]
      %v250 = vld [vmem:[%s245 + $0x10] sm:$0xf]
      %v251 = vld [vmem:[%s245 + $0x14] sm:$0xf]
      %v252 = vld [vmem:[%s245 + $0x18] sm:$0xf]
      %v253 = vld [vmem:[%s245 + $0x1c] sm:$0xf]
      %v254 = vld [vmem:[%s245 + $0x20] sm:$0xf]
      %v255 = vld [vmem:[%s245 + $0x24] sm:$0xf]
      %v256 = vld [vmem:[%s245 + $0x28] sm:$0xf]
      %v257 = vld [vmem:[%s245 + $0x2c] sm:$0xf]
      %v259 = vunpack.c.l.b16 %v244
      %v260 = vpack.c.b16 %v259, %v259
      %v261 = vrot.slane %v260, 1
      %v274 = vunpack.c.l.b16 %v246
      %v275 = vunpack.c.l.b16 %v247
      %v276 = vunpack.c.l.b16 %v248
      %v277 = vunpack.c.l.b16 %v249
      %v278 = vunpack.c.l.b16 %v250
      %v279 = vunpack.c.l.b16 %v251
      %v280 = vunpack.c.l.b16 %v252
      %v281 = vunpack.c.l.b16 %v253
      %v282 = vunpack.c.l.b16 %v254
      %v283 = vunpack.c.l.b16 %v255
      %v284 = vunpack.c.l.b16 %v256
      %v285 = vunpack.c.l.b16 %v257
      %v286 = vpack.c.b16 %v275, %v274
      %v287 = vpack.c.b16 %v277, %v276
      %v288 = vpack.c.b16 %v279, %v278
      %v289 = vpack.c.b16 %v281, %v280
      %v290 = vpack.c.b16 %v283, %v282
      %v291 = vpack.c.b16 %v285, %v284
      %vm298 = vcmask 785408
      %v300 = vsel %vm298, %v261, 0
      %302 = vmatprep.subr.bf16.mxu0 0
      %303 = vmatpush1.bf16.msra.mxu0 0
      %304 = vmatprep.subr.bf16.mxu0 0
      %305 = vmatpush1.bf16.msra.mxu0 0
      %306 = vmatprep.subr.bf16.mxu0 0
      %307 = vmatpush1.bf16.msra.mxu0 %v291
      %308 = vmatprep.subr.bf16.mxu0 0
      %309 = vmatpush1.bf16.msra.mxu0 %v290
      %310 = vmatprep.subr.bf16.mxu0 0
      %311 = vmatpush1.bf16.msra.mxu0 %v289
      %312 = vmatprep.subr.bf16.mxu0 0
      %313 = vmatpush1.bf16.msra.mxu0 %v288
      %314 = vmatprep.subr.bf16.mxu0 0
      %315 = vmatpush1.bf16.msra.mxu0 %v287
      %316 = vmatprep.subr.bf16.mxu0 0
      %317 = vmatpush1.bf16.msra.mxu0 %v286
      %318 = vmatprep.subr.bf16.mxu0 0
      %319 = vmatpush2.bf16.msra.mxu0 0
      %320 = vmatprep.subr.bf16.mxu0 0
      %321 = vmatpush2.bf16.msra.mxu0 0
      %322 = vmatprep.subr.bf16.mxu0 0
      %323 = vmatpush2.bf16.msra.mxu0 0
      %324 = vmatprep.subr.bf16.mxu0 0
      %325 = vmatpush2.bf16.msra.mxu0 0
      %326 = vmatprep.subr.bf16.mxu0 0
      %327 = vmatpush2.bf16.msra.mxu0 0
      %328 = vmatprep.subr.bf16.mxu0 0
      %329 = vmatpush2.bf16.msra.mxu0 0
      %330 = vmatprep.subr.bf16.mxu0 0
      %331 = vmatpush2.bf16.msra.mxu0 0
      %332 = vmatprep.subr.bf16.mxu0 0
      %333 = vmatpush2.bf16.msra.mxu0 0
      %334 = vmatprep.mubr.bf16.mxu0 0
      %335 = vmatmul.mubr.bf16.gmra.mxu0 %v300
      %v336 = vpop.f32.mrf.mxu0
      %v337 = vadd.f32 0.0, %v336
      %v338 = vpop.f32.mrf.mxu0
      %v339 = vpop.f32.mrf.mxu0
      %v340 = vpop.f32.mrf.mxu0
      %341 = vdwg.mxu0
      %v354 = vunpack.c.l.b16 %v232
      %v355 = vunpack.c.l.b16 %v233
      %v356 = vunpack.c.l.b16 %v234
      %v357 = vunpack.c.l.b16 %v235
      %v358 = vunpack.c.l.b16 %v236
      %v359 = vunpack.c.l.b16 %v237
      %v360 = vunpack.c.l.b16 %v238
      %v361 = vunpack.c.l.b16 %v239
      %v362 = vunpack.c.l.b16 %v240
      %v363 = vunpack.c.l.b16 %v241
      %v364 = vunpack.c.l.b16 %v242
      %v365 = vunpack.c.l.b16 %v243
      %v366 = vpack.c.b16 %v355, %v354
      %v367 = vpack.c.b16 %v357, %v356
      %v368 = vpack.c.b16 %v359, %v358
      %v369 = vpack.c.b16 %v361, %v360
      %v370 = vpack.c.b16 %v363, %v362
      %v371 = vpack.c.b16 %v365, %v364
      %v379 = vsel %vm298, %v231, 0
      %381 = vmatprep.subr.bf16.mxu0 0
      %382 = vmatpush1.bf16.msra.mxu0 0
      %383 = vmatprep.subr.bf16.mxu0 0
      %384 = vmatpush1.bf16.msra.mxu0 0
      %385 = vmatprep.subr.bf16.mxu0 0
      %386 = vmatpush1.bf16.msra.mxu0 %v371
      %387 = vmatprep.subr.bf16.mxu0 0
      %388 = vmatpush1.bf16.msra.mxu0 %v370
      %389 = vmatprep.subr.bf16.mxu0 0
      %390 = vmatpush1.bf16.msra.mxu0 %v369
      %391 = vmatprep.subr.bf16.mxu0 0
      %392 = vmatpush1.bf16.msra.mxu0 %v368
      %393 = vmatprep.subr.bf16.mxu0 0
      %394 = vmatpush1.bf16.msra.mxu0 %v367
      %395 = vmatprep.subr.bf16.mxu0 0
      %396 = vmatpush1.bf16.msra.mxu0 %v366
      %397 = vmatprep.subr.bf16.mxu0 0
      %398 = vmatpush2.bf16.msra.mxu0 0
      %399 = vmatprep.subr.bf16.mxu0 0
      %400 = vmatpush2.bf16.msra.mxu0 0
      %401 = vmatprep.subr.bf16.mxu0 0
      %402 = vmatpush2.bf16.msra.mxu0 0
      %403 = vmatprep.subr.bf16.mxu0 0
      %404 = vmatpush2.bf16.msra.mxu0 0
      %405 = vmatprep.subr.bf16.mxu0 0
      %406 = vmatpush2.bf16.msra.mxu0 0
      %407 = vmatprep.subr.bf16.mxu0 0
      %408 = vmatpush2.bf16.msra.mxu0 0
      %409 = vmatprep.subr.bf16.mxu0 0
      %410 = vmatpush2.bf16.msra.mxu0 0
      %411 = vmatprep.subr.bf16.mxu0 0
      %412 = vmatpush2.bf16.msra.mxu0 0
      %413 = vmatprep.mubr.bf16.mxu0 0
      %414 = vmatmul.mubr.bf16.gmra.mxu0 %v379
      %v415 = vpop.f32.mrf.mxu0
      %v416 = vadd.f32 %v337, %v415
      %v417 = vpop.f32.mrf.mxu0
      %v418 = vpop.f32.mrf.mxu0
      %v419 = vpop.f32.mrf.mxu0
      %420 = vdwg.mxu0
      %v421 = vld [vmem:[%s226] sm:$0xc]
      %s422 = scalar_lea.vmem %s1, 96
      %v423 = vld [vmem:[%s422] sm:$0xf]
      %v424 = vld [vmem:[%s422 + $0x4] sm:$0xf]
      %v425 = vld [vmem:[%s422 + $0x8] sm:$0xf]
      %v426 = vld [vmem:[%s422 + $0xc] sm:$0xf]
      %v427 = vld [vmem:[%s422 + $0x10] sm:$0xf]
      %v428 = vld [vmem:[%s422 + $0x14] sm:$0xf]
      %v429 = vld [vmem:[%s422 + $0x18] sm:$0xf]
      %v430 = vld [vmem:[%s422 + $0x1c] sm:$0xf]
      %v431 = vld [vmem:[%s422 + $0x20] sm:$0xf]
      %v432 = vld [vmem:[%s422 + $0x24] sm:$0xf]
      %v433 = vld [vmem:[%s422 + $0x28] sm:$0xf]
      %v434 = vld [vmem:[%s422 + $0x2c] sm:$0xf]
      %v436 = vunpack.c.l.b16 %v421
      %v437 = vpack.c.b16 %v436, %v436
      %v438 = vrot.slane %v437, 2
      %v451 = vunpack.c.l.b16 %v423
      %v452 = vunpack.c.l.b16 %v424
      %v453 = vunpack.c.l.b16 %v425
      %v454 = vunpack.c.l.b16 %v426
      %v455 = vunpack.c.l.b16 %v427
      %v456 = vunpack.c.l.b16 %v428
      %v457 = vunpack.c.l.b16 %v429
      %v458 = vunpack.c.l.b16 %v430
      %v459 = vunpack.c.l.b16 %v431
      %v460 = vunpack.c.l.b16 %v432
      %v461 = vunpack.c.l.b16 %v433
      %v462 = vunpack.c.l.b16 %v434
      %v463 = vpack.c.b16 %v452, %v451
      %v464 = vpack.c.b16 %v454, %v453
      %v465 = vpack.c.b16 %v456, %v455
      %v466 = vpack.c.b16 %v458, %v457
      %v467 = vpack.c.b16 %v460, %v459
      %v468 = vpack.c.b16 %v462, %v461
      %v476 = vsel %vm298, %v438, 0
      %478 = vmatprep.subr.bf16.mxu0 0
      %479 = vmatpush1.bf16.msra.mxu0 0
      %480 = vmatprep.subr.bf16.mxu0 0
      %481 = vmatpush1.bf16.msra.mxu0 0
      %482 = vmatprep.subr.bf16.mxu0 0
      %483 = vmatpush1.bf16.msra.mxu0 %v468
      %484 = vmatprep.subr.bf16.mxu0 0
      %485 = vmatpush1.bf16.msra.mxu0 %v467
      %486 = vmatprep.subr.bf16.mxu0 0
      %487 = vmatpush1.bf16.msra.mxu0 %v466
      %488 = vmatprep.subr.bf16.mxu0 0
      %489 = vmatpush1.bf16.msra.mxu0 %v465
      %490 = vmatprep.subr.bf16.mxu0 0
      %491 = vmatpush1.bf16.msra.mxu0 %v464
      %492 = vmatprep.subr.bf16.mxu0 0
      %493 = vmatpush1.bf16.msra.mxu0 %v463
      %494 = vmatprep.subr.bf16.mxu0 0
      %495 = vmatpush2.bf16.msra.mxu0 0
      %496 = vmatprep.subr.bf16.mxu0 0
      %497 = vmatpush2.bf16.msra.mxu0 0
      %498 = vmatprep.subr.bf16.mxu0 0
      %499 = vmatpush2.bf16.msra.mxu0 0
      %500 = vmatprep.subr.bf16.mxu0 0
      %501 = vmatpush2.bf16.msra.mxu0 0
      %502 = vmatprep.subr.bf16.mxu0 0
      %503 = vmatpush2.bf16.msra.mxu0 0
      %504 = vmatprep.subr.bf16.mxu0 0
      %505 = vmatpush2.bf16.msra.mxu0 0
      %506 = vmatprep.subr.bf16.mxu0 0
      %507 = vmatpush2.bf16.msra.mxu0 0
      %508 = vmatprep.subr.bf16.mxu0 0
      %509 = vmatpush2.bf16.msra.mxu0 0
      %510 = vmatprep.mubr.bf16.mxu0 0
      %511 = vmatmul.mubr.bf16.gmra.mxu0 %v476
      %v512 = vpop.f32.mrf.mxu0
      %v513 = vadd.f32 0.0, %v512
      %v514 = vpop.f32.mrf.mxu0
      %v515 = vpop.f32.mrf.mxu0
      %v516 = vpop.f32.mrf.mxu0
      %517 = vdwg.mxu0
      %v518 = vadd.f32 %v416, %v513
      %v519 = vld [vmem:[%s2] sm:$0x1]
      %v521 = vlaneseq
      %v522 = vshrl.u32 %v521, 7
      %v523 = vsub.s32 0, %v522
      %v524 = vrot.slane %v519, %v523
      %v526 = vadd.f32 %v518, %v524
      %p527 = scmp.eq.s32.totalorder %s20, 0
      %p528 = scmp.eq.s32.totalorder %s21, 0
      %p529 = pnand %p527, %p528
      %p530 = pneg %p529
      // Predicated region
      $region41: #{forward.8} parent=39 // pred_check
        _
      $region42: #{forward.8} parent=39 // pred_check_branch
        %532 = sbr.rel (%p529) target = $region44
      $region43: #{forward.8} parent=39 // pred_region
        %vm533 = vcmask 516096
        %534 = vst.msk [vmem:[#allocation2] sm:$0x1] %vm533, 0.0
        %535 = vst.msk [vmem:[#allocation3] sm:$0x1] %vm533, 0.0
      $region44: #{forward.8} parent=39 // pred_fallthru
        _
      // Predicated region
      $region45: #{forward.8} parent=39 // pred_check
        %p536 = pneg %p527
      $region46: #{forward.8} parent=39 // pred_check_branch
        %538 = sbr.rel (%p536) target = $region48
      $region47: #{forward.8} parent=39 // pred_region
        %v539 = vld [vmem:[#allocation2] sm:$0x1]
        %vm540 = vcmask 519168
        %v541 = vsel %vm540, %v526, 0.0
        %v542 = vrot.slane %v541, 4
        %v543 = vadd.f32 %v541, %v542
        %v544 = vrot.slane %v543, 2
        %v545 = vadd.f32 %v543, %v544
        %v546 = vrot.slane %v545, 1
        %v547 = vadd.f32 %v545, %v546
        %v548 = vadd.f32 %v539, %v547
        %vm549 = vcmask 516096
        %550 = vst.msk [vmem:[#allocation2] sm:$0x1] %vm549, %v548
        %v551 = vld [vmem:[#allocation3] sm:$0x1]
        %v552 = vmul.f32 %v526, %v526
        %v553 = vsel %vm540, %v552, 0.0
        %v554 = vrot.slane %v553, 4
        %v555 = vadd.f32 %v553, %v554
        %v556 = vrot.slane %v555, 2
        %v557 = vadd.f32 %v555, %v556
        %v558 = vrot.slane %v557, 1
        %v559 = vadd.f32 %v557, %v558
        %v560 = vadd.f32 %v551, %v559
        %561 = vst.msk [vmem:[#allocation3] sm:$0x1] %vm549, %v560
      $region48: #{forward.8} parent=39 // pred_fallthru
        _
      %p562 = scmp.eq.s32.totalorder %s20, 1
      // Predicated region
      $region49: #{forward.8} parent=39 // pred_check
        %p563 = pneg %p562
      $region50: #{forward.8} parent=39 // pred_check_branch
        %565 = sbr.rel (%p563) target = $region52
      $region51: #{forward.8} parent=39 // pred_region
        %v566 = vld [vmem:[#allocation2] sm:$0x1]
        %v567 = vmul.f32 %v566, 0.125
        %v568 = vld [vmem:[#allocation3] sm:$0x1]
        %v569 = vmul.f32 %v568, 0.125
        %v570 = vmul.f32 %v567, %v567
        %v571 = vsub.f32 %v569, %v570
        %v572 = vmax.f32 %v571, 0.0
        %v573 = vadd.f32 %v572, 1e-05
        %v574 = vrsqrt.pop %v573
        %v575 = vld [vmem:[%s3] sm:$0x1]
        %v576 = vmul.f32 %v575, %v574
        %v577 = vld [vmem:[%s4] sm:$0x1]
        %v578 = vmul.f32 %v567, %v576
        %v579 = vsub.f32 %v577, %v578
        %v581 = vlaneseq
        %v582 = vshrl.u32 %v581, 7
        %v583 = vsub.s32 0, %v582
        %v584 = vrot.slane %v576, %v583
        %v586 = vmul.f32 %v526, %v584
        %v588 = vlaneseq
        %v589 = vshrl.u32 %v588, 7
        %v590 = vsub.s32 0, %v589
        %v591 = vrot.slane %v579, %v590
        %v593 = vadd.f32 %v586, %v591
        %v594 = vmax.f32 %v593, 0.0
        %vm595 = vcmask 519168
        %596 = vst.msk [vmem:[#allocation4] sm:$0xf] %vm595, %v594
        %v597 = vld [vmem:[#allocation4] ss:$2 sm:$0x1]
        %s598 = scalar_lea.vmem [#allocation4], 1
        %v599 = vld [vmem:[%s598] ss:$2 sm:$0x1]
        %s600 = scalar_lea.vmem [#allocation4], 2
        %v601 = vld [vmem:[%s600] ss:$2 sm:$0x1]
        %s602 = scalar_lea.vmem [#allocation4], 3
        %v603 = vld [vmem:[%s602] ss:$2 sm:$0x1]
        %v604 = vmax.f32 %v597, %v599
        %v605 = vmax.f32 %v601, %v603
        %v606 = vmax.f32 %v604, %v605
        %v607 = vpack.c.bf16 %v606, %v606
        %vm608 = vcmask 516096
        %vm609 = vsmask.f32 256
        %vm610 = vmand %vm608, %vm609
        %v611 = vld [vmem:[%s229] sm:$0x1]
        %v612 = vsel %vm610, %v607, %v611
        %613 = vst [vmem:[%s229] sm:$0x1] %v612
      $region52: #{forward.8} parent=39 // pred_fallthru
        _
      %p614 = scmp.lt.s32.totalorder %s21, 1
      %s615 = scalar_select %p614, %s21, 1
      %s616 = scalar_lea.vmem %s5, %s615
      // Predicated region
      $region53: #{forward.8} parent=39 // pred_check
        %p617 = pneg %p156
      $region54: #{forward.8} parent=39 // pred_check_branch
        %619 = sbr.rel (%p617) target = $region56
      $region55: #{forward.8} parent=39 // pred_region
        _
      $region56: #{forward.8} parent=39 // pred_fallthru
        _
    $region40: #{forward.8} parent=5 // pred_fallthru
      _
    %p620 = scmp.le.s32.totalorder 2, %s11
    // Predicated region
    $region57: #{forward.8} parent=5 // pred_check
      %p621 = pneg %p620
    $region58: #{forward.8} parent=5 // pred_check_branch
      %623 = sbr.rel (%p621) target = $region60
    $region59: #{forward.8} parent=5 // pred_region
      %s624 = ssub.s32 %s11, 2
      // Predicated region
      $region61: #{forward.8} parent=59 // pred_check
        %p625 = pneg %p162
      $region62: #{forward.8} parent=59 // pred_check_branch
        %627 = sbr.rel (%p625) target = $region64
      $region63: #{forward.8} parent=59 // pred_region
        %p628 = scmp.lt.s32.totalorder %s23, 1
        %s629 = scalar_select %p628, %s23, 1
        %s630 = scalar_lea.vmem %s5, %s629
      $region64: #{forward.8} parent=59 // pred_fallthru
        _
    $region60: #{forward.8} parent=5 // pred_fallthru
      _
  $region6: #{forward.8} parent=0 // loop_footer
    %s15 = sadd.s32 1, %s11
  $region7: #{forward.8} parent=0 // loop_footer_branch
    %10 = sbr.rel target = $region3
  $region8: #{forward.8} parent=0 // loop_exit
    _

// kernel: forward.9
$region0: #{forward.9}
  #allocation0 [shape = 'u32[]', space=smem, size = 0x4, offset = 0x4, fixed_abs, tag = 'smem constant byte address 0x4 - core index']
  #allocation1 [shape = 'u32[144,128]{1,0:T(1,128)}', space=vmem, size = 0x12000, scoped, tag = 'internal scratch']
  %s0 = inlined_call_operand.vmem [shape: bf16[2,64], index: 0, kind: input, shape index: {}]
  %s1 = inlined_call_operand.vmem [shape: bf16[64,128], index: 1, kind: input, shape index: {}]
  %s2 = inlined_call_operand.vmem [shape: f32[1,128], index: 2, kind: input, shape index: {}]
  %s3 = inlined_call_operand.vmem [shape: bf16[128,5], index: 3, kind: input, shape index: {}]
  %s4 = inlined_call_operand.vmem [shape: f32[1,5], index: 4, kind: input, shape index: {}]
  %s5 = inlined_call_operand.hbm [shape: f32[2,5], index: 5, kind: output, shape index: {}]
  %s6 = sld [smem:[#allocation0]]
  $region30: #{forward.9} parent=0
    _
  %s8 = ssub.s32 1, %s6
  %s9 = scalar_select 0, %s8, %s6
  $region1: #{forward.9} parent=0
    #allocation2 [shape = 'u8[1024]{0}', space=vmem, size = 0x400, scoped, tag = 'output window, operand 0, single buffered']
    #allocation3 [shape = 's32[1]{0}', space=sflag, size = 0x4, scoped, tag = 'scoped memory for forward.9']
    %10 = vsyncpa [#allocation3], 0
    // Predicated region
    $region2: #{forward.9} parent=1 // pred_check
      _
    $region3: #{forward.9} parent=1 // pred_check_branch
      %12 = sbr.rel (0) target = $region5
    $region4: #{forward.9} parent=1 // pred_region
      _
    $region5: #{forward.9} parent=1 // pred_fallthru
      _
    // Predicated region
    $region6: #{forward.9} parent=1 // pred_check
      _
    $region7: #{forward.9} parent=1 // pred_check_branch
      %14 = sbr.rel (0) target = $region9
    $region8: #{forward.9} parent=1 // pred_region
      _
    $region9: #{forward.9} parent=1 // pred_fallthru
      _
    // Predicated region
    $region10: #{forward.9} parent=1 // pred_check
      _
    $region11: #{forward.9} parent=1 // pred_check_branch
      %16 = sbr.rel (0) target = $region13
    $region12: #{forward.9} parent=1 // pred_region
      _
    $region13: #{forward.9} parent=1 // pred_fallthru
      _
    // Predicated region
    $region14: #{forward.9} parent=1 // pred_check
      _
    $region15: #{forward.9} parent=1 // pred_check_branch
      %18 = sbr.rel (0) target = $region17
    $region16: #{forward.9} parent=1 // pred_region
      _
    $region17: #{forward.9} parent=1 // pred_fallthru
      _
    // Predicated region
    $region18: #{forward.9} parent=1 // pred_check
      _
    $region19: #{forward.9} parent=1 // pred_check_branch
      %20 = sbr.rel (0) target = $region21
    $region20: #{forward.9} parent=1 // pred_region
      _
    $region21: #{forward.9} parent=1 // pred_fallthru
      _
    %v22 = vld [vmem:[%s0] sm:$0x1]
    %v23 = vld [vmem:[%s1] sm:$0xf]
    %v24 = vld [vmem:[%s1 + $0x4] sm:$0xf]
    %v25 = vld [vmem:[%s1 + $0x8] sm:$0xf]
    %v26 = vld [vmem:[%s1 + $0xc] sm:$0xf]
    %v27 = vld [vmem:[%s1 + $0x10] sm:$0xf]
    %v28 = vld [vmem:[%s1 + $0x14] sm:$0xf]
    %v29 = vld [vmem:[%s1 + $0x18] sm:$0xf]
    %v30 = vld [vmem:[%s1 + $0x1c] sm:$0xf]
    %v31 = vld [vmem:[%s2] sm:$0x1]
    %v33 = vlaneseq
    %v34 = vshrl.u32 %v33, 7
    %v35 = vsub.s32 0, %v34
    %v36 = vrot.slane %v31, %v35
    %v46 = vunpack.c.l.b16 %v23
    %v47 = vunpack.c.l.b16 %v24
    %v48 = vunpack.c.l.b16 %v25
    %v49 = vunpack.c.l.b16 %v26
    %v50 = vunpack.c.l.b16 %v27
    %v51 = vunpack.c.l.b16 %v28
    %v52 = vunpack.c.l.b16 %v29
    %v53 = vunpack.c.l.b16 %v30
    %v54 = vpack.c.b16 %v47, %v46
    %v55 = vpack.c.b16 %v49, %v48
    %v56 = vpack.c.b16 %v51, %v50
    %v57 = vpack.c.b16 %v53, %v52
    %vm62 = vcmask 523264
    %v64 = vsel %vm62, %v22, 0
    %66 = vmatprep.subr.bf16.mxu0 0
    %67 = vmatpush1.bf16.msra.mxu0 0
    %68 = vmatprep.subr.bf16.mxu0 0
    %69 = vmatpush1.bf16.msra.mxu0 0
    %70 = vmatprep.subr.bf16.mxu0 0
    %71 = vmatpush1.bf16.msra.mxu0 0
    %72 = vmatprep.subr.bf16.mxu0 0
    %73 = vmatpush1.bf16.msra.mxu0 0
    %74 = vmatprep.subr.bf16.mxu0 0
    %75 = vmatpush1.bf16.msra.mxu0 %v57
    %76 = vmatprep.subr.bf16.mxu0 0
    %77 = vmatpush1.bf16.msra.mxu0 %v56
    %78 = vmatprep.subr.bf16.mxu0 0
    %79 = vmatpush1.bf16.msra.mxu0 %v55
    %80 = vmatprep.subr.bf16.mxu0 0
    %81 = vmatpush1.bf16.msra.mxu0 %v54
    %82 = vmatprep.subr.bf16.mxu0 0
    %83 = vmatpush2.bf16.msra.mxu0 0
    %84 = vmatprep.subr.bf16.mxu0 0
    %85 = vmatpush2.bf16.msra.mxu0 0
    %86 = vmatprep.subr.bf16.mxu0 0
    %87 = vmatpush2.bf16.msra.mxu0 0
    %88 = vmatprep.subr.bf16.mxu0 0
    %89 = vmatpush2.bf16.msra.mxu0 0
    %90 = vmatprep.subr.bf16.mxu0 0
    %91 = vmatpush2.bf16.msra.mxu0 0
    %92 = vmatprep.subr.bf16.mxu0 0
    %93 = vmatpush2.bf16.msra.mxu0 0
    %94 = vmatprep.subr.bf16.mxu0 0
    %95 = vmatpush2.bf16.msra.mxu0 0
    %96 = vmatprep.subr.bf16.mxu0 0
    %97 = vmatpush2.bf16.msra.mxu0 0
    %98 = vmatprep.mubr.bf16.mxu0 0
    %99 = vmatmul.mubr.bf16.gmra.mxu0 %v64
    %v100 = vpop.f32.mrf.mxu0
    %v101 = vadd.f32 %v36, %v100
    %v102 = vpop.f32.mrf.mxu0
    %v103 = vpop.f32.mrf.mxu0
    %v104 = vpop.f32.mrf.mxu0
    %105 = vdwg.mxu0
    %v106 = vmax.f32 %v101, 0.0
    %v107 = vpack.c.bf16 %v106, %v106
    %v108 = vld [vmem:[%s3] sm:$0xf]
    %v109 = vld [vmem:[%s3 + $0x4] sm:$0xf]
    %v110 = vld [vmem:[%s3 + $0x8] sm:$0xf]
    %v111 = vld [vmem:[%s3 + $0xc] sm:$0xf]
    %v112 = vld [vmem:[%s3 + $0x10] sm:$0xf]
    %v113 = vld [vmem:[%s3 + $0x14] sm:$0xf]
    %v114 = vld [vmem:[%s3 + $0x18] sm:$0xf]
    %v115 = vld [vmem:[%s3 + $0x1c] sm:$0xf]
    %v116 = vld [vmem:[%s3 + $0x20] sm:$0xf]
    %v117 = vld [vmem:[%s3 + $0x24] sm:$0xf]
    %v118 = vld [vmem:[%s3 + $0x28] sm:$0xf]
    %v119 = vld [vmem:[%s3 + $0x2c] sm:$0xf]
    %v120 = vld [vmem:[%s3 + $0x30] sm:$0xf]
    %v121 = vld [vmem:[%s3 + $0x34] sm:$0xf]
    %v122 = vld [vmem:[%s3 + $0x38] sm:$0xf]
    %v123 = vld [vmem:[%s3 + $0x3c] sm:$0xf]
    %v124 = vld [vmem:[%s4] sm:$0x1]
    %v126 = vlaneseq
    %v127 = vshrl.u32 %v126, 7
    %v128 = vsub.s32 0, %v127
    %v129 = vrot.slane %v124, %v128
    %v147 = vunpack.c.l.b16 %v108
    %v148 = vunpack.c.l.b16 %v109
    %v149 = vunpack.c.l.b16 %v110
    %v150 = vunpack.c.l.b16 %v111
    %v151 = vunpack.c.l.b16 %v112
    %v152 = vunpack.c.l.b16 %v113
    %v153 = vunpack.c.l.b16 %v114
    %v154 = vunpack.c.l.b16 %v115
    %v155 = vunpack.c.l.b16 %v116
    %v156 = vunpack.c.l.b16 %v117
    %v157 = vunpack.c.l.b16 %v118
    %v158 = vunpack.c.l.b16 %v119
    %v159 = vunpack.c.l.b16 %v120
    %v160 = vunpack.c.l.b16 %v121
    %v161 = vunpack.c.l.b16 %v122
    %v162 = vunpack.c.l.b16 %v123
    %v163 = vpack.c.b16 %v148, %v147
    %v164 = vpack.c.b16 %v150, %v149
    %v165 = vpack.c.b16 %v152, %v151
    %v166 = vpack.c.b16 %v154, %v153
    %v167 = vpack.c.b16 %v156, %v155
    %v168 = vpack.c.b16 %v158, %v157
    %v169 = vpack.c.b16 %v160, %v159
    %v170 = vpack.c.b16 %v162, %v161
    %179 = vmatprep.subr.bf16.mxu0 0
    %180 = vmatpush1.bf16.msra.mxu0 %v170
    %181 = vmatprep.subr.bf16.mxu0 0
    %182 = vmatpush1.bf16.msra.mxu0 %v169
    %183 = vmatprep.subr.bf16.mxu0 0
    %184 = vmatpush1.bf16.msra.mxu0 %v168
    %185 = vmatprep.subr.bf16.mxu0 0
    %186 = vmatpush1.bf16.msra.mxu0 %v167
    %187 = vmatprep.subr.bf16.mxu0 0
    %188 = vmatpush1.bf16.msra.mxu0 %v166
    %189 = vmatprep.subr.bf16.mxu0 0
    %190 = vmatpush1.bf16.msra.mxu0 %v165
    %191 = vmatprep.subr.bf16.mxu0 0
    %192 = vmatpush1.bf16.msra.mxu0 %v164
    %193 = vmatprep.subr.bf16.mxu0 0
    %194 = vmatpush1.bf16.msra.mxu0 %v163
    %195 = vmatprep.subr.bf16.mxu0 0
    %196 = vmatpush2.bf16.msra.mxu0 0
    %197 = vmatprep.subr.bf16.mxu0 0
    %198 = vmatpush2.bf16.msra.mxu0 0
    %199 = vmatprep.subr.bf16.mxu0 0
    %200 = vmatpush2.bf16.msra.mxu0 0
    %201 = vmatprep.subr.bf16.mxu0 0
    %202 = vmatpush2.bf16.msra.mxu0 0
    %203 = vmatprep.subr.bf16.mxu0 0
    %204 = vmatpush2.bf16.msra.mxu0 0
    %205 = vmatprep.subr.bf16.mxu0 0
    %206 = vmatpush2.bf16.msra.mxu0 0
    %207 = vmatprep.subr.bf16.mxu0 0
    %208 = vmatpush2.bf16.msra.mxu0 0
    %209 = vmatprep.subr.bf16.mxu0 0
    %210 = vmatpush2.bf16.msra.mxu0 0
    %211 = vmatprep.mubr.bf16.mxu0 0
    %212 = vmatmul.mubr.bf16.gmra.mxu0 %v107
    %v213 = vpop.f32.mrf.mxu0
    %v214 = vadd.f32 %v129, %v213
    %v215 = vpop.f32.mrf.mxu0
    %v216 = vpop.f32.mrf.mxu0
    %v217 = vpop.f32.mrf.mxu0
    %218 = vdwg.mxu0
    %vm219 = vcmask 33792
    %220 = vst.msk [vmem:[#allocation2] sm:$0x3] %vm219, %v214
    // Predicated region
    $region22: #{forward.9} parent=1 // pred_check
      _
    $region23: #{forward.9} parent=1 // pred_check_branch
      %222 = sbr.rel (0) target = $region25
    $region24: #{forward.9} parent=1 // pred_region
      %s224 = ssub.s32 32, 32
      %225 = vsyncadd [#allocation3], %s224
      %s227 = sshll.u32 [#allocation2], 4
      %s228 = int_to_ptr.vmem [resolvable:$true] %s227
      %230 = dma.vmem_to_hbm [thread:$0]  %s228, 32, %s5, [#allocation3]
    $region25: #{forward.9} parent=1 // pred_fallthru
      _
    // Predicated region
    $region26: #{forward.9} parent=1 // pred_check
      _
    $region27: #{forward.9} parent=1 // pred_check_branch
      %232 = sbr.rel (0) target = $region29
    $region28: #{forward.9} parent=1 // pred_region
      %233 = dma.done [#allocation3], 32
    $region29: #{forward.9} parent=1 // pred_fallthru
      _
    %234 = vsyncpa [#allocation3], 1

</llo_original>
